<compile_context>
chip_gen: v6e
topology: v6e:2x2x1
jax: 0.10.0
libtpu: 0.0.40
codegen_flags: <defaults>
</compile_context>

<pallas_src>
import functools

import jax
import jax.numpy as jnp
from jax.experimental import pallas as pl
from jax.experimental.pallas import tpu as pltpu

_LANE = 128
_VMEM_LIMIT = 48 * 1024 * 1024


# ---------------------------------------------------------------------------
# Small helpers
# ---------------------------------------------------------------------------
def _round_up(x, m):
    return (x + m - 1) // m * m


def _pick_tile(m, target):
    """Largest multiple of 8 <= target that divides m (else the full dim)."""
    t = min(target, m)
    t -= t % 8
    while t >= 8:
        if m % t == 0:
            return t
        t -= 8
    return m


def _pick_chunk(t_total, target):
    """Largest divisor of t_total that is <= target."""
    best = 1
    for c in range(1, min(t_total, target) + 1):
        if t_total % c == 0:
            best = c
    return best


def _cparams(sem):
    return pltpu.CompilerParams(dimension_semantics=sem, vmem_limit_bytes=_VMEM_LIMIT)


def _dir_map(direction):
    # index_map selecting one direction's slice of a direction-stacked weight/bias.
    return lambda i: (direction, 0, 0)


def _lstm_gates(g, c_state, hp):
    """Gate math in f32 (gate order i, f, g, o like nn.LSTM); lane-aligned Hp slices."""
    i_g = jax.nn.sigmoid(g[:, 0 * hp:1 * hp])
    f_g = jax.nn.sigmoid(g[:, 1 * hp:2 * hp])
    g_g = jnp.tanh(g[:, 2 * hp:3 * hp])
    o_g = jax.nn.sigmoid(g[:, 3 * hp:4 * hp])
    c_new = f_g * c_state + i_g * g_g
    h_new = o_g * jnp.tanh(c_new)
    return h_new, c_new


# ---------------------------------------------------------------------------
# Projection (input-gate) GEMM kernels: gx = x @ W_ih + b, tiled over M = T*B
# ---------------------------------------------------------------------------
def _proj_both_from_x_kernel(x_ref, w_ref, b_ref, o_ref):
    # x [tm, E]; w [2, E, 4Hp]; b [2, 1, 4Hp] f32; o [2, tm, 4Hp]
    x = x_ref[...]
    for d in range(2):
        o_ref[d] = (jnp.dot(x, w_ref[d], preferred_element_type=jnp.float32)
                    + b_ref[d]).astype(o_ref.dtype)


def _proj_both_from_h_kernel(h_ref, w_ref, b_ref, o_ref):
    # h [2, tm, Hp] (prev layer fwd/bwd halves); w [2, 2Hp, 4Hp]; o [2, tm, 4Hp]
    hp = h_ref.shape[2]
    hf = h_ref[0]
    hb = h_ref[1]
    for d in range(2):
        o_ref[d] = (jnp.dot(hf, w_ref[d, 0:hp, :], preferred_element_type=jnp.float32)
                    + jnp.dot(hb, w_ref[d, hp:2 * hp, :], preferred_element_type=jnp.float32)
                    + b_ref[d]).astype(o_ref.dtype)


def _proj_one_from_x_kernel(x_ref, w_ref, b_ref, o_ref):
    # x [tm, E]; w [1, E, 4Hp] (one direction); o [tm, 4Hp]
    o_ref[...] = (jnp.dot(x_ref[...], w_ref[0], preferred_element_type=jnp.float32)
                  + b_ref[0]).astype(o_ref.dtype)


def _proj_one_from_h_kernel(h_ref, w_ref, b_ref, o_ref):
    # h [2, tm, Hp]; w [1, 2Hp, 4Hp]; o [tm, 4Hp]
    hp = h_ref.shape[2]
    o_ref[...] = (jnp.dot(h_ref[0], w_ref[0, 0:hp, :], preferred_element_type=jnp.float32)
                  + jnp.dot(h_ref[1], w_ref[0, hp:2 * hp, :], preferred_element_type=jnp.float32)
                  + b_ref[0]).astype(o_ref.dtype)


def _proj_both_from_x(x2d, wih, bias, out_dtype, tm_target):
    m, e = x2d.shape
    g = wih.shape[2]
    tm = _pick_tile(m, tm_target)
    return pl.pallas_call(
        _proj_both_from_x_kernel,
        out_shape=jax.ShapeDtypeStruct((2, m, g), out_dtype),
        grid_spec=pltpu.PrefetchScalarGridSpec(
            num_scalar_prefetch=0,
            grid=(m // tm,),
            in_specs=[pl.BlockSpec((tm, e), lambda i: (i, 0)),
                      pl.BlockSpec((2, e, g), lambda i: (0, 0, 0)),
                      pl.BlockSpec((2, 1, g), lambda i: (0, 0, 0))],
            out_specs=pl.BlockSpec((2, tm, g), lambda i: (0, i, 0))),
        compiler_params=_cparams(("parallel",)),
    )(x2d, wih, bias)


def _proj_both_from_h(h2d, wih, bias, out_dtype, tm_target):
    _, m, hp = h2d.shape
    g = wih.shape[2]
    tm = _pick_tile(m, tm_target)
    return pl.pallas_call(
        _proj_both_from_h_kernel,
        out_shape=jax.ShapeDtypeStruct((2, m, g), out_dtype),
        grid_spec=pltpu.PrefetchScalarGridSpec(
            num_scalar_prefetch=0,
            grid=(m // tm,),
            in_specs=[pl.BlockSpec((2, tm, hp), lambda i: (0, i, 0)),
                      pl.BlockSpec((2, 2 * hp, g), lambda i: (0, 0, 0)),
                      pl.BlockSpec((2, 1, g), lambda i: (0, 0, 0))],
            out_specs=pl.BlockSpec((2, tm, g), lambda i: (0, i, 0))),
        compiler_params=_cparams(("parallel",)),
    )(h2d, wih, bias)


def _proj_one_from_x(x2d, wih, bias, direction, out_dtype, tm_target):
    m, e = x2d.shape
    g = wih.shape[2]
    tm = _pick_tile(m, tm_target)
    return pl.pallas_call(
        _proj_one_from_x_kernel,
        out_shape=jax.ShapeDtypeStruct((m, g), out_dtype),
        grid_spec=pltpu.PrefetchScalarGridSpec(
            num_scalar_prefetch=0,
            grid=(m // tm,),
            in_specs=[pl.BlockSpec((tm, e), lambda i: (i, 0)),
                      pl.BlockSpec((1, e, g), _dir_map(direction)),
                      pl.BlockSpec((1, 1, g), _dir_map(direction))],
            out_specs=pl.BlockSpec((tm, g), lambda i: (i, 0))),
        compiler_params=_cparams(("parallel",)),
    )(x2d, wih, bias)


def _proj_one_from_h(h2d, wih, bias, direction, out_dtype, tm_target):
    _, m, hp = h2d.shape
    g = wih.shape[2]
    tm = _pick_tile(m, tm_target)
    return pl.pallas_call(
        _proj_one_from_h_kernel,
        out_shape=jax.ShapeDtypeStruct((m, g), out_dtype),
        grid_spec=pltpu.PrefetchScalarGridSpec(
            num_scalar_prefetch=0,
            grid=(m // tm,),
            in_specs=[pl.BlockSpec((2, tm, hp), lambda i: (0, i, 0)),
                      pl.BlockSpec((1, 2 * hp, g), _dir_map(direction)),
                      pl.BlockSpec((1, 1, g), _dir_map(direction))],
            out_specs=pl.BlockSpec((tm, g), lambda i: (i, 0))),
        compiler_params=_cparams(("parallel",)),
    )(h2d, wih, bias)


# ---------------------------------------------------------------------------
# Bidirectional recurrence: grid = (2 directions [parallel], T/chunk [arbitrary])
# ---------------------------------------------------------------------------
def _bilstm_recurrence_kernel(gx_ref, whh_ref, hseq_ref, h_sc, c_sc):
    # gx_ref   [1, CT, B, 4Hp]  this direction's chunk (original time order)
    # whh_ref  [1, Hp, 4Hp]
    # hseq_ref [1, CT, B, Hp]
    # h_sc/c_sc [2, B, Hp] f32 carries indexed by direction
    d = pl.program_id(0)
    ci = pl.program_id(1)
    ct = gx_ref.shape[1]
    b = gx_ref.shape[2]
    hp = whh_ref.shape[1]

    @pl.when(ci == 0)
    def _():
        h_sc[d] = jnp.zeros((b, hp), jnp.float32)
        c_sc[d] = jnp.zeros((b, hp), jnp.float32)

    whh = whh_ref[0]

    def step(s, carry):
        h, cc = carry
        t = s + d * (ct - 1 - 2 * s)          # fwd: s ; bwd: ct-1-s
        g = gx_ref[0, t].astype(jnp.float32) + jnp.dot(
            h.astype(whh.dtype), whh, preferred_element_type=jnp.float32)
        h_new, c_new = _lstm_gates(g, cc, hp)
        hseq_ref[0, t] = h_new.astype(hseq_ref.dtype)
        return h_new, c_new

    unroll = 4 if ct % 4 == 0 else 1
    h_fin, c_fin = jax.lax.fori_loop(0, ct, step, (h_sc[d], c_sc[d]), unroll=unroll)
    h_sc[d] = h_fin
    c_sc[d] = c_fin


def _bilstm_recurrence(gx, whh, out_dtype, chunk_t):
    _, t_total, b, g = gx.shape
    hp = whh.shape[1]
    nchunks = t_total // chunk_t
    t_map = lambda d, c: (d, c + d * (nchunks - 1 - 2 * c), 0, 0)
    return pl.pallas_call(
        _bilstm_recurrence_kernel,
        out_shape=jax.ShapeDtypeStruct((2, t_total, b, hp), out_dtype),
        grid_spec=pltpu.PrefetchScalarGridSpec(
            num_scalar_prefetch=0,
            grid=(2, nchunks),
            in_specs=[pl.BlockSpec((1, chunk_t, b, g), t_map),
                      pl.BlockSpec((1, hp, g), lambda d, c: (d, 0, 0))],
            out_specs=pl.BlockSpec((1, chunk_t, b, hp), t_map),
            scratch_shapes=[pltpu.VMEM((2, b, hp), jnp.float32),
                            pltpu.VMEM((2, b, hp), jnp.float32)]),
        compiler_params=_cparams(("parallel", "arbitrary")),
    )(gx, whh)


# ---------------------------------------------------------------------------
# Final layer: chunked forward recurrence + single backward cell + fused FC
# ---------------------------------------------------------------------------
def _bilstm_last_kernel(gxf_ref, gxb_ref, whh_ref, fcw_ref, fcb_ref, o_ref, h_sc, c_sc):
    # gxf_ref [CT, B, 4Hp] forward gates chunk; gxb_ref [B, 4Hp] backward gates at t = T-1
    # whh_ref [1, Hp, 4Hp] forward W_hh; fcw_ref [2Hp, C]; fcb_ref [1, C]; o_ref [B, C]
    ci = pl.program_id(0)
    ct = gxf_ref.shape[0]
    b = gxf_ref.shape[1]
    hp = whh_ref.shape[1]

    @pl.when(ci == 0)
    def _():
        h_sc[...] = jnp.zeros((b, hp), jnp.float32)
        c_sc[...] = jnp.zeros((b, hp), jnp.float32)

    whh = whh_ref[0]

    def step(s, carry):
        h, cc = carry
        g = gxf_ref[s].astype(jnp.float32) + jnp.dot(
            h.astype(whh.dtype), whh, preferred_element_type=jnp.float32)
        return _lstm_gates(g, cc, hp)

    unroll = 4 if ct % 4 == 0 else 1
    h_f, c_f = jax.lax.fori_loop(0, ct, step, (h_sc[...], c_sc[...]), unroll=unroll)
    h_sc[...] = h_f
    c_sc[...] = c_f

    @pl.when(ci == pl.num_programs(0) - 1)
    def _():
        # Backward direction: FC only needs its state at original t = T-1, which is the
        # backward recurrence's FIRST step from zero state -> one cell, no h @ W_hh term.
        gb = gxb_ref[...].astype(jnp.float32)
        i_b = jax.nn.sigmoid(gb[:, 0 * hp:1 * hp])
        g_b = jnp.tanh(gb[:, 2 * hp:3 * hp])
        o_b = jax.nn.sigmoid(gb[:, 3 * hp:4 * hp])
        h_b = o_b * jnp.tanh(i_b * g_b)
        wfc = fcw_ref[...]
        logits = (jnp.dot(h_f.astype(wfc.dtype), wfc[0:hp, :],
                          preferred_element_type=jnp.float32)
                  + jnp.dot(h_b.astype(wfc.dtype), wfc[hp:2 * hp, :],
                            preferred_element_type=jnp.float32)
                  + fcb_ref[...])
        o_ref[...] = logits.astype(o_ref.dtype)


def _bilstm_last(gxf, gxb_last, whh, fc_w, fc_b, chunk_t):
    t_total, b, g = gxf.shape
    hp = whh.shape[1]
    n_cls = fc_w.shape[1]
    nchunks = t_total // chunk_t
    return pl.pallas_call(
        _bilstm_last_kernel,
        out_shape=jax.ShapeDtypeStruct((b, n_cls), jnp.float32),
        grid_spec=pltpu.PrefetchScalarGridSpec(
            num_scalar_prefetch=0,
            grid=(nchunks,),
            in_specs=[pl.BlockSpec((chunk_t, b, g), lambda c: (c, 0, 0)),
                      pl.BlockSpec((b, g), lambda c: (0, 0)),
                      pl.BlockSpec((1, hp, g), lambda c: (0, 0, 0)),
                      pl.BlockSpec((2 * hp, n_cls), lambda c: (0, 0)),
                      pl.BlockSpec((1, n_cls), lambda c: (0, 0))],
            out_specs=pl.BlockSpec((b, n_cls), lambda c: (0, 0)),
            scratch_shapes=[pltpu.VMEM((b, hp), jnp.float32),
                            pltpu.VMEM((b, hp), jnp.float32)]),
        compiler_params=_cparams(("arbitrary",)),
    )(gxf, gxb_last, whh, fc_w, fc_b)


# ---------------------------------------------------------------------------
# Forward pass (eval mode)
# ---------------------------------------------------------------------------
@functools.partial(jax.jit, static_argnames=("num_layers", "time_chunk", "proj_tile"))
def bilstm_forward(packed, sentence, num_layers, time_chunk=32, proj_tile=512):
    """Eval-mode forward matching BiLSTM.forward(sentence, train=False)."""
    # TODO(synk): nn.Embedding gather stays an XLA op (data-dependent gather).
    emb = jnp.take(packed["embedding"], sentence, axis=0)           # [B, T, E]
    _, t_total, e = emb.shape
    cdt = packed["lstm"][0]["wih"].dtype
    hp = packed["lstm"][0]["whh"].shape[1]
    x_tbd = jnp.transpose(emb, (1, 0, 2)).astype(cdt)               # [T, B, E] time-major
    x2d = x_tbd.reshape(t_total * x_tbd.shape[1], e)

    chunk_t = _pick_chunk(t_total, time_chunk)

    hseq = None                                                      # [2, T, B, Hp]
    for layer in range(num_layers - 1):
        lw = packed["lstm"][layer]
        if layer == 0:
            gx2d = _proj_both_from_x(x2d, lw["wih"], lw["b"], cdt, proj_tile)
        else:
            gx2d = _proj_both_from_h(hseq.reshape(2, -1, hp), lw["wih"], lw["b"],
                                     cdt, proj_tile)
        gx = gx2d.reshape(2, t_total, -1, 4 * hp)
        hseq = _bilstm_recurrence(gx, lw["whh"], cdt, chunk_t)

    lw = packed["lstm"][num_layers - 1]
    if num_layers == 1:
        gxf2d = _proj_one_from_x(x2d, lw["wih"], lw["b"], 0, cdt, proj_tile)
        gxb_last = _proj_one_from_x(x_tbd[t_total - 1], lw["wih"], lw["b"], 1, cdt, proj_tile)
    else:
        gxf2d = _proj_one_from_h(hseq.reshape(2, -1, hp), lw["wih"], lw["b"], 0,
                                 cdt, proj_tile)
        gxb_last = _proj_one_from_h(hseq[:, t_total - 1], lw["wih"], lw["b"], 1,
                                    cdt, proj_tile)
    gxf = gxf2d.reshape(t_total, -1, 4 * hp)
    return _bilstm_last(gxf, gxb_last, lw["whh"], packed["fc_w"], packed["fc_b"], chunk_t)


# ---------------------------------------------------------------------------
# One-time parameter packing: pad H to a lane multiple, stack directions, cast
# matmul operands to compute_dtype (no per-call concatenation inside jit).
# ---------------------------------------------------------------------------
def pack_params(params, num_layers, compute_dtype=jnp.float32):
    h = params["lstm"][0]["whh_f"].shape[0]
    hp = _round_up(h, _LANE)

    def pad_gate_cols(w):          # [*, 4H] -> [*, 4Hp] (zeros in padded gate lanes)
        return jnp.concatenate(
            [jnp.pad(w[:, g * h:(g + 1) * h], ((0, 0), (0, hp - h))) for g in range(4)],
            axis=1)

    def pad_in_rows(w):            # [2H, 4Hp] -> [2Hp, 4Hp] (layer>0 inputs = [h_f | h_b])
        return jnp.concatenate(
            [jnp.pad(w[0:h], ((0, hp - h), (0, 0))),
             jnp.pad(w[h:2 * h], ((0, hp - h), (0, 0)))], axis=0)

    packed = {"embedding": params["embedding"]}
    lstm = []
    for layer in range(num_layers):
        lw = params["lstm"][layer]
        wih_f = pad_gate_cols(lw["wih_f"])
        wih_b = pad_gate_cols(lw["wih_b"])
        if layer > 0:
            wih_f = pad_in_rows(wih_f)
            wih_b = pad_in_rows(wih_b)
        whh_f = jnp.pad(pad_gate_cols(lw["whh_f"]), ((0, hp - h), (0, 0)))
        whh_b = jnp.pad(pad_gate_cols(lw["whh_b"]), ((0, hp - h), (0, 0)))
        lstm.append({
            "wih": jnp.stack([wih_f, wih_b]).astype(compute_dtype),     # [2, in_p, 4Hp]
            "whh": jnp.stack([whh_f, whh_b]).astype(compute_dtype),     # [2, Hp, 4Hp]
            "b": jnp.stack([pad_gate_cols(lw["b_f"]),
                            pad_gate_cols(lw["b_b"])]),                 # [2, 1, 4Hp] f32
        })
    packed["lstm"] = lstm
    fc_w = jnp.concatenate(
        [jnp.pad(params["fc_w"][0:h], ((0, hp - h), (0, 0))),
         jnp.pad(params["fc_w"][h:2 * h], ((0, hp - h), (0, 0)))], axis=0)  # [2Hp, C]
    packed["fc_w"] = fc_w.astype(compute_dtype)
    packed["fc_b"] = params["fc_b"]                                         # [1, C] f32
    return packed


# ---------------------------------------------------------------------------
# Pure-JAX reference (unpadded params) for correctness checks
# ---------------------------------------------------------------------------
def _lstm_layer_ref(x_tbd, wih, whh, b):
    h_dim = whh.shape[0]
    batch = x_tbd.shape[1]

    def step(carry, x_t):
        h_st, c_st = carry
        gates = x_t @ wih + h_st @ whh + b
        i = jax.nn.sigmoid(gates[:, 0:h_dim])
        f = jax.nn.sigmoid(gates[:, h_dim:2 * h_dim])
        g = jnp.tanh(gates[:, 2 * h_dim:3 * h_dim])
        o = jax.nn.sigmoid(gates[:, 3 * h_dim:4 * h_dim])
        c_st = f * c_st + i * g
        h_st = o * jnp.tanh(c_st)
        return (h_st, c_st), h_st

    init = (jnp.zeros((batch, h_dim), jnp.float32), jnp.zeros((batch, h_dim), jnp.float32))
    _, hs = jax.lax.scan(step, init, x_tbd)
    return hs


def bilstm_forward_ref(params, sentence, num_layers):
    emb = jnp.take(params["embedding"], sentence, axis=0)
    x = jnp.transpose(emb, (1, 0, 2)).astype(jnp.float32)
    for layer in range(num_layers):
        lw = params["lstm"][layer]
        h_fwd = _lstm_layer_ref(x, lw["wih_f"], lw["whh_f"], lw["b_f"])
        h_bwd = _lstm_layer_ref(x[::-1], lw["wih_b"], lw["whh_b"], lw["b_b"])[::-1]
        x = jnp.concatenate([h_fwd, h_bwd], axis=-1)
    return x[-1] @ params["fc_w"] + params["fc_b"]


# ---------------------------------------------------------------------------
# Deterministic parameter init (shapes per nn.Embedding / nn.LSTM / nn.Linear)
# ---------------------------------------------------------------------------
def init_params(key, vocab_size, embedding_size, hidden_size, num_layers, num_classes):
    h = hidden_size
    keys = jax.random.split(key, 3 + num_layers)
    params = {"embedding": jax.random.normal(keys[0], (vocab_size, embedding_size),
                                             jnp.float32)}
    bound = 1.0 / jnp.sqrt(h)
    lstm = []
    for layer in range(num_layers):
        in_dim = embedding_size if layer == 0 else 2 * h
        lk = jax.random.split(keys[3 + layer], 8)
        u = lambda k, shape: jax.random.uniform(k, shape, jnp.float32, -bound, bound)
        lstm.append({
            # PyTorch stores (4H, in); we store transposed (in, 4H). Gate order i,f,g,o.
            "wih_f": u(lk[0], (in_dim, 4 * h)),
            "whh_f": u(lk[1], (h, 4 * h)),
            "b_f":   u(lk[2], (1, 4 * h)) + u(lk[3], (1, 4 * h)),   # b_ih + b_hh
            "wih_b": u(lk[4], (in_dim, 4 * h)),
            "whh_b": u(lk[5], (h, 4 * h)),
            "b_b":   u(lk[6], (1, 4 * h)) + u(lk[7], (1, 4 * h)),
        })
    params["lstm"] = lstm
    fc_bound = 1.0 / jnp.sqrt(2 * h)
    params["fc_w"] = jax.random.uniform(keys[1], (2 * h, num_classes), jnp.float32,
                                        -fc_bound, fc_bound)
    params["fc_b"] = jax.random.uniform(keys[2], (1, num_classes), jnp.float32,
                                        -fc_bound, fc_bound)
    return params


# ---------------------------------------------------------------------------
if __name__ == "__main__":
    vocab_size = 50
    embedding_size = 16
    hidden_size = 32
    num_classes = 5
    batch = 2
    seq_len = 8

    key = jax.random.PRNGKey(0)
    pkey, skey = jax.random.split(key)
    sentence = jax.random.randint(skey, (batch, seq_len), 0, vocab_size, dtype=jnp.int32)

    # (num_layers, matmul-operand dtype, tolerance). bf16 exercises the reduced-precision
    # MXU path (f32 accumulation + f32 gate math / state), hence the looser tolerance.
    configs = [(2, jnp.float32, 1e-5), (1, jnp.float32, 1e-5), (2, jnp.bfloat16, 5e-2)]
    for num_layers, cdt, tol in configs:
        params = init_params(pkey, vocab_size, embedding_size, hidden_size,
                             num_layers, num_classes)
        packed = pack_params(params, num_layers, compute_dtype=cdt)
        # time_chunk=4 / proj_tile=8 exercise the multi-chunk recurrence pipeline and the
        # tiled projection grid at these toy sizes (production defaults: 32 / 512).
        logits = bilstm_forward(packed, sentence, num_layers, time_chunk=4, proj_tile=8)
        jax.block_until_ready(logits)
        ref = bilstm_forward_ref(params, sentence, num_layers)
        assert logits.shape == (batch, num_classes)
        assert jnp.allclose(logits, ref, atol=tol, rtol=tol), (
            f"mismatch vs reference (layers={num_layers}, dtype={cdt})")

    print("KERNEL_OK")
</pallas_src>

<mosaic_0001>
module attributes {stable_mosaic.version = 11 : i64} {
  func.func @_proj_both_from_x_kernel(%arg0: i32, %arg1: memref<8x16xf32, #tpu.memory_space<vmem>>, %arg2: memref<2x16x512xf32, #tpu.memory_space<vmem>>, %arg3: memref<2x1x512xf32, #tpu.memory_space<vmem>>, %arg4: memref<2x8x512xf32, #tpu.memory_space<vmem>>) attributes {dimension_semantics = [#tpu.dimension_semantics<parallel>], iteration_bounds = array<i64: 2>, scalar_prefetch = 0 : i64, scratch_operands = 0 : i64, tpu.core_type = #tpu.core_type<tc>, window_params = [{transform_indices = @transform_0, window_bounds = array<i64: 8, 16>}, {pipeline_mode = #tpu.pipeline_mode<synchronous>, transform_indices = @transform_1, window_bounds = array<i64: 2, 16, 512>}, {pipeline_mode = #tpu.pipeline_mode<synchronous>, transform_indices = @transform_2, window_bounds = array<i64: 2, 1, 512>}, {transform_indices = @transform_3, window_bounds = array<i64: 2, 8, 512>}]} {
    %c0 = arith.constant 0 : index
    %c0_0 = arith.constant 0 : index
    %0 = vector.load %arg1[%c0, %c0_0] : memref<8x16xf32, #tpu.memory_space<vmem>>, vector<8x16xf32>
    %c0_1 = arith.constant 0 : index
    %c0_2 = arith.constant 0 : index
    %c0_3 = arith.constant 0 : index
    %1 = vector.load %arg2[%c0_1, %c0_2, %c0_3] : memref<2x16x512xf32, #tpu.memory_space<vmem>>, vector<1x16x512xf32>
    %2 = vector.shape_cast %1 : vector<1x16x512xf32> to vector<16x512xf32>
    %cst = arith.constant dense<0.000000e+00> : vector<8x512xf32>
    %3 = tpu.matmul %0, %2, %cst {dimension_numbers = #tpu.dot_dimension_numbers<[1], [0], [0], [1], [0, 0, 1, 1], [], []>} : vector<8x16xf32>, vector<16x512xf32>, vector<8x512xf32> -> vector<8x512xf32>
    %c0_4 = arith.constant 0 : index
    %c0_5 = arith.constant 0 : index
    %c0_6 = arith.constant 0 : index
    %4 = vector.load %arg3[%c0_4, %c0_5, %c0_6] : memref<2x1x512xf32, #tpu.memory_space<vmem>>, vector<1x1x512xf32>
    %5 = vector.shape_cast %4 : vector<1x1x512xf32> to vector<1x512xf32>
    %6 = vector.broadcast %5 : vector<1x512xf32> to vector<8x512xf32>
    %7 = arith.addf %3, %6 : vector<8x512xf32>
    %c0_7 = arith.constant 0 : index
    %c0_8 = arith.constant 0 : index
    %c0_9 = arith.constant 0 : index
    %8 = vector.load %arg4[%c0_7, %c0_8, %c0_9] : memref<2x8x512xf32, #tpu.memory_space<vmem>>, vector<1x8x512xf32>
    %9 = vector.shape_cast %8 : vector<1x8x512xf32> to vector<8x512xf32>
    %10 = vector.shape_cast %7 : vector<8x512xf32> to vector<1x8x512xf32>
    tpu.vector_store %arg4[%c0_7, %c0_8, %c0_9], %10 {strides = array<i32>} : memref<2x8x512xf32, #tpu.memory_space<vmem>>, vector<1x8x512xf32>,
    %c1 = arith.constant 1 : index
    %c0_10 = arith.constant 0 : index
    %c0_11 = arith.constant 0 : index
    %11 = vector.load %arg2[%c1, %c0_10, %c0_11] : memref<2x16x512xf32, #tpu.memory_space<vmem>>, vector<1x16x512xf32>
    %12 = vector.shape_cast %11 : vector<1x16x512xf32> to vector<16x512xf32>
    %cst_12 = arith.constant dense<0.000000e+00> : vector<8x512xf32>
    %13 = tpu.matmul %0, %12, %cst_12 {dimension_numbers = #tpu.dot_dimension_numbers<[1], [0], [0], [1], [0, 0, 1, 1], [], []>} : vector<8x16xf32>, vector<16x512xf32>, vector<8x512xf32> -> vector<8x512xf32>
    %c1_13 = arith.constant 1 : index
    %c0_14 = arith.constant 0 : index
    %c0_15 = arith.constant 0 : index
    %14 = vector.load %arg3[%c1_13, %c0_14, %c0_15] : memref<2x1x512xf32, #tpu.memory_space<vmem>>, vector<1x1x512xf32>
    %15 = vector.shape_cast %14 : vector<1x1x512xf32> to vector<1x512xf32>
    %16 = vector.broadcast %15 : vector<1x512xf32> to vector<8x512xf32>
    %17 = arith.addf %13, %16 : vector<8x512xf32>
    %c1_16 = arith.constant 1 : index
    %c0_17 = arith.constant 0 : index
    %c0_18 = arith.constant 0 : index
    %18 = vector.load %arg4[%c1_16, %c0_17, %c0_18] : memref<2x8x512xf32, #tpu.memory_space<vmem>>, vector<1x8x512xf32>
    %19 = vector.shape_cast %18 : vector<1x8x512xf32> to vector<8x512xf32>
    %20 = vector.shape_cast %17 : vector<8x512xf32> to vector<1x8x512xf32>
    tpu.vector_store %arg4[%c1_16, %c0_17, %c0_18], %20 {strides = array<i32>} : memref<2x8x512xf32, #tpu.memory_space<vmem>>, vector<1x8x512xf32>,
    return
  }
  func.func @transform_0(%arg0: i32) -> (i32, i32) {
    %c0_i32 = arith.constant 0 : i32
    %c0_i32_0 = arith.constant 0 : i32
    return %arg0, %c0_i32 : i32, i32
  }
  func.func @transform_1(%arg0: i32) -> (i32, i32, i32) {
    %c0_i32 = arith.constant 0 : i32
    %c0_i32_0 = arith.constant 0 : i32
    %c0_i32_1 = arith.constant 0 : i32
    %c0_i32_2 = arith.constant 0 : i32
    return %c0_i32, %c0_i32_0, %c0_i32_1 : i32, i32, i32
  }
  func.func @transform_2(%arg0: i32) -> (i32, i32, i32) {
    %c0_i32 = arith.constant 0 : i32
    %c0_i32_0 = arith.constant 0 : i32
    %c0_i32_1 = arith.constant 0 : i32
    %c0_i32_2 = arith.constant 0 : i32
    return %c0_i32, %c0_i32_0, %c0_i32_1 : i32, i32, i32
  }
  func.func @transform_3(%arg0: i32) -> (i32, i32, i32) {
    %c0_i32 = arith.constant 0 : i32
    %c0_i32_0 = arith.constant 0 : i32
    %c0_i32_1 = arith.constant 0 : i32
    return %c0_i32, %arg0, %c0_i32_0 : i32, i32, i32
  }
}

module attributes {stable_mosaic.version = 11 : i64} {
  func.func @_bilstm_recurrence_kernel(%arg0: i32, %arg1: i32, %arg2: memref<1x4x2x512xf32, #tpu.memory_space<vmem>>, %arg3: memref<1x128x512xf32, #tpu.memory_space<vmem>>, %arg4: memref<1x4x2x128xf32, #tpu.memory_space<vmem>>, %arg5: memref<2x2x128xf32, #tpu.memory_space<vmem>>, %arg6: memref<2x2x128xf32, #tpu.memory_space<vmem>>) attributes {dimension_semantics = [#tpu.dimension_semantics<parallel>, #tpu.dimension_semantics<arbitrary>], iteration_bounds = array<i64: 2, 2>, scalar_prefetch = 0 : i64, scratch_operands = 2 : i64, tpu.core_type = #tpu.core_type<tc>, window_params = [{transform_indices = @transform_0, window_bounds = array<i64: 1, 4, 2, 512>}, {transform_indices = @transform_1, window_bounds = array<i64: 1, 128, 512>}, {transform_indices = @transform_2, window_bounds = array<i64: 1, 4, 2, 128>}]} {
    %c0_i32 = arith.constant 0 : i32
    %0 = arith.cmpi eq, %arg1, %c0_i32 : i32
    %1 = arith.extui %0 : i1 to i32
    %c0_i32_0 = arith.constant 0 : i32
    %2 = arith.cmpi ne, %1, %c0_i32_0 : i32
    scf.if %2 {
      %cst_59 = arith.constant 0.000000e+00 : f32
      %171 = vector.broadcast %cst_59 : f32 to vector<2x128xf32>
      %172 = arith.index_cast %arg0 : i32 to index
      %c0_60 = arith.constant 0 : index
      %c0_61 = arith.constant 0 : index
      %173 = vector.load %arg5[%172, %c0_60, %c0_61] : memref<2x2x128xf32, #tpu.memory_space<vmem>>, vector<1x2x128xf32>
      %174 = vector.shape_cast %173 : vector<1x2x128xf32> to vector<2x128xf32>
      %175 = vector.shape_cast %171 : vector<2x128xf32> to vector<1x2x128xf32>
      tpu.vector_store %arg5[%172, %c0_60, %c0_61], %175 {strides = array<i32>} : memref<2x2x128xf32, #tpu.memory_space<vmem>>, vector<1x2x128xf32>,
      %cst_62 = arith.constant 0.000000e+00 : f32
      %176 = vector.broadcast %cst_62 : f32 to vector<2x128xf32>
      %177 = arith.index_cast %arg0 : i32 to index
      %c0_63 = arith.constant 0 : index
      %c0_64 = arith.constant 0 : index
      %178 = vector.load %arg6[%177, %c0_63, %c0_64] : memref<2x2x128xf32, #tpu.memory_space<vmem>>, vector<1x2x128xf32>
      %179 = vector.shape_cast %178 : vector<1x2x128xf32> to vector<2x128xf32>
      %180 = vector.shape_cast %176 : vector<2x128xf32> to vector<1x2x128xf32>
      tpu.vector_store %arg6[%177, %c0_63, %c0_64], %180 {strides = array<i32>} : memref<2x2x128xf32, #tpu.memory_space<vmem>>, vector<1x2x128xf32>,
    } else {
    }
    %c0 = arith.constant 0 : index
    %c0_1 = arith.constant 0 : index
    %c0_2 = arith.constant 0 : index
    %3 = vector.load %arg3[%c0, %c0_1, %c0_2] : memref<1x128x512xf32, #tpu.memory_space<vmem>>, vector<1x128x512xf32>
    %4 = vector.shape_cast %3 : vector<1x128x512xf32> to vector<128x512xf32>
    %5 = arith.index_cast %arg0 : i32 to index
    %c0_3 = arith.constant 0 : index
    %c0_4 = arith.constant 0 : index
    %6 = vector.load %arg5[%5, %c0_3, %c0_4] : memref<2x2x128xf32, #tpu.memory_space<vmem>>, vector<1x2x128xf32>
    %7 = vector.shape_cast %6 : vector<1x2x128xf32> to vector<2x128xf32>
    %8 = arith.index_cast %arg0 : i32 to index
    %c0_5 = arith.constant 0 : index
    %c0_6 = arith.constant 0 : index
    %9 = vector.load %arg6[%8, %c0_5, %c0_6] : memref<2x2x128xf32, #tpu.memory_space<vmem>>, vector<1x2x128xf32>
    %10 = vector.shape_cast %9 : vector<1x2x128xf32> to vector<2x128xf32>
    %c0_i32_7 = arith.constant 0 : i32
    %c2_i32 = arith.constant 2 : i32
    %11 = arith.muli %c2_i32, %c0_i32_7 : i32
    %c3_i32 = arith.constant 3 : i32
    %12 = arith.subi %c3_i32, %11 : i32
    %13 = arith.muli %arg0, %12 : i32
    %14 = arith.addi %c0_i32_7, %13 : i32
    %c0_8 = arith.constant 0 : index
    %15 = arith.index_cast %14 : i32 to index
    %c0_9 = arith.constant 0 : index
    %c0_10 = arith.constant 0 : index
    %16 = vector.load %arg2[%c0_8, %15, %c0_9, %c0_10] : memref<1x4x2x512xf32, #tpu.memory_space<vmem>>, vector<1x1x2x512xf32>
    %17 = vector.shape_cast %16 : vector<1x1x2x512xf32> to vector<2x512xf32>
    %cst = arith.constant dense<0.000000e+00> : vector<2x512xf32>
    %18 = tpu.matmul %7, %4, %cst {dimension_numbers = #tpu.dot_dimension_numbers<[1], [0], [0], [1], [0, 0, 1, 1], [], []>} : vector<2x128xf32>, vector<128x512xf32>, vector<2x512xf32> -> vector<2x512xf32>
    %19 = arith.addf %17, %18 : vector<2x512xf32>
    %20 = vector.extract_strided_slice %19 {offsets = [0, 0], sizes = [2, 128], strides = [1, 1]} : vector<2x512xf32> to vector<2x128xf32>
    %21 = arith.negf %20 : vector<2x128xf32>
    %22 = math.exp %21 : vector<2x128xf32>
    %cst_11 = arith.constant 1.000000e+00 : f32
    %23 = vector.broadcast %cst_11 : f32 to vector<2x128xf32>
    %24 = arith.addf %23, %22 : vector<2x128xf32>
    %25 = arith.divf %23, %24 : vector<2x128xf32>
    %26 = vector.extract_strided_slice %19 {offsets = [0, 128], sizes = [2, 128], strides = [1, 1]} : vector<2x512xf32> to vector<2x128xf32>
    %27 = arith.negf %26 : vector<2x128xf32>
    %28 = math.exp %27 : vector<2x128xf32>
    %cst_12 = arith.constant 1.000000e+00 : f32
    %29 = vector.broadcast %cst_12 : f32 to vector<2x128xf32>
    %30 = arith.addf %29, %28 : vector<2x128xf32>
    %31 = arith.divf %29, %30 : vector<2x128xf32>
    %32 = vector.extract_strided_slice %19 {offsets = [0, 256], sizes = [2, 128], strides = [1, 1]} : vector<2x512xf32> to vector<2x128xf32>
    %33 = math.tanh %32 : vector<2x128xf32>
    %34 = vector.extract_strided_slice %19 {offsets = [0, 384], sizes = [2, 128], strides = [1, 1]} : vector<2x512xf32> to vector<2x128xf32>
    %35 = arith.negf %34 : vector<2x128xf32>
    %36 = math.exp %35 : vector<2x128xf32>
    %cst_13 = arith.constant 1.000000e+00 : f32
    %37 = vector.broadcast %cst_13 : f32 to vector<2x128xf32>
    %38 = arith.addf %37, %36 : vector<2x128xf32>
    %39 = arith.divf %37, %38 : vector<2x128xf32>
    %40 = arith.mulf %31, %10 : vector<2x128xf32>
    %41 = arith.mulf %25, %33 : vector<2x128xf32>
    %42 = arith.addf %40, %41 : vector<2x128xf32>
    %43 = math.tanh %42 : vector<2x128xf32>
    %44 = arith.mulf %39, %43 : vector<2x128xf32>
    %c0_14 = arith.constant 0 : index
    %45 = arith.index_cast %14 : i32 to index
    %c0_15 = arith.constant 0 : index
    %c0_16 = arith.constant 0 : index
    %46 = vector.load %arg4[%c0_14, %45, %c0_15, %c0_16] : memref<1x4x2x128xf32, #tpu.memory_space<vmem>>, vector<1x1x2x128xf32>
    %47 = vector.shape_cast %46 : vector<1x1x2x128xf32> to vector<2x128xf32>
    %48 = vector.shape_cast %44 : vector<2x128xf32> to vector<1x1x2x128xf32>
    tpu.vector_store %arg4[%c0_14, %45, %c0_15, %c0_16], %48 {strides = array<i32>} : memref<1x4x2x128xf32, #tpu.memory_space<vmem>>, vector<1x1x2x128xf32>,
    %c1_i32 = arith.constant 1 : i32
    %c2_i32_17 = arith.constant 2 : i32
    %49 = arith.muli %c2_i32_17, %c1_i32 : i32
    %c3_i32_18 = arith.constant 3 : i32
    %50 = arith.subi %c3_i32_18, %49 : i32
    %51 = arith.muli %arg0, %50 : i32
    %52 = arith.addi %c1_i32, %51 : i32
    %c0_19 = arith.constant 0 : index
    %53 = arith.index_cast %52 : i32 to index
    %c0_20 = arith.constant 0 : index
    %c0_21 = arith.constant 0 : index
    %54 = vector.load %arg2[%c0_19, %53, %c0_20, %c0_21] : memref<1x4x2x512xf32, #tpu.memory_space<vmem>>, vector<1x1x2x512xf32>
    %55 = vector.shape_cast %54 : vector<1x1x2x512xf32> to vector<2x512xf32>
    %cst_22 = arith.constant dense<0.000000e+00> : vector<2x512xf32>
    %56 = tpu.matmul %44, %4, %cst_22 {dimension_numbers = #tpu.dot_dimension_numbers<[1], [0], [0], [1], [0, 0, 1, 1], [], []>} : vector<2x128xf32>, vector<128x512xf32>, vector<2x512xf32> -> vector<2x512xf32>
    %57 = arith.addf %55, %56 : vector<2x512xf32>
    %58 = vector.extract_strided_slice %57 {offsets = [0, 0], sizes = [2, 128], strides = [1, 1]} : vector<2x512xf32> to vector<2x128xf32>
    %59 = arith.negf %58 : vector<2x128xf32>
    %60 = math.exp %59 : vector<2x128xf32>
    %cst_23 = arith.constant 1.000000e+00 : f32
    %61 = vector.broadcast %cst_23 : f32 to vector<2x128xf32>
    %62 = arith.addf %61, %60 : vector<2x128xf32>
    %63 = arith.divf %61, %62 : vector<2x128xf32>
    %64 = vector.extract_strided_slice %57 {offsets = [0, 128], sizes = [2, 128], strides = [1, 1]} : vector<2x512xf32> to vector<2x128xf32>
    %65 = arith.negf %64 : vector<2x128xf32>
    %66 = math.exp %65 : vector<2x128xf32>
    %cst_24 = arith.constant 1.000000e+00 : f32
    %67 = vector.broadcast %cst_24 : f32 to vector<2x128xf32>
    %68 = arith.addf %67, %66 : vector<2x128xf32>
    %69 = arith.divf %67, %68 : vector<2x128xf32>
    %70 = vector.extract_strided_slice %57 {offsets = [0, 256], sizes = [2, 128], strides = [1, 1]} : vector<2x512xf32> to vector<2x128xf32>
    %71 = math.tanh %70 : vector<2x128xf32>
    %72 = vector.extract_strided_slice %57 {offsets = [0, 384], sizes = [2, 128], strides = [1, 1]} : vector<2x512xf32> to vector<2x128xf32>
    %73 = arith.negf %72 : vector<2x128xf32>
    %74 = math.exp %73 : vector<2x128xf32>
    %cst_25 = arith.constant 1.000000e+00 : f32
    %75 = vector.broadcast %cst_25 : f32 to vector<2x128xf32>
    %76 = arith.addf %75, %74 : vector<2x128xf32>
    %77 = arith.divf %75, %76 : vector<2x128xf32>
    %78 = arith.mulf %69, %42 : vector<2x128xf32>
    %79 = arith.mulf %63, %71 : vector<2x128xf32>
    %80 = arith.addf %78, %79 : vector<2x128xf32>
    %81 = math.tanh %80 : vector<2x128xf32>
    %82 = arith.mulf %77, %81 : vector<2x128xf32>
    %c0_26 = arith.constant 0 : index
    %83 = arith.index_cast %52 : i32 to index
    %c0_27 = arith.constant 0 : index
    %c0_28 = arith.constant 0 : index
    %84 = vector.load %arg4[%c0_26, %83, %c0_27, %c0_28] : memref<1x4x2x128xf32, #tpu.memory_space<vmem>>, vector<1x1x2x128xf32>
    %85 = vector.shape_cast %84 : vector<1x1x2x128xf32> to vector<2x128xf32>
    %86 = vector.shape_cast %82 : vector<2x128xf32> to vector<1x1x2x128xf32>
    tpu.vector_store %arg4[%c0_26, %83, %c0_27, %c0_28], %86 {strides = array<i32>} : memref<1x4x2x128xf32, #tpu.memory_space<vmem>>, vector<1x1x2x128xf32>,
    %c2_i32_29 = arith.constant 2 : i32
    %c2_i32_30 = arith.constant 2 : i32
    %87 = arith.muli %c2_i32_30, %c2_i32_29 : i32
    %c3_i32_31 = arith.constant 3 : i32
    %88 = arith.subi %c3_i32_31, %87 : i32
    %89 = arith.muli %arg0, %88 : i32
    %90 = arith.addi %c2_i32_29, %89 : i32
    %c0_32 = arith.constant 0 : index
    %91 = arith.index_cast %90 : i32 to index
    %c0_33 = arith.constant 0 : index
    %c0_34 = arith.constant 0 : index
    %92 = vector.load %arg2[%c0_32, %91, %c0_33, %c0_34] : memref<1x4x2x512xf32, #tpu.memory_space<vmem>>, vector<1x1x2x512xf32>
    %93 = vector.shape_cast %92 : vector<1x1x2x512xf32> to vector<2x512xf32>
    %cst_35 = arith.constant dense<0.000000e+00> : vector<2x512xf32>
    %94 = tpu.matmul %82, %4, %cst_35 {dimension_numbers = #tpu.dot_dimension_numbers<[1], [0], [0], [1], [0, 0, 1, 1], [], []>} : vector<2x128xf32>, vector<128x512xf32>, vector<2x512xf32> -> vector<2x512xf32>
    %95 = arith.addf %93, %94 : vector<2x512xf32>
    %96 = vector.extract_strided_slice %95 {offsets = [0, 0], sizes = [2, 128], strides = [1, 1]} : vector<2x512xf32> to vector<2x128xf32>
    %97 = arith.negf %96 : vector<2x128xf32>
    %98 = math.exp %97 : vector<2x128xf32>
    %cst_36 = arith.constant 1.000000e+00 : f32
    %99 = vector.broadcast %cst_36 : f32 to vector<2x128xf32>
    %100 = arith.addf %99, %98 : vector<2x128xf32>
    %101 = arith.divf %99, %100 : vector<2x128xf32>
    %102 = vector.extract_strided_slice %95 {offsets = [0, 128], sizes = [2, 128], strides = [1, 1]} : vector<2x512xf32> to vector<2x128xf32>
    %103 = arith.negf %102 : vector<2x128xf32>
    %104 = math.exp %103 : vector<2x128xf32>
    %cst_37 = arith.constant 1.000000e+00 : f32
    %105 = vector.broadcast %cst_37 : f32 to vector<2x128xf32>
    %106 = arith.addf %105, %104 : vector<2x128xf32>
    %107 = arith.divf %105, %106 : vector<2x128xf32>
    %108 = vector.extract_strided_slice %95 {offsets = [0, 256], sizes = [2, 128], strides = [1, 1]} : vector<2x512xf32> to vector<2x128xf32>
    %109 = math.tanh %108 : vector<2x128xf32>
    %110 = vector.extract_strided_slice %95 {offsets = [0, 384], sizes = [2, 128], strides = [1, 1]} : vector<2x512xf32> to vector<2x128xf32>
    %111 = arith.negf %110 : vector<2x128xf32>
    %112 = math.exp %111 : vector<2x128xf32>
    %cst_38 = arith.constant 1.000000e+00 : f32
    %113 = vector.broadcast %cst_38 : f32 to vector<2x128xf32>
    %114 = arith.addf %113, %112 : vector<2x128xf32>
    %115 = arith.divf %113, %114 : vector<2x128xf32>
    %116 = arith.mulf %107, %80 : vector<2x128xf32>
    %117 = arith.mulf %101, %109 : vector<2x128xf32>
    %118 = arith.addf %116, %117 : vector<2x128xf32>
    %119 = math.tanh %118 : vector<2x128xf32>
    %120 = arith.mulf %115, %119 : vector<2x128xf32>
    %c0_39 = arith.constant 0 : index
    %121 = arith.index_cast %90 : i32 to index
    %c0_40 = arith.constant 0 : index
    %c0_41 = arith.constant 0 : index
    %122 = vector.load %arg4[%c0_39, %121, %c0_40, %c0_41] : memref<1x4x2x128xf32, #tpu.memory_space<vmem>>, vector<1x1x2x128xf32>
    %123 = vector.shape_cast %122 : vector<1x1x2x128xf32> to vector<2x128xf32>
    %124 = vector.shape_cast %120 : vector<2x128xf32> to vector<1x1x2x128xf32>
    tpu.vector_store %arg4[%c0_39, %121, %c0_40, %c0_41], %124 {strides = array<i32>} : memref<1x4x2x128xf32, #tpu.memory_space<vmem>>, vector<1x1x2x128xf32>,
    %c3_i32_42 = arith.constant 3 : i32
    %c2_i32_43 = arith.constant 2 : i32
    %125 = arith.muli %c2_i32_43, %c3_i32_42 : i32
    %c3_i32_44 = arith.constant 3 : i32
    %126 = arith.subi %c3_i32_44, %125 : i32
    %127 = arith.muli %arg0, %126 : i32
    %128 = arith.addi %c3_i32_42, %127 : i32
    %c0_45 = arith.constant 0 : index
    %129 = arith.index_cast %128 : i32 to index
    %c0_46 = arith.constant 0 : index
    %c0_47 = arith.constant 0 : index
    %130 = vector.load %arg2[%c0_45, %129, %c0_46, %c0_47] : memref<1x4x2x512xf32, #tpu.memory_space<vmem>>, vector<1x1x2x512xf32>
    %131 = vector.shape_cast %130 : vector<1x1x2x512xf32> to vector<2x512xf32>
    %cst_48 = arith.constant dense<0.000000e+00> : vector<2x512xf32>
    %132 = tpu.matmul %120, %4, %cst_48 {dimension_numbers = #tpu.dot_dimension_numbers<[1], [0], [0], [1], [0, 0, 1, 1], [], []>} : vector<2x128xf32>, vector<128x512xf32>, vector<2x512xf32> -> vector<2x512xf32>
    %133 = arith.addf %131, %132 : vector<2x512xf32>
    %134 = vector.extract_strided_slice %133 {offsets = [0, 0], sizes = [2, 128], strides = [1, 1]} : vector<2x512xf32> to vector<2x128xf32>
    %135 = arith.negf %134 : vector<2x128xf32>
    %136 = math.exp %135 : vector<2x128xf32>
    %cst_49 = arith.constant 1.000000e+00 : f32
    %137 = vector.broadcast %cst_49 : f32 to vector<2x128xf32>
    %138 = arith.addf %137, %136 : vector<2x128xf32>
    %139 = arith.divf %137, %138 : vector<2x128xf32>
    %140 = vector.extract_strided_slice %133 {offsets = [0, 128], sizes = [2, 128], strides = [1, 1]} : vector<2x512xf32> to vector<2x128xf32>
    %141 = arith.negf %140 : vector<2x128xf32>
    %142 = math.exp %141 : vector<2x128xf32>
    %cst_50 = arith.constant 1.000000e+00 : f32
    %143 = vector.broadcast %cst_50 : f32 to vector<2x128xf32>
    %144 = arith.addf %143, %142 : vector<2x128xf32>
    %145 = arith.divf %143, %144 : vector<2x128xf32>
    %146 = vector.extract_strided_slice %133 {offsets = [0, 256], sizes = [2, 128], strides = [1, 1]} : vector<2x512xf32> to vector<2x128xf32>
    %147 = math.tanh %146 : vector<2x128xf32>
    %148 = vector.extract_strided_slice %133 {offsets = [0, 384], sizes = [2, 128], strides = [1, 1]} : vector<2x512xf32> to vector<2x128xf32>
    %149 = arith.negf %148 : vector<2x128xf32>
    %150 = math.exp %149 : vector<2x128xf32>
    %cst_51 = arith.constant 1.000000e+00 : f32
    %151 = vector.broadcast %cst_51 : f32 to vector<2x128xf32>
    %152 = arith.addf %151, %150 : vector<2x128xf32>
    %153 = arith.divf %151, %152 : vector<2x128xf32>
    %154 = arith.mulf %145, %118 : vector<2x128xf32>
    %155 = arith.mulf %139, %147 : vector<2x128xf32>
    %156 = arith.addf %154, %155 : vector<2x128xf32>
    %157 = math.tanh %156 : vector<2x128xf32>
    %158 = arith.mulf %153, %157 : vector<2x128xf32>
    %c0_52 = arith.constant 0 : index
    %159 = arith.index_cast %128 : i32 to index
    %c0_53 = arith.constant 0 : index
    %c0_54 = arith.constant 0 : index
    %160 = vector.load %arg4[%c0_52, %159, %c0_53, %c0_54] : memref<1x4x2x128xf32, #tpu.memory_space<vmem>>, vector<1x1x2x128xf32>
    %161 = vector.shape_cast %160 : vector<1x1x2x128xf32> to vector<2x128xf32>
    %162 = vector.shape_cast %158 : vector<2x128xf32> to vector<1x1x2x128xf32>
    tpu.vector_store %arg4[%c0_52, %159, %c0_53, %c0_54], %162 {strides = array<i32>} : memref<1x4x2x128xf32, #tpu.memory_space<vmem>>, vector<1x1x2x128xf32>,
    %c4_i32 = arith.constant 4 : i32
    %163 = arith.index_cast %arg0 : i32 to index
    %c0_55 = arith.constant 0 : index
    %c0_56 = arith.constant 0 : index
    %164 = vector.load %arg5[%163, %c0_55, %c0_56] : memref<2x2x128xf32, #tpu.memory_space<vmem>>, vector<1x2x128xf32>
    %165 = vector.shape_cast %164 : vector<1x2x128xf32> to vector<2x128xf32>
    %166 = vector.shape_cast %158 : vector<2x128xf32> to vector<1x2x128xf32>
    tpu.vector_store %arg5[%163, %c0_55, %c0_56], %166 {strides = array<i32>} : memref<2x2x128xf32, #tpu.memory_space<vmem>>, vector<1x2x128xf32>,
    %167 = arith.index_cast %arg0 : i32 to index
    %c0_57 = arith.constant 0 : index
    %c0_58 = arith.constant 0 : index
    %168 = vector.load %arg6[%167, %c0_57, %c0_58] : memref<2x2x128xf32, #tpu.memory_space<vmem>>, vector<1x2x128xf32>
    %169 = vector.shape_cast %168 : vector<1x2x128xf32> to vector<2x128xf32>
    %170 = vector.shape_cast %156 : vector<2x128xf32> to vector<1x2x128xf32>
    tpu.vector_store %arg6[%167, %c0_57, %c0_58], %170 {strides = array<i32>} : memref<2x2x128xf32, #tpu.memory_space<vmem>>, vector<1x2x128xf32>,
    return
  }
  func.func @transform_0(%arg0: i32, %arg1: i32) -> (i32, i32, i32, i32) {
    %c2_i32 = arith.constant 2 : i32
    %0 = arith.muli %c2_i32, %arg1 : i32
    %c1_i32 = arith.constant 1 : i32
    %1 = arith.subi %c1_i32, %0 : i32
    %2 = arith.muli %arg0, %1 : i32
    %3 = arith.addi %arg1, %2 : i32
    %c0_i32 = arith.constant 0 : i32
    %c0_i32_0 = arith.constant 0 : i32
    %c0_i32_1 = arith.constant 0 : i32
    return %arg0, %3, %c0_i32, %c0_i32_0 : i32, i32, i32, i32
  }
  func.func @transform_1(%arg0: i32, %arg1: i32) -> (i32, i32, i32) {
    %c0_i32 = arith.constant 0 : i32
    %c0_i32_0 = arith.constant 0 : i32
    %c0_i32_1 = arith.constant 0 : i32
    return %arg0, %c0_i32, %c0_i32_0 : i32, i32, i32
  }
  func.func @transform_2(%arg0: i32, %arg1: i32) -> (i32, i32, i32, i32) {
    %c2_i32 = arith.constant 2 : i32
    %0 = arith.muli %c2_i32, %arg1 : i32
    %c1_i32 = arith.constant 1 : i32
    %1 = arith.subi %c1_i32, %0 : i32
    %2 = arith.muli %arg0, %1 : i32
    %3 = arith.addi %arg1, %2 : i32
    %c0_i32 = arith.constant 0 : i32
    %c0_i32_0 = arith.constant 0 : i32
    %c0_i32_1 = arith.constant 0 : i32
    return %arg0, %3, %c0_i32, %c0_i32_0 : i32, i32, i32, i32
  }
}

module attributes {stable_mosaic.version = 11 : i64} {
  func.func @_proj_one_from_h_kernel(%arg0: i32, %arg1: memref<2x8x128xf32, #tpu.memory_space<vmem>>, %arg2: memref<1x256x512xf32, #tpu.memory_space<vmem>>, %arg3: memref<1x1x512xf32, #tpu.memory_space<vmem>>, %arg4: memref<8x512xf32, #tpu.memory_space<vmem>>) attributes {dimension_semantics = [#tpu.dimension_semantics<parallel>], iteration_bounds = array<i64: 2>, scalar_prefetch = 0 : i64, scratch_operands = 0 : i64, tpu.core_type = #tpu.core_type<tc>, window_params = [{transform_indices = @transform_0, window_bounds = array<i64: 2, 8, 128>}, {transform_indices = @transform_1, window_bounds = array<i64: 1, 256, 512>}, {transform_indices = @transform_2, window_bounds = array<i64: 1, 1, 512>}, {transform_indices = @transform_3, window_bounds = array<i64: 8, 512>}]} {
    %c0 = arith.constant 0 : index
    %c0_0 = arith.constant 0 : index
    %c0_1 = arith.constant 0 : index
    %0 = vector.load %arg1[%c0, %c0_0, %c0_1] : memref<2x8x128xf32, #tpu.memory_space<vmem>>, vector<1x8x128xf32>
    %1 = vector.shape_cast %0 : vector<1x8x128xf32> to vector<8x128xf32>
    %c0_2 = arith.constant 0 : index
    %c0_3 = arith.constant 0 : index
    %c0_4 = arith.constant 0 : index
    %2 = vector.load %arg2[%c0_2, %c0_3, %c0_4] : memref<1x256x512xf32, #tpu.memory_space<vmem>>, vector<1x128x512xf32>
    %3 = vector.shape_cast %2 : vector<1x128x512xf32> to vector<128x512xf32>
    %cst = arith.constant dense<0.000000e+00> : vector<8x512xf32>
    %4 = tpu.matmul %1, %3, %cst {dimension_numbers = #tpu.dot_dimension_numbers<[1], [0], [0], [1], [0, 0, 1, 1], [], []>} : vector<8x128xf32>, vector<128x512xf32>, vector<8x512xf32> -> vector<8x512xf32>
    %c1 = arith.constant 1 : index
    %c0_5 = arith.constant 0 : index
    %c0_6 = arith.constant 0 : index
    %5 = vector.load %arg1[%c1, %c0_5, %c0_6] : memref<2x8x128xf32, #tpu.memory_space<vmem>>, vector<1x8x128xf32>
    %6 = vector.shape_cast %5 : vector<1x8x128xf32> to vector<8x128xf32>
    %c0_7 = arith.constant 0 : index
    %c128 = arith.constant 128 : index
    %c0_8 = arith.constant 0 : index
    %7 = vector.load %arg2[%c0_7, %c128, %c0_8] : memref<1x256x512xf32, #tpu.memory_space<vmem>>, vector<1x128x512xf32>
    %8 = vector.shape_cast %7 : vector<1x128x512xf32> to vector<128x512xf32>
    %cst_9 = arith.constant dense<0.000000e+00> : vector<8x512xf32>
    %9 = tpu.matmul %6, %8, %cst_9 {dimension_numbers = #tpu.dot_dimension_numbers<[1], [0], [0], [1], [0, 0, 1, 1], [], []>} : vector<8x128xf32>, vector<128x512xf32>, vector<8x512xf32> -> vector<8x512xf32>
    %10 = arith.addf %4, %9 : vector<8x512xf32>
    %c0_10 = arith.constant 0 : index
    %c0_11 = arith.constant 0 : index
    %c0_12 = arith.constant 0 : index
    %11 = vector.load %arg3[%c0_10, %c0_11, %c0_12] : memref<1x1x512xf32, #tpu.memory_space<vmem>>, vector<1x1x512xf32>
    %12 = vector.shape_cast %11 : vector<1x1x512xf32> to vector<1x512xf32>
    %13 = vector.broadcast %12 : vector<1x512xf32> to vector<8x512xf32>
    %14 = arith.addf %10, %13 : vector<8x512xf32>
    %c0_13 = arith.constant 0 : index
    %c0_14 = arith.constant 0 : index
    %15 = vector.load %arg4[%c0_13, %c0_14] : memref<8x512xf32, #tpu.memory_space<vmem>>, vector<8x512xf32>
    tpu.vector_store %arg4[%c0_13, %c0_14], %14 {strides = array<i32>} : memref<8x512xf32, #tpu.memory_space<vmem>>, vector<8x512xf32>,
    return
  }
  func.func @transform_0(%arg0: i32) -> (i32, i32, i32) {
    %c0_i32 = arith.constant 0 : i32
    %c0_i32_0 = arith.constant 0 : i32
    %c0_i32_1 = arith.constant 0 : i32
    return %c0_i32, %arg0, %c0_i32_0 : i32, i32, i32
  }
  func.func @transform_1(%arg0: i32) -> (i32, i32, i32) {
    %c0_i32 = arith.constant 0 : i32
    %c0_i32_0 = arith.constant 0 : i32
    %c0_i32_1 = arith.constant 0 : i32
    %c0_i32_2 = arith.constant 0 : i32
    return %c0_i32, %c0_i32_0, %c0_i32_1 : i32, i32, i32
  }
  func.func @transform_2(%arg0: i32) -> (i32, i32, i32) {
    %c0_i32 = arith.constant 0 : i32
    %c0_i32_0 = arith.constant 0 : i32
    %c0_i32_1 = arith.constant 0 : i32
    %c0_i32_2 = arith.constant 0 : i32
    return %c0_i32, %c0_i32_0, %c0_i32_1 : i32, i32, i32
  }
  func.func @transform_3(%arg0: i32) -> (i32, i32) {
    %c0_i32 = arith.constant 0 : i32
    %c0_i32_0 = arith.constant 0 : i32
    return %arg0, %c0_i32 : i32, i32
  }
}

module attributes {stable_mosaic.version = 11 : i64} {
  func.func @_proj_one_from_h_kernel(%arg0: i32, %arg1: memref<2x2x128xf32, #tpu.memory_space<vmem>>, %arg2: memref<1x256x512xf32, #tpu.memory_space<vmem>>, %arg3: memref<1x1x512xf32, #tpu.memory_space<vmem>>, %arg4: memref<2x512xf32, #tpu.memory_space<vmem>>) attributes {dimension_semantics = [#tpu.dimension_semantics<parallel>], iteration_bounds = array<i64: 1>, scalar_prefetch = 0 : i64, scratch_operands = 0 : i64, tpu.core_type = #tpu.core_type<tc>, window_params = [{transform_indices = @transform_0, window_bounds = array<i64: 2, 2, 128>}, {transform_indices = @transform_1, window_bounds = array<i64: 1, 256, 512>}, {transform_indices = @transform_2, window_bounds = array<i64: 1, 1, 512>}, {transform_indices = @transform_3, window_bounds = array<i64: 2, 512>}]} {
    %c0 = arith.constant 0 : index
    %c0_0 = arith.constant 0 : index
    %c0_1 = arith.constant 0 : index
    %0 = vector.load %arg1[%c0, %c0_0, %c0_1] : memref<2x2x128xf32, #tpu.memory_space<vmem>>, vector<1x2x128xf32>
    %1 = vector.shape_cast %0 : vector<1x2x128xf32> to vector<2x128xf32>
    %c0_2 = arith.constant 0 : index
    %c0_3 = arith.constant 0 : index
    %c0_4 = arith.constant 0 : index
    %2 = vector.load %arg2[%c0_2, %c0_3, %c0_4] : memref<1x256x512xf32, #tpu.memory_space<vmem>>, vector<1x128x512xf32>
    %3 = vector.shape_cast %2 : vector<1x128x512xf32> to vector<128x512xf32>
    %cst = arith.constant dense<0.000000e+00> : vector<2x512xf32>
    %4 = tpu.matmul %1, %3, %cst {dimension_numbers = #tpu.dot_dimension_numbers<[1], [0], [0], [1], [0, 0, 1, 1], [], []>} : vector<2x128xf32>, vector<128x512xf32>, vector<2x512xf32> -> vector<2x512xf32>
    %c1 = arith.constant 1 : index
    %c0_5 = arith.constant 0 : index
    %c0_6 = arith.constant 0 : index
    %5 = vector.load %arg1[%c1, %c0_5, %c0_6] : memref<2x2x128xf32, #tpu.memory_space<vmem>>, vector<1x2x128xf32>
    %6 = vector.shape_cast %5 : vector<1x2x128xf32> to vector<2x128xf32>
    %c0_7 = arith.constant 0 : index
    %c128 = arith.constant 128 : index
    %c0_8 = arith.constant 0 : index
    %7 = vector.load %arg2[%c0_7, %c128, %c0_8] : memref<1x256x512xf32, #tpu.memory_space<vmem>>, vector<1x128x512xf32>
    %8 = vector.shape_cast %7 : vector<1x128x512xf32> to vector<128x512xf32>
    %cst_9 = arith.constant dense<0.000000e+00> : vector<2x512xf32>
    %9 = tpu.matmul %6, %8, %cst_9 {dimension_numbers = #tpu.dot_dimension_numbers<[1], [0], [0], [1], [0, 0, 1, 1], [], []>} : vector<2x128xf32>, vector<128x512xf32>, vector<2x512xf32> -> vector<2x512xf32>
    %10 = arith.addf %4, %9 : vector<2x512xf32>
    %c0_10 = arith.constant 0 : index
    %c0_11 = arith.constant 0 : index
    %c0_12 = arith.constant 0 : index
    %11 = vector.load %arg3[%c0_10, %c0_11, %c0_12] : memref<1x1x512xf32, #tpu.memory_space<vmem>>, vector<1x1x512xf32>
    %12 = vector.shape_cast %11 : vector<1x1x512xf32> to vector<1x512xf32>
    %13 = vector.broadcast %12 : vector<1x512xf32> to vector<2x512xf32>
    %14 = arith.addf %10, %13 : vector<2x512xf32>
    %c0_13 = arith.constant 0 : index
    %c0_14 = arith.constant 0 : index
    %15 = vector.load %arg4[%c0_13, %c0_14] : memref<2x512xf32, #tpu.memory_space<vmem>>, vector<2x512xf32>
    tpu.vector_store %arg4[%c0_13, %c0_14], %14 {strides = array<i32>} : memref<2x512xf32, #tpu.memory_space<vmem>>, vector<2x512xf32>,
    return
  }
  func.func @transform_0(%arg0: i32) -> (i32, i32, i32) {
    %c0_i32 = arith.constant 0 : i32
    %c0_i32_0 = arith.constant 0 : i32
    %c0_i32_1 = arith.constant 0 : i32
    return %c0_i32, %arg0, %c0_i32_0 : i32, i32, i32
  }
  func.func @transform_1(%arg0: i32) -> (i32, i32, i32) {
    %c1_i32 = arith.constant 1 : i32
    %c0_i32 = arith.constant 0 : i32
    %c0_i32_0 = arith.constant 0 : i32
    %c0_i32_1 = arith.constant 0 : i32
    return %c1_i32, %c0_i32, %c0_i32_0 : i32, i32, i32
  }
  func.func @transform_2(%arg0: i32) -> (i32, i32, i32) {
    %c1_i32 = arith.constant 1 : i32
    %c0_i32 = arith.constant 0 : i32
    %c0_i32_0 = arith.constant 0 : i32
    %c0_i32_1 = arith.constant 0 : i32
    return %c1_i32, %c0_i32, %c0_i32_0 : i32, i32, i32
  }
  func.func @transform_3(%arg0: i32) -> (i32, i32) {
    %c0_i32 = arith.constant 0 : i32
    %c0_i32_0 = arith.constant 0 : i32
    return %arg0, %c0_i32 : i32, i32
  }
}

module attributes {stable_mosaic.version = 11 : i64} {
  func.func @_bilstm_last_kernel(%arg0: i32, %arg1: memref<4x2x512xf32, #tpu.memory_space<vmem>>, %arg2: memref<2x512xf32, #tpu.memory_space<vmem>>, %arg3: memref<1x128x512xf32, #tpu.memory_space<vmem>>, %arg4: memref<256x5xf32, #tpu.memory_space<vmem>>, %arg5: memref<1x5xf32, #tpu.memory_space<vmem>>, %arg6: memref<2x5xf32, #tpu.memory_space<vmem>>, %arg7: memref<2x128xf32, #tpu.memory_space<vmem>>, %arg8: memref<2x128xf32, #tpu.memory_space<vmem>>) attributes {dimension_semantics = [#tpu.dimension_semantics<arbitrary>], iteration_bounds = array<i64: 2>, scalar_prefetch = 0 : i64, scratch_operands = 2 : i64, tpu.core_type = #tpu.core_type<tc>, window_params = [{transform_indices = @transform_0, window_bounds = array<i64: 4, 2, 512>}, {pipeline_mode = #tpu.pipeline_mode<synchronous>, transform_indices = @transform_1, window_bounds = array<i64: 2, 512>}, {transform_indices = @transform_2, window_bounds = array<i64: 1, 128, 512>}, {pipeline_mode = #tpu.pipeline_mode<synchronous>, transform_indices = @transform_3, window_bounds = array<i64: 256, 5>}, {pipeline_mode = #tpu.pipeline_mode<synchronous>, transform_indices = @transform_4, window_bounds = array<i64: 1, 5>}, {pipeline_mode = #tpu.pipeline_mode<synchronous>, transform_indices = @transform_5, window_bounds = array<i64: 2, 5>}]} {
    %c0_i32 = arith.constant 0 : i32
    %0 = arith.cmpi eq, %arg0, %c0_i32 : i32
    %1 = arith.extui %0 : i1 to i32
    %c0_i32_0 = arith.constant 0 : i32
    %2 = arith.cmpi ne, %1, %c0_i32_0 : i32
    scf.if %2 {
      %cst_37 = arith.constant 0.000000e+00 : f32
      %132 = vector.broadcast %cst_37 : f32 to vector<2x128xf32>
      %c0_38 = arith.constant 0 : index
      %c0_39 = arith.constant 0 : index
      %133 = vector.load %arg7[%c0_38, %c0_39] : memref<2x128xf32, #tpu.memory_space<vmem>>, vector<2x128xf32>
      tpu.vector_store %arg7[%c0_38, %c0_39], %132 {strides = array<i32>} : memref<2x128xf32, #tpu.memory_space<vmem>>, vector<2x128xf32>,
      %cst_40 = arith.constant 0.000000e+00 : f32
      %134 = vector.broadcast %cst_40 : f32 to vector<2x128xf32>
      %c0_41 = arith.constant 0 : index
      %c0_42 = arith.constant 0 : index
      %135 = vector.load %arg8[%c0_41, %c0_42] : memref<2x128xf32, #tpu.memory_space<vmem>>, vector<2x128xf32>
      tpu.vector_store %arg8[%c0_41, %c0_42], %134 {strides = array<i32>} : memref<2x128xf32, #tpu.memory_space<vmem>>, vector<2x128xf32>,
    } else {
    }
    %c0 = arith.constant 0 : index
    %c0_1 = arith.constant 0 : index
    %c0_2 = arith.constant 0 : index
    %3 = vector.load %arg3[%c0, %c0_1, %c0_2] : memref<1x128x512xf32, #tpu.memory_space<vmem>>, vector<1x128x512xf32>
    %4 = vector.shape_cast %3 : vector<1x128x512xf32> to vector<128x512xf32>
    %c0_3 = arith.constant 0 : index
    %c0_4 = arith.constant 0 : index
    %5 = vector.load %arg7[%c0_3, %c0_4] : memref<2x128xf32, #tpu.memory_space<vmem>>, vector<2x128xf32>
    %c0_5 = arith.constant 0 : index
    %c0_6 = arith.constant 0 : index
    %6 = vector.load %arg8[%c0_5, %c0_6] : memref<2x128xf32, #tpu.memory_space<vmem>>, vector<2x128xf32>
    %c0_i32_7 = arith.constant 0 : i32
    %7 = arith.index_cast %c0_i32_7 : i32 to index
    %c0_8 = arith.constant 0 : index
    %c0_9 = arith.constant 0 : index
    %8 = vector.load %arg1[%7, %c0_8, %c0_9] : memref<4x2x512xf32, #tpu.memory_space<vmem>>, vector<1x2x512xf32>
    %9 = vector.shape_cast %8 : vector<1x2x512xf32> to vector<2x512xf32>
    %cst = arith.constant dense<0.000000e+00> : vector<2x512xf32>
    %10 = tpu.matmul %5, %4, %cst {dimension_numbers = #tpu.dot_dimension_numbers<[1], [0], [0], [1], [0, 0, 1, 1], [], []>} : vector<2x128xf32>, vector<128x512xf32>, vector<2x512xf32> -> vector<2x512xf32>
    %11 = arith.addf %9, %10 : vector<2x512xf32>
    %12 = vector.extract_strided_slice %11 {offsets = [0, 0], sizes = [2, 128], strides = [1, 1]} : vector<2x512xf32> to vector<2x128xf32>
    %13 = arith.negf %12 : vector<2x128xf32>
    %14 = math.exp %13 : vector<2x128xf32>
    %cst_10 = arith.constant 1.000000e+00 : f32
    %15 = vector.broadcast %cst_10 : f32 to vector<2x128xf32>
    %16 = arith.addf %15, %14 : vector<2x128xf32>
    %17 = arith.divf %15, %16 : vector<2x128xf32>
    %18 = vector.extract_strided_slice %11 {offsets = [0, 128], sizes = [2, 128], strides = [1, 1]} : vector<2x512xf32> to vector<2x128xf32>
    %19 = arith.negf %18 : vector<2x128xf32>
    %20 = math.exp %19 : vector<2x128xf32>
    %cst_11 = arith.constant 1.000000e+00 : f32
    %21 = vector.broadcast %cst_11 : f32 to vector<2x128xf32>
    %22 = arith.addf %21, %20 : vector<2x128xf32>
    %23 = arith.divf %21, %22 : vector<2x128xf32>
    %24 = vector.extract_strided_slice %11 {offsets = [0, 256], sizes = [2, 128], strides = [1, 1]} : vector<2x512xf32> to vector<2x128xf32>
    %25 = math.tanh %24 : vector<2x128xf32>
    %26 = vector.extract_strided_slice %11 {offsets = [0, 384], sizes = [2, 128], strides = [1, 1]} : vector<2x512xf32> to vector<2x128xf32>
    %27 = arith.negf %26 : vector<2x128xf32>
    %28 = math.exp %27 : vector<2x128xf32>
    %cst_12 = arith.constant 1.000000e+00 : f32
    %29 = vector.broadcast %cst_12 : f32 to vector<2x128xf32>
    %30 = arith.addf %29, %28 : vector<2x128xf32>
    %31 = arith.divf %29, %30 : vector<2x128xf32>
    %32 = arith.mulf %23, %6 : vector<2x128xf32>
    %33 = arith.mulf %17, %25 : vector<2x128xf32>
    %34 = arith.addf %32, %33 : vector<2x128xf32>
    %35 = math.tanh %34 : vector<2x128xf32>
    %36 = arith.mulf %31, %35 : vector<2x128xf32>
    %c1_i32 = arith.constant 1 : i32
    %37 = arith.index_cast %c1_i32 : i32 to index
    %c0_13 = arith.constant 0 : index
    %c0_14 = arith.constant 0 : index
    %38 = vector.load %arg1[%37, %c0_13, %c0_14] : memref<4x2x512xf32, #tpu.memory_space<vmem>>, vector<1x2x512xf32>
    %39 = vector.shape_cast %38 : vector<1x2x512xf32> to vector<2x512xf32>
    %cst_15 = arith.constant dense<0.000000e+00> : vector<2x512xf32>
    %40 = tpu.matmul %36, %4, %cst_15 {dimension_numbers = #tpu.dot_dimension_numbers<[1], [0], [0], [1], [0, 0, 1, 1], [], []>} : vector<2x128xf32>, vector<128x512xf32>, vector<2x512xf32> -> vector<2x512xf32>
    %41 = arith.addf %39, %40 : vector<2x512xf32>
    %42 = vector.extract_strided_slice %41 {offsets = [0, 0], sizes = [2, 128], strides = [1, 1]} : vector<2x512xf32> to vector<2x128xf32>
    %43 = arith.negf %42 : vector<2x128xf32>
    %44 = math.exp %43 : vector<2x128xf32>
    %cst_16 = arith.constant 1.000000e+00 : f32
    %45 = vector.broadcast %cst_16 : f32 to vector<2x128xf32>
    %46 = arith.addf %45, %44 : vector<2x128xf32>
    %47 = arith.divf %45, %46 : vector<2x128xf32>
    %48 = vector.extract_strided_slice %41 {offsets = [0, 128], sizes = [2, 128], strides = [1, 1]} : vector<2x512xf32> to vector<2x128xf32>
    %49 = arith.negf %48 : vector<2x128xf32>
    %50 = math.exp %49 : vector<2x128xf32>
    %cst_17 = arith.constant 1.000000e+00 : f32
    %51 = vector.broadcast %cst_17 : f32 to vector<2x128xf32>
    %52 = arith.addf %51, %50 : vector<2x128xf32>
    %53 = arith.divf %51, %52 : vector<2x128xf32>
    %54 = vector.extract_strided_slice %41 {offsets = [0, 256], sizes = [2, 128], strides = [1, 1]} : vector<2x512xf32> to vector<2x128xf32>
    %55 = math.tanh %54 : vector<2x128xf32>
    %56 = vector.extract_strided_slice %41 {offsets = [0, 384], sizes = [2, 128], strides = [1, 1]} : vector<2x512xf32> to vector<2x128xf32>
    %57 = arith.negf %56 : vector<2x128xf32>
    %58 = math.exp %57 : vector<2x128xf32>
    %cst_18 = arith.constant 1.000000e+00 : f32
    %59 = vector.broadcast %cst_18 : f32 to vector<2x128xf32>
    %60 = arith.addf %59, %58 : vector<2x128xf32>
    %61 = arith.divf %59, %60 : vector<2x128xf32>
    %62 = arith.mulf %53, %34 : vector<2x128xf32>
    %63 = arith.mulf %47, %55 : vector<2x128xf32>
    %64 = arith.addf %62, %63 : vector<2x128xf32>
    %65 = math.tanh %64 : vector<2x128xf32>
    %66 = arith.mulf %61, %65 : vector<2x128xf32>
    %c2_i32 = arith.constant 2 : i32
    %67 = arith.index_cast %c2_i32 : i32 to index
    %c0_19 = arith.constant 0 : index
    %c0_20 = arith.constant 0 : index
    %68 = vector.load %arg1[%67, %c0_19, %c0_20] : memref<4x2x512xf32, #tpu.memory_space<vmem>>, vector<1x2x512xf32>
    %69 = vector.shape_cast %68 : vector<1x2x512xf32> to vector<2x512xf32>
    %cst_21 = arith.constant dense<0.000000e+00> : vector<2x512xf32>
    %70 = tpu.matmul %66, %4, %cst_21 {dimension_numbers = #tpu.dot_dimension_numbers<[1], [0], [0], [1], [0, 0, 1, 1], [], []>} : vector<2x128xf32>, vector<128x512xf32>, vector<2x512xf32> -> vector<2x512xf32>
    %71 = arith.addf %69, %70 : vector<2x512xf32>
    %72 = vector.extract_strided_slice %71 {offsets = [0, 0], sizes = [2, 128], strides = [1, 1]} : vector<2x512xf32> to vector<2x128xf32>
    %73 = arith.negf %72 : vector<2x128xf32>
    %74 = math.exp %73 : vector<2x128xf32>
    %cst_22 = arith.constant 1.000000e+00 : f32
    %75 = vector.broadcast %cst_22 : f32 to vector<2x128xf32>
    %76 = arith.addf %75, %74 : vector<2x128xf32>
    %77 = arith.divf %75, %76 : vector<2x128xf32>
    %78 = vector.extract_strided_slice %71 {offsets = [0, 128], sizes = [2, 128], strides = [1, 1]} : vector<2x512xf32> to vector<2x128xf32>
    %79 = arith.negf %78 : vector<2x128xf32>
    %80 = math.exp %79 : vector<2x128xf32>
    %cst_23 = arith.constant 1.000000e+00 : f32
    %81 = vector.broadcast %cst_23 : f32 to vector<2x128xf32>
    %82 = arith.addf %81, %80 : vector<2x128xf32>
    %83 = arith.divf %81, %82 : vector<2x128xf32>
    %84 = vector.extract_strided_slice %71 {offsets = [0, 256], sizes = [2, 128], strides = [1, 1]} : vector<2x512xf32> to vector<2x128xf32>
    %85 = math.tanh %84 : vector<2x128xf32>
    %86 = vector.extract_strided_slice %71 {offsets = [0, 384], sizes = [2, 128], strides = [1, 1]} : vector<2x512xf32> to vector<2x128xf32>
    %87 = arith.negf %86 : vector<2x128xf32>
    %88 = math.exp %87 : vector<2x128xf32>
    %cst_24 = arith.constant 1.000000e+00 : f32
    %89 = vector.broadcast %cst_24 : f32 to vector<2x128xf32>
    %90 = arith.addf %89, %88 : vector<2x128xf32>
    %91 = arith.divf %89, %90 : vector<2x128xf32>
    %92 = arith.mulf %83, %64 : vector<2x128xf32>
    %93 = arith.mulf %77, %85 : vector<2x128xf32>
    %94 = arith.addf %92, %93 : vector<2x128xf32>
    %95 = math.tanh %94 : vector<2x128xf32>
    %96 = arith.mulf %91, %95 : vector<2x128xf32>
    %c3_i32 = arith.constant 3 : i32
    %97 = arith.index_cast %c3_i32 : i32 to index
    %c0_25 = arith.constant 0 : index
    %c0_26 = arith.constant 0 : index
    %98 = vector.load %arg1[%97, %c0_25, %c0_26] : memref<4x2x512xf32, #tpu.memory_space<vmem>>, vector<1x2x512xf32>
    %99 = vector.shape_cast %98 : vector<1x2x512xf32> to vector<2x512xf32>
    %cst_27 = arith.constant dense<0.000000e+00> : vector<2x512xf32>
    %100 = tpu.matmul %96, %4, %cst_27 {dimension_numbers = #tpu.dot_dimension_numbers<[1], [0], [0], [1], [0, 0, 1, 1], [], []>} : vector<2x128xf32>, vector<128x512xf32>, vector<2x512xf32> -> vector<2x512xf32>
    %101 = arith.addf %99, %100 : vector<2x512xf32>
    %102 = vector.extract_strided_slice %101 {offsets = [0, 0], sizes = [2, 128], strides = [1, 1]} : vector<2x512xf32> to vector<2x128xf32>
    %103 = arith.negf %102 : vector<2x128xf32>
    %104 = math.exp %103 : vector<2x128xf32>
    %cst_28 = arith.constant 1.000000e+00 : f32
    %105 = vector.broadcast %cst_28 : f32 to vector<2x128xf32>
    %106 = arith.addf %105, %104 : vector<2x128xf32>
    %107 = arith.divf %105, %106 : vector<2x128xf32>
    %108 = vector.extract_strided_slice %101 {offsets = [0, 128], sizes = [2, 128], strides = [1, 1]} : vector<2x512xf32> to vector<2x128xf32>
    %109 = arith.negf %108 : vector<2x128xf32>
    %110 = math.exp %109 : vector<2x128xf32>
    %cst_29 = arith.constant 1.000000e+00 : f32
    %111 = vector.broadcast %cst_29 : f32 to vector<2x128xf32>
    %112 = arith.addf %111, %110 : vector<2x128xf32>
    %113 = arith.divf %111, %112 : vector<2x128xf32>
    %114 = vector.extract_strided_slice %101 {offsets = [0, 256], sizes = [2, 128], strides = [1, 1]} : vector<2x512xf32> to vector<2x128xf32>
    %115 = math.tanh %114 : vector<2x128xf32>
    %116 = vector.extract_strided_slice %101 {offsets = [0, 384], sizes = [2, 128], strides = [1, 1]} : vector<2x512xf32> to vector<2x128xf32>
    %117 = arith.negf %116 : vector<2x128xf32>
    %118 = math.exp %117 : vector<2x128xf32>
    %cst_30 = arith.constant 1.000000e+00 : f32
    %119 = vector.broadcast %cst_30 : f32 to vector<2x128xf32>
    %120 = arith.addf %119, %118 : vector<2x128xf32>
    %121 = arith.divf %119, %120 : vector<2x128xf32>
    %122 = arith.mulf %113, %94 : vector<2x128xf32>
    %123 = arith.mulf %107, %115 : vector<2x128xf32>
    %124 = arith.addf %122, %123 : vector<2x128xf32>
    %125 = math.tanh %124 : vector<2x128xf32>
    %126 = arith.mulf %121, %125 : vector<2x128xf32>
    %c4_i32 = arith.constant 4 : i32
    %c0_31 = arith.constant 0 : index
    %c0_32 = arith.constant 0 : index
    %127 = vector.load %arg7[%c0_31, %c0_32] : memref<2x128xf32, #tpu.memory_space<vmem>>, vector<2x128xf32>
    tpu.vector_store %arg7[%c0_31, %c0_32], %126 {strides = array<i32>} : memref<2x128xf32, #tpu.memory_space<vmem>>, vector<2x128xf32>,
    %c0_33 = arith.constant 0 : index
    %c0_34 = arith.constant 0 : index
    %128 = vector.load %arg8[%c0_33, %c0_34] : memref<2x128xf32, #tpu.memory_space<vmem>>, vector<2x128xf32>
    tpu.vector_store %arg8[%c0_33, %c0_34], %124 {strides = array<i32>} : memref<2x128xf32, #tpu.memory_space<vmem>>, vector<2x128xf32>,
    %c1_i32_35 = arith.constant 1 : i32
    %129 = arith.cmpi eq, %arg0, %c1_i32_35 : i32
    %130 = arith.extui %129 : i1 to i32
    %c0_i32_36 = arith.constant 0 : i32
    %131 = arith.cmpi ne, %130, %c0_i32_36 : i32
    scf.if %131 {
      %c0_37 = arith.constant 0 : index
      %c0_38 = arith.constant 0 : index
      %132 = vector.load %arg2[%c0_37, %c0_38] : memref<2x512xf32, #tpu.memory_space<vmem>>, vector<2x512xf32>
      %133 = vector.extract_strided_slice %132 {offsets = [0, 0], sizes = [2, 128], strides = [1, 1]} : vector<2x512xf32> to vector<2x128xf32>
      %134 = arith.negf %133 : vector<2x128xf32>
      %135 = math.exp %134 : vector<2x128xf32>
      %cst_39 = arith.constant 1.000000e+00 : f32
      %136 = vector.broadcast %cst_39 : f32 to vector<2x128xf32>
      %137 = arith.addf %136, %135 : vector<2x128xf32>
      %138 = arith.divf %136, %137 : vector<2x128xf32>
      %139 = vector.extract_strided_slice %132 {offsets = [0, 256], sizes = [2, 128], strides = [1, 1]} : vector<2x512xf32> to vector<2x128xf32>
      %140 = math.tanh %139 : vector<2x128xf32>
      %141 = vector.extract_strided_slice %132 {offsets = [0, 384], sizes = [2, 128], strides = [1, 1]} : vector<2x512xf32> to vector<2x128xf32>
      %142 = arith.negf %141 : vector<2x128xf32>
      %143 = math.exp %142 : vector<2x128xf32>
      %cst_40 = arith.constant 1.000000e+00 : f32
      %144 = vector.broadcast %cst_40 : f32 to vector<2x128xf32>
      %145 = arith.addf %144, %143 : vector<2x128xf32>
      %146 = arith.divf %144, %145 : vector<2x128xf32>
      %147 = arith.mulf %138, %140 : vector<2x128xf32>
      %148 = math.tanh %147 : vector<2x128xf32>
      %149 = arith.mulf %146, %148 : vector<2x128xf32>
      %c0_41 = arith.constant 0 : index
      %c0_42 = arith.constant 0 : index
      %150 = vector.load %arg4[%c0_41, %c0_42] : memref<256x5xf32, #tpu.memory_space<vmem>>, vector<256x5xf32>
      %151 = vector.extract_strided_slice %150 {offsets = [0, 0], sizes = [128, 5], strides = [1, 1]} : vector<256x5xf32> to vector<128x5xf32>
      %cst_43 = arith.constant dense<0.000000e+00> : vector<2x5xf32>
      %152 = tpu.matmul %126, %151, %cst_43 {dimension_numbers = #tpu.dot_dimension_numbers<[1], [0], [0], [1], [0, 0, 1, 1], [], []>} : vector<2x128xf32>, vector<128x5xf32>, vector<2x5xf32> -> vector<2x5xf32>
      %153 = vector.extract_strided_slice %150 {offsets = [128, 0], sizes = [128, 5], strides = [1, 1]} : vector<256x5xf32> to vector<128x5xf32>
      %cst_44 = arith.constant dense<0.000000e+00> : vector<2x5xf32>
      %154 = tpu.matmul %149, %153, %cst_44 {dimension_numbers = #tpu.dot_dimension_numbers<[1], [0], [0], [1], [0, 0, 1, 1], [], []>} : vector<2x128xf32>, vector<128x5xf32>, vector<2x5xf32> -> vector<2x5xf32>
      %155 = arith.addf %152, %154 : vector<2x5xf32>
      %c0_45 = arith.constant 0 : index
      %c0_46 = arith.constant 0 : index
      %156 = vector.load %arg5[%c0_45, %c0_46] : memref<1x5xf32, #tpu.memory_space<vmem>>, vector<1x5xf32>
      %157 = vector.broadcast %156 : vector<1x5xf32> to vector<2x5xf32>
      %158 = arith.addf %155, %157 : vector<2x5xf32>
      %c0_47 = arith.constant 0 : index
      %c0_48 = arith.constant 0 : index
      %159 = vector.load %arg6[%c0_47, %c0_48] : memref<2x5xf32, #tpu.memory_space<vmem>>, vector<2x5xf32>
      tpu.vector_store %arg6[%c0_47, %c0_48], %158 {strides = array<i32>} : memref<2x5xf32, #tpu.memory_space<vmem>>, vector<2x5xf32>,
    } else {
    }
    return
  }
  func.func @transform_0(%arg0: i32) -> (i32, i32, i32) {
    %c0_i32 = arith.constant 0 : i32
    %c0_i32_0 = arith.constant 0 : i32
    %c0_i32_1 = arith.constant 0 : i32
    return %arg0, %c0_i32, %c0_i32_0 : i32, i32, i32
  }
  func.func @transform_1(%arg0: i32) -> (i32, i32) {
    %c0_i32 = arith.constant 0 : i32
    %c0_i32_0 = arith.constant 0 : i32
    %c0_i32_1 = arith.constant 0 : i32
    return %c0_i32, %c0_i32_0 : i32, i32
  }
  func.func @transform_2(%arg0: i32) -> (i32, i32, i32) {
    %c0_i32 = arith.constant 0 : i32
    %c0_i32_0 = arith.constant 0 : i32
    %c0_i32_1 = arith.constant 0 : i32
    %c0_i32_2 = arith.constant 0 : i32
    return %c0_i32, %c0_i32_0, %c0_i32_1 : i32, i32, i32
  }
  func.func @transform_3(%arg0: i32) -> (i32, i32) {
    %c0_i32 = arith.constant 0 : i32
    %c0_i32_0 = arith.constant 0 : i32
    %c0_i32_1 = arith.constant 0 : i32
    return %c0_i32, %c0_i32_0 : i32, i32
  }
  func.func @transform_4(%arg0: i32) -> (i32, i32) {
    %c0_i32 = arith.constant 0 : i32
    %c0_i32_0 = arith.constant 0 : i32
    %c0_i32_1 = arith.constant 0 : i32
    return %c0_i32, %c0_i32_0 : i32, i32
  }
  func.func @transform_5(%arg0: i32) -> (i32, i32) {
    %c0_i32 = arith.constant 0 : i32
    %c0_i32_0 = arith.constant 0 : i32
    %c0_i32_1 = arith.constant 0 : i32
    return %c0_i32, %c0_i32_0 : i32, i32
  }
}

</mosaic_0001>

<llo_original>
// kernel: bilstm_forward.5
$region0: #{bilstm_forward.5}
  #allocation0 [shape = 'u32[]', space=smem, size = 0x4, offset = 0x4, fixed_abs, tag = 'smem constant byte address 0x4 - core index']
  #allocation1 [shape = 'u32[144,128]{1,0:T(1,128)}', space=vmem, size = 0x12000, scoped, tag = 'internal scratch']
  %s0 = inlined_call_operand.vmem [shape: f32[16,16], index: 0, kind: input, shape index: {}]
  %s1 = inlined_call_operand.hbm [shape: f32[2,16,512], index: 1, kind: input, shape index: {}]
  %s2 = inlined_call_operand.hbm [shape: f32[2,1,512], index: 2, kind: input, shape index: {}]
  %s3 = inlined_call_operand.vmem [shape: f32[2,16,512], index: 3, kind: output, shape index: {}]
  %s4 = sld [smem:[#allocation0]]
  $region72: #{bilstm_forward.5} parent=0
    _
  %s6 = ssub.s32 1, %s4
  %s7 = scalar_select 0, %s6, %s4
  $region1: #{bilstm_forward.5} parent=0
    #allocation2 [shape = 'u8[65536]{0}', space=vmem, size = 0x10000, scoped, tag = 'input window, operand 1, single buffered']
    #allocation3 [shape = 's32[2]{0}', space=sflag, size = 0x8, scoped, tag = 'scoped memory for bilstm_forward.5']
    #allocation4 [shape = 'u8[4096]{0}', space=vmem, size = 0x1000, scoped, tag = 'input window, operand 2, single buffered']
    #allocation5 [shape = 's32[1]{0}', space=sflag, size = 0x4, scoped, tag = 'scoped memory for bilstm_forward.5']
    #allocation6 [shape = 'u8[65536]{0}', space=vmem, size = 0x10000, scoped, tag = 'output window, operand 0']
    %8 = vsyncpa [#allocation3], 0
    %9 = vsyncpa [#allocation5], 0
    loop: start=0, step=1, limit=4
    $region2: #{bilstm_forward.5} parent=1 // loop_pre_header
      _
    $region3: #{bilstm_forward.5} parent=1 // loop_header
      %s11 = sphi 0, %s15
      %p12 = scmp.ge.s32.totalorder %s11, 4
      %s21 = sphi 0, %s23
      %s24 = sphi 0, %s21
      %s25 = sphi 0, %s24
      %s41 = sphi 0, %s25
      %s45 = sphi 0, %s45
      %s47 = sphi 0, %s45
      %s48 = sphi 0, %s47
      %s62 = sphi 0, %s48
      %s66 = sphi 0, %s66
      %s68 = sphi 0, %s66
      %s69 = sphi 0, %s68
      %s83 = sphi 0, %s69
      %s89 = sphi 0, %s91
      %s92 = sphi 0, %s89
      %s93 = sphi 0, %s92
      %s109 = sphi 0, %s93
    $region4: #{bilstm_forward.5} parent=1 // loop_header_branch
      %14 = sbr.rel (%p12) target = $region8
    $region5: #{bilstm_forward.5} parent=1 // loop_body
      %s16 = ssub.s32 %s11, 1
      %s17 = ssub.s32 %s11, 2
      %s18 = sadd.s32 %s11, 1
      %s19 = ssub.s32 %s11, %s18
      %p20 = scmp.eq.s32.totalorder %s19, 0
      %s22 = sadd.s32 %s21, 1
      %s23 = scalar_select %p20, %s21, %s22
      %p26 = pneg %p20
      %p27 = scmp.eq.s32.totalorder %s11, 1
      %p28 = por %p26, %p27
      %p29 = scmp.ne.s32.totalorder %s21, %s24
      %p30 = scmp.eq.s32.totalorder %s11, 0
      %p31 = por %p29, %p30
      %p32 = scmp.ne.s32.totalorder %s21, %s24
      %p33 = scmp.eq.s32.totalorder %s16, 1
      %p34 = por %p32, %p33
      %p35 = scmp.ne.s32.totalorder %s24, %s25
      %p36 = scmp.eq.s32.totalorder %s16, 0
      %p37 = por %p35, %p36
      %p38 = scmp.ne.s32.totalorder %s24, %s25
      %p39 = scmp.eq.s32.totalorder %s17, 1
      %p40 = por %p38, %p39
      %p42 = scmp.ne.s32.totalorder %s25, %s41
      %p43 = scmp.eq.s32.totalorder %s17, 0
      %p44 = por %p42, %p43
      %s46 = sadd.s32 %s45, 1
      %p49 = scmp.eq.s32.totalorder %s11, 1
      %p50 = scmp.ne.s32.totalorder %s45, %s47
      %p51 = scmp.eq.s32.totalorder %s11, 0
      %p52 = por %p50, %p51
      %p53 = scmp.ne.s32.totalorder %s45, %s47
      %p54 = scmp.eq.s32.totalorder %s16, 1
      %p55 = por %p53, %p54
      %p56 = scmp.ne.s32.totalorder %s47, %s48
      %p57 = scmp.eq.s32.totalorder %s16, 0
      %p58 = por %p56, %p57
      %p59 = scmp.ne.s32.totalorder %s47, %s48
      %p60 = scmp.eq.s32.totalorder %s17, 1
      %p61 = por %p59, %p60
      %p63 = scmp.ne.s32.totalorder %s48, %s62
      %p64 = scmp.eq.s32.totalorder %s17, 0
      %p65 = por %p63, %p64
      %s67 = sadd.s32 %s66, 1
      %p70 = scmp.eq.s32.totalorder %s11, 1
      %p71 = scmp.ne.s32.totalorder %s66, %s68
      %p72 = scmp.eq.s32.totalorder %s11, 0
      %p73 = por %p71, %p72
      %p74 = scmp.ne.s32.totalorder %s66, %s68
      %p75 = scmp.eq.s32.totalorder %s16, 1
      %p76 = por %p74, %p75
      %p77 = scmp.ne.s32.totalorder %s68, %s69
      %p78 = scmp.eq.s32.totalorder %s16, 0
      %p79 = por %p77, %p78
      %p80 = scmp.ne.s32.totalorder %s68, %s69
      %p81 = scmp.eq.s32.totalorder %s17, 1
      %p82 = por %p80, %p81
      %p84 = scmp.ne.s32.totalorder %s69, %s83
      %p85 = scmp.eq.s32.totalorder %s17, 0
      %p86 = por %p84, %p85
      %s87 = ssub.s32 %s11, %s18
      %p88 = scmp.eq.s32.totalorder %s87, 0
      %s90 = sadd.s32 %s89, 1
      %s91 = scalar_select %p88, %s89, %s90
      %p94 = pneg %p88
      %p95 = scmp.eq.s32.totalorder %s11, 1
      %p96 = por %p94, %p95
      %p97 = scmp.ne.s32.totalorder %s89, %s92
      %p98 = scmp.eq.s32.totalorder %s11, 0
      %p99 = por %p97, %p98
      %p100 = scmp.ne.s32.totalorder %s89, %s92
      %p101 = scmp.eq.s32.totalorder %s16, 1
      %p102 = por %p100, %p101
      %p103 = scmp.ne.s32.totalorder %s92, %s93
      %p104 = scmp.eq.s32.totalorder %s16, 0
      %p105 = por %p103, %p104
      %p106 = scmp.ne.s32.totalorder %s92, %s93
      %p107 = scmp.eq.s32.totalorder %s17, 1
      %p108 = por %p106, %p107
      %p110 = scmp.ne.s32.totalorder %s93, %s109
      %p111 = scmp.eq.s32.totalorder %s17, 0
      %p112 = por %p110, %p111
      %p113 = scmp.le.s32.totalorder 1, %s11
      %p114 = scmp.lt.s32.totalorder %s11, 3
      %p115 = pnand %p113, %p114
      %p116 = pneg %p115
      // Predicated region
      $region9: #{bilstm_forward.5} parent=5 // pred_check
        _
      $region10: #{bilstm_forward.5} parent=5 // pred_check_branch
        %118 = sbr.rel (%p115) target = $region12
      $region11: #{bilstm_forward.5} parent=5 // pred_region
        %s119 = ssub.s32 %s11, 1
        // Predicated region
        $region13: #{bilstm_forward.5} parent=11 // pred_check
          %p120 = pneg %p58
        $region14: #{bilstm_forward.5} parent=11 // pred_check_branch
          %122 = sbr.rel (%p120) target = $region16
        $region15: #{bilstm_forward.5} parent=11 // pred_region
          %s124 = ssub.s32 2048, 2048
          %125 = vsyncadd [#allocation3], %s124
          %s126 = sshll.u32 [#allocation2], 4
          %s127 = int_to_ptr.vmem [resolvable:$true] %s126
          %132 = dma.hbm_to_vmem [thread:$0]  %s1, 2048, %s127, [#allocation3], 512, 512, 32
        $region16: #{bilstm_forward.5} parent=11 // pred_fallthru
          _
        // Predicated region
        $region17: #{bilstm_forward.5} parent=11 // pred_check
          %p133 = pneg %p79
        $region18: #{bilstm_forward.5} parent=11 // pred_check_branch
          %135 = sbr.rel (%p133) target = $region20
        $region19: #{bilstm_forward.5} parent=11 // pred_region
          %s137 = ssub.s32 128, 128
          %138 = vsyncadd [#allocation5], %s137
          %s139 = sshll.u32 [#allocation4], 4
          %s140 = int_to_ptr.vmem [resolvable:$true] %s139
          %145 = dma.hbm_to_vmem [thread:$0]  %s2, 128, %s140, [#allocation5], 64, 64, 4
        $region20: #{bilstm_forward.5} parent=11 // pred_fallthru
          _
      $region12: #{bilstm_forward.5} parent=5 // pred_fallthru
        _
      %p146 = scmp.lt.s32.totalorder %s11, 2
      // Predicated region
      $region21: #{bilstm_forward.5} parent=5 // pred_check
        %p147 = pneg %p146
      $region22: #{bilstm_forward.5} parent=5 // pred_check_branch
        %149 = sbr.rel (%p147) target = $region24
      $region23: #{bilstm_forward.5} parent=5 // pred_region
        // Predicated region
        $region25: #{bilstm_forward.5} parent=23 // pred_check
          %p150 = pneg %p31
        $region26: #{bilstm_forward.5} parent=23 // pred_check_branch
          %152 = sbr.rel (%p150) target = $region28
        $region27: #{bilstm_forward.5} parent=23 // pred_region
          %p153 = scmp.lt.s32.totalorder %s11, 1
          %s154 = scalar_select %p153, %s11, 1
          %s155 = smul.addr %s154, 8
          %s156 = scalar_lea.vmem %s0, %s155
        $region28: #{bilstm_forward.5} parent=23 // pred_fallthru
          _
      $region24: #{bilstm_forward.5} parent=5 // pred_fallthru
        _
      %p157 = scmp.le.s32.totalorder 1, %s11
      %p158 = scmp.lt.s32.totalorder %s11, 3
      %p159 = pnand %p157, %p158
      %p160 = pneg %p159
      // Predicated region
      $region29: #{bilstm_forward.5} parent=5 // pred_check
        _
      $region30: #{bilstm_forward.5} parent=5 // pred_check_branch
        %162 = sbr.rel (%p159) target = $region32
      $region31: #{bilstm_forward.5} parent=5 // pred_region
        %s163 = ssub.s32 %s11, 1
        // Predicated region
        $region33: #{bilstm_forward.5} parent=31 // pred_check
          %p164 = pneg %p58
        $region34: #{bilstm_forward.5} parent=31 // pred_check_branch
          %166 = sbr.rel (%p164) target = $region36
        $region35: #{bilstm_forward.5} parent=31 // pred_region
          %167 = dma.done [#allocation3], 2048
        $region36: #{bilstm_forward.5} parent=31 // pred_fallthru
          _
        // Predicated region
        $region37: #{bilstm_forward.5} parent=31 // pred_check
          %p168 = pneg %p79
        $region38: #{bilstm_forward.5} parent=31 // pred_check_branch
          %170 = sbr.rel (%p168) target = $region40
        $region39: #{bilstm_forward.5} parent=31 // pred_region
          %171 = dma.done [#allocation5], 128
        $region40: #{bilstm_forward.5} parent=31 // pred_fallthru
          _
        %p172 = scmp.lt.s32.totalorder %s16, 1
        %s173 = scalar_select %p172, %s16, 1
        %s174 = smul.addr %s173, 8
        %s175 = scalar_lea.vmem %s0, %s174
        %p176 = pneg %p37
        %p177 = pneg %p34
        %p178 = pneg %p58
        %p179 = pneg %p55
        %p180 = pneg %p79
        %p181 = pneg %p76
        %p182 = pneg %p105
        %p183 = pneg %p102
        %s184 = sand.u32 %s92, 1
        %s185 = sand.u32 %s92, 1
        %s186 = smul.addr %s185, 64
        %s187 = scalar_lea.vmem [#allocation6], %s186
        %p188 = scmp.lt.s32.totalorder %s16, 1
        %s189 = scalar_select %p188, %s16, 1
        %s190 = smul.addr %s189, 8
        %s191 = scalar_lea.vmem %s0, %s190
        %v192 = vld [vmem:[%s191] sm:$0xff]
        %v193 = vld [vmem:[#allocation2] sm:$0xff]
        %v194 = vld [vmem:[#allocation2 + $0x8] sm:$0xff]
        %v195 = vld [vmem:[#allocation2 + $0x10] sm:$0xff]
        %v196 = vld [vmem:[#allocation2 + $0x18] sm:$0xff]
        %v197 = vld [vmem:[#allocation2 + $0x20] sm:$0xff]
        %v198 = vld [vmem:[#allocation2 + $0x28] sm:$0xff]
        %v199 = vld [vmem:[#allocation2 + $0x30] sm:$0xff]
        %v200 = vld [vmem:[#allocation2 + $0x38] sm:$0xff]
        %v201 = vld [vmem:[#allocation4] sm:$0xf]
        %v203 = vlaneseq
        %v204 = vshrl.u32 %v203, 7
        %v205 = vsub.s32 0, %v204
        %v206 = vrot.slane %v201, %v205
        %v207 = vlaneseq
        %v208 = vshrl.u32 %v207, 7
        %v209 = vsub.s32 1, %v208
        %v210 = vrot.slane %v201, %v209
        %v211 = vlaneseq
        %v212 = vshrl.u32 %v211, 7
        %v213 = vsub.s32 2, %v212
        %v214 = vrot.slane %v201, %v213
        %v215 = vlaneseq
        %v216 = vshrl.u32 %v215, 7
        %v217 = vsub.s32 3, %v216
        %v218 = vrot.slane %v201, %v217
        %vm223 = vcmask 130048
        %v225 = vsel %vm223, %v192, 0
        %227 = vmatprep.subr.mxu0 0.0
        %228 = vmatpush1.msra.mxu0 0.0
        %229 = vmatprep.subr.mxu0 0.0
        %230 = vmatpush1.msra.mxu0 0.0
        %231 = vmatprep.subr.mxu0 0.0
        %232 = vmatpush1.msra.mxu0 0.0
        %233 = vmatprep.subr.mxu0 0.0
        %234 = vmatpush1.msra.mxu0 0.0
        %235 = vmatprep.subr.mxu0 0.0
        %236 = vmatpush1.msra.mxu0 0.0
        %237 = vmatprep.subr.mxu0 0.0
        %238 = vmatpush1.msra.mxu0 0.0
        %239 = vmatprep.subr.mxu0 0.0
        %240 = vmatpush1.msra.mxu0 0.0
        %241 = vmatprep.subr.mxu0 0.0
        %242 = vmatpush1.msra.mxu0 0.0
        %243 = vmatprep.subr.mxu0 0.0
        %244 = vmatpush1.msra.mxu0 0.0
        %245 = vmatprep.subr.mxu0 0.0
        %246 = vmatpush1.msra.mxu0 0.0
        %247 = vmatprep.subr.mxu0 0.0
        %248 = vmatpush1.msra.mxu0 0.0
        %249 = vmatprep.subr.mxu0 0.0
        %250 = vmatpush1.msra.mxu0 0.0
        %251 = vmatprep.subr.mxu0 0.0
        %252 = vmatpush1.msra.mxu0 0.0
        %253 = vmatprep.subr.mxu0 0.0
        %254 = vmatpush1.msra.mxu0 0.0
        %255 = vmatprep.subr.mxu0 %v198
        %256 = vmatpush1.msra.mxu0 %v197
        %257 = vmatprep.subr.mxu0 %v194
        %258 = vmatpush1.msra.mxu0 %v193
        %259 = vmatprep.subr.mxu0 0.0
        %260 = vmatpush2.msra.mxu0 0.0
        %261 = vmatprep.subr.mxu0 0.0
        %262 = vmatpush2.msra.mxu0 0.0
        %263 = vmatprep.subr.mxu0 0.0
        %264 = vmatpush2.msra.mxu0 0.0
        %265 = vmatprep.subr.mxu0 0.0
        %266 = vmatpush2.msra.mxu0 0.0
        %267 = vmatprep.subr.mxu0 0.0
        %268 = vmatpush2.msra.mxu0 0.0
        %269 = vmatprep.subr.mxu0 0.0
        %270 = vmatpush2.msra.mxu0 0.0
        %271 = vmatprep.subr.mxu0 0.0
        %272 = vmatpush2.msra.mxu0 0.0
        %273 = vmatprep.subr.mxu0 0.0
        %274 = vmatpush2.msra.mxu0 0.0
        %275 = vmatprep.subr.mxu0 0.0
        %276 = vmatpush2.msra.mxu0 0.0
        %277 = vmatprep.subr.mxu0 0.0
        %278 = vmatpush2.msra.mxu0 0.0
        %279 = vmatprep.subr.mxu0 0.0
        %280 = vmatpush2.msra.mxu0 0.0
        %281 = vmatprep.subr.mxu0 0.0
        %282 = vmatpush2.msra.mxu0 0.0
        %283 = vmatprep.subr.mxu0 0.0
        %284 = vmatpush2.msra.mxu0 0.0
        %285 = vmatprep.subr.mxu0 0.0
        %286 = vmatpush2.msra.mxu0 0.0
        %287 = vmatprep.subr.mxu0 0.0
        %288 = vmatpush2.msra.mxu0 0.0
        %289 = vmatprep.subr.mxu0 0.0
        %290 = vmatpush2.msra.mxu0 0.0
        %291 = vmatprep.mubr.f32.mxu0 0.0
        %292 = vmatmul.mubr.f32.gmra.mxu0 %v225
        %v293 = vpop.f32.mrf.mxu0
        %v294 = vadd.f32 %v206, %v293
        %v295 = vpop.f32.mrf.mxu0
        %v296 = vadd.f32 %v210, %v295
        %297 = vdwg.mxu0
        %298 = vmatprep.subr.mxu0 0.0
        %299 = vmatpush1.msra.mxu0 0.0
        %300 = vmatprep.subr.mxu0 0.0
        %301 = vmatpush1.msra.mxu0 0.0
        %302 = vmatprep.subr.mxu0 0.0
        %303 = vmatpush1.msra.mxu0 0.0
        %304 = vmatprep.subr.mxu0 0.0
        %305 = vmatpush1.msra.mxu0 0.0
        %306 = vmatprep.subr.mxu0 0.0
        %307 = vmatpush1.msra.mxu0 0.0
        %308 = vmatprep.subr.mxu0 0.0
        %309 = vmatpush1.msra.mxu0 0.0
        %310 = vmatprep.subr.mxu0 0.0
        %311 = vmatpush1.msra.mxu0 0.0
        %312 = vmatprep.subr.mxu0 0.0
        %313 = vmatpush1.msra.mxu0 0.0
        %314 = vmatprep.subr.mxu0 0.0
        %315 = vmatpush1.msra.mxu0 0.0
        %316 = vmatprep.subr.mxu0 0.0
        %317 = vmatpush1.msra.mxu0 0.0
        %318 = vmatprep.subr.mxu0 0.0
        %319 = vmatpush1.msra.mxu0 0.0
        %320 = vmatprep.subr.mxu0 0.0
        %321 = vmatpush1.msra.mxu0 0.0
        %322 = vmatprep.subr.mxu0 0.0
        %323 = vmatpush1.msra.mxu0 0.0
        %324 = vmatprep.subr.mxu0 0.0
        %325 = vmatpush1.msra.mxu0 0.0
        %326 = vmatprep.subr.mxu0 %v200
        %327 = vmatpush1.msra.mxu0 %v199
        %328 = vmatprep.subr.mxu0 %v196
        %329 = vmatpush1.msra.mxu0 %v195
        %330 = vmatprep.subr.mxu0 0.0
        %331 = vmatpush2.msra.mxu0 0.0
        %332 = vmatprep.subr.mxu0 0.0
        %333 = vmatpush2.msra.mxu0 0.0
        %334 = vmatprep.subr.mxu0 0.0
        %335 = vmatpush2.msra.mxu0 0.0
        %336 = vmatprep.subr.mxu0 0.0
        %337 = vmatpush2.msra.mxu0 0.0
        %338 = vmatprep.subr.mxu0 0.0
        %339 = vmatpush2.msra.mxu0 0.0
        %340 = vmatprep.subr.mxu0 0.0
        %341 = vmatpush2.msra.mxu0 0.0
        %342 = vmatprep.subr.mxu0 0.0
        %343 = vmatpush2.msra.mxu0 0.0
        %344 = vmatprep.subr.mxu0 0.0
        %345 = vmatpush2.msra.mxu0 0.0
        %346 = vmatprep.subr.mxu0 0.0
        %347 = vmatpush2.msra.mxu0 0.0
        %348 = vmatprep.subr.mxu0 0.0
        %349 = vmatpush2.msra.mxu0 0.0
        %350 = vmatprep.subr.mxu0 0.0
        %351 = vmatpush2.msra.mxu0 0.0
        %352 = vmatprep.subr.mxu0 0.0
        %353 = vmatpush2.msra.mxu0 0.0
        %354 = vmatprep.subr.mxu0 0.0
        %355 = vmatpush2.msra.mxu0 0.0
        %356 = vmatprep.subr.mxu0 0.0
        %357 = vmatpush2.msra.mxu0 0.0
        %358 = vmatprep.subr.mxu0 0.0
        %359 = vmatpush2.msra.mxu0 0.0
        %360 = vmatprep.subr.mxu0 0.0
        %361 = vmatpush2.msra.mxu0 0.0
        %362 = vmatprep.mubr.f32.mxu0 0.0
        %363 = vmatmul.mubr.f32.gmra.mxu0 %v225
        %v364 = vpop.f32.mrf.mxu0
        %v365 = vadd.f32 %v214, %v364
        %v366 = vpop.f32.mrf.mxu0
        %v367 = vadd.f32 %v218, %v366
        %368 = vdwg.mxu0
        %369 = vst [vmem:[%s187] sm:$0xff] %v294
        %370 = vst [vmem:[%s187 + $0x8] sm:$0xff] %v296
        %371 = vst [vmem:[%s187 + $0x10] sm:$0xff] %v365
        %372 = vst [vmem:[%s187 + $0x18] sm:$0xff] %v367
        %s373 = scalar_lea.vmem [#allocation2], 64
        %v374 = vld [vmem:[%s373] sm:$0xff]
        %v375 = vld [vmem:[%s373 + $0x8] sm:$0xff]
        %v376 = vld [vmem:[%s373 + $0x10] sm:$0xff]
        %v377 = vld [vmem:[%s373 + $0x18] sm:$0xff]
        %v378 = vld [vmem:[%s373 + $0x20] sm:$0xff]
        %v379 = vld [vmem:[%s373 + $0x28] sm:$0xff]
        %v380 = vld [vmem:[%s373 + $0x30] sm:$0xff]
        %v381 = vld [vmem:[%s373 + $0x38] sm:$0xff]
        %s382 = scalar_lea.vmem [#allocation4], 4
        %v383 = vld [vmem:[%s382] sm:$0xf]
        %v385 = vlaneseq
        %v386 = vshrl.u32 %v385, 7
        %v387 = vsub.s32 0, %v386
        %v388 = vrot.slane %v383, %v387
        %v389 = vlaneseq
        %v390 = vshrl.u32 %v389, 7
        %v391 = vsub.s32 1, %v390
        %v392 = vrot.slane %v383, %v391
        %v393 = vlaneseq
        %v394 = vshrl.u32 %v393, 7
        %v395 = vsub.s32 2, %v394
        %v396 = vrot.slane %v383, %v395
        %v397 = vlaneseq
        %v398 = vshrl.u32 %v397, 7
        %v399 = vsub.s32 3, %v398
        %v400 = vrot.slane %v383, %v399
        %405 = vmatprep.subr.mxu0 0.0
        %406 = vmatpush1.msra.mxu0 0.0
        %407 = vmatprep.subr.mxu0 0.0
        %408 = vmatpush1.msra.mxu0 0.0
        %409 = vmatprep.subr.mxu0 0.0
        %410 = vmatpush1.msra.mxu0 0.0
        %411 = vmatprep.subr.mxu0 0.0
        %412 = vmatpush1.msra.mxu0 0.0
        %413 = vmatprep.subr.mxu0 0.0
        %414 = vmatpush1.msra.mxu0 0.0
        %415 = vmatprep.subr.mxu0 0.0
        %416 = vmatpush1.msra.mxu0 0.0
        %417 = vmatprep.subr.mxu0 0.0
        %418 = vmatpush1.msra.mxu0 0.0
        %419 = vmatprep.subr.mxu0 0.0
        %420 = vmatpush1.msra.mxu0 0.0
        %421 = vmatprep.subr.mxu0 0.0
        %422 = vmatpush1.msra.mxu0 0.0
        %423 = vmatprep.subr.mxu0 0.0
        %424 = vmatpush1.msra.mxu0 0.0
        %425 = vmatprep.subr.mxu0 0.0
        %426 = vmatpush1.msra.mxu0 0.0
        %427 = vmatprep.subr.mxu0 0.0
        %428 = vmatpush1.msra.mxu0 0.0
        %429 = vmatprep.subr.mxu0 0.0
        %430 = vmatpush1.msra.mxu0 0.0
        %431 = vmatprep.subr.mxu0 0.0
        %432 = vmatpush1.msra.mxu0 0.0
        %433 = vmatprep.subr.mxu0 %v379
        %434 = vmatpush1.msra.mxu0 %v378
        %435 = vmatprep.subr.mxu0 %v375
        %436 = vmatpush1.msra.mxu0 %v374
        %437 = vmatprep.subr.mxu0 0.0
        %438 = vmatpush2.msra.mxu0 0.0
        %439 = vmatprep.subr.mxu0 0.0
        %440 = vmatpush2.msra.mxu0 0.0
        %441 = vmatprep.subr.mxu0 0.0
        %442 = vmatpush2.msra.mxu0 0.0
        %443 = vmatprep.subr.mxu0 0.0
        %444 = vmatpush2.msra.mxu0 0.0
        %445 = vmatprep.subr.mxu0 0.0
        %446 = vmatpush2.msra.mxu0 0.0
        %447 = vmatprep.subr.mxu0 0.0
        %448 = vmatpush2.msra.mxu0 0.0
        %449 = vmatprep.subr.mxu0 0.0
        %450 = vmatpush2.msra.mxu0 0.0
        %451 = vmatprep.subr.mxu0 0.0
        %452 = vmatpush2.msra.mxu0 0.0
        %453 = vmatprep.subr.mxu0 0.0
        %454 = vmatpush2.msra.mxu0 0.0
        %455 = vmatprep.subr.mxu0 0.0
        %456 = vmatpush2.msra.mxu0 0.0
        %457 = vmatprep.subr.mxu0 0.0
        %458 = vmatpush2.msra.mxu0 0.0
        %459 = vmatprep.subr.mxu0 0.0
        %460 = vmatpush2.msra.mxu0 0.0
        %461 = vmatprep.subr.mxu0 0.0
        %462 = vmatpush2.msra.mxu0 0.0
        %463 = vmatprep.subr.mxu0 0.0
        %464 = vmatpush2.msra.mxu0 0.0
        %465 = vmatprep.subr.mxu0 0.0
        %466 = vmatpush2.msra.mxu0 0.0
        %467 = vmatprep.subr.mxu0 0.0
        %468 = vmatpush2.msra.mxu0 0.0
        %469 = vmatprep.mubr.f32.mxu0 0.0
        %470 = vmatmul.mubr.f32.gmra.mxu0 %v225
        %v471 = vpop.f32.mrf.mxu0
        %v472 = vadd.f32 %v388, %v471
        %v473 = vpop.f32.mrf.mxu0
        %v474 = vadd.f32 %v392, %v473
        %475 = vdwg.mxu0
        %476 = vmatprep.subr.mxu0 0.0
        %477 = vmatpush1.msra.mxu0 0.0
        %478 = vmatprep.subr.mxu0 0.0
        %479 = vmatpush1.msra.mxu0 0.0
        %480 = vmatprep.subr.mxu0 0.0
        %481 = vmatpush1.msra.mxu0 0.0
        %482 = vmatprep.subr.mxu0 0.0
        %483 = vmatpush1.msra.mxu0 0.0
        %484 = vmatprep.subr.mxu0 0.0
        %485 = vmatpush1.msra.mxu0 0.0
        %486 = vmatprep.subr.mxu0 0.0
        %487 = vmatpush1.msra.mxu0 0.0
        %488 = vmatprep.subr.mxu0 0.0
        %489 = vmatpush1.msra.mxu0 0.0
        %490 = vmatprep.subr.mxu0 0.0
        %491 = vmatpush1.msra.mxu0 0.0
        %492 = vmatprep.subr.mxu0 0.0
        %493 = vmatpush1.msra.mxu0 0.0
        %494 = vmatprep.subr.mxu0 0.0
        %495 = vmatpush1.msra.mxu0 0.0
        %496 = vmatprep.subr.mxu0 0.0
        %497 = vmatpush1.msra.mxu0 0.0
        %498 = vmatprep.subr.mxu0 0.0
        %499 = vmatpush1.msra.mxu0 0.0
        %500 = vmatprep.subr.mxu0 0.0
        %501 = vmatpush1.msra.mxu0 0.0
        %502 = vmatprep.subr.mxu0 0.0
        %503 = vmatpush1.msra.mxu0 0.0
        %504 = vmatprep.subr.mxu0 %v381
        %505 = vmatpush1.msra.mxu0 %v380
        %506 = vmatprep.subr.mxu0 %v377
        %507 = vmatpush1.msra.mxu0 %v376
        %508 = vmatprep.subr.mxu0 0.0
        %509 = vmatpush2.msra.mxu0 0.0
        %510 = vmatprep.subr.mxu0 0.0
        %511 = vmatpush2.msra.mxu0 0.0
        %512 = vmatprep.subr.mxu0 0.0
        %513 = vmatpush2.msra.mxu0 0.0
        %514 = vmatprep.subr.mxu0 0.0
        %515 = vmatpush2.msra.mxu0 0.0
        %516 = vmatprep.subr.mxu0 0.0
        %517 = vmatpush2.msra.mxu0 0.0
        %518 = vmatprep.subr.mxu0 0.0
        %519 = vmatpush2.msra.mxu0 0.0
        %520 = vmatprep.subr.mxu0 0.0
        %521 = vmatpush2.msra.mxu0 0.0
        %522 = vmatprep.subr.mxu0 0.0
        %523 = vmatpush2.msra.mxu0 0.0
        %524 = vmatprep.subr.mxu0 0.0
        %525 = vmatpush2.msra.mxu0 0.0
        %526 = vmatprep.subr.mxu0 0.0
        %527 = vmatpush2.msra.mxu0 0.0
        %528 = vmatprep.subr.mxu0 0.0
        %529 = vmatpush2.msra.mxu0 0.0
        %530 = vmatprep.subr.mxu0 0.0
        %531 = vmatpush2.msra.mxu0 0.0
        %532 = vmatprep.subr.mxu0 0.0
        %533 = vmatpush2.msra.mxu0 0.0
        %534 = vmatprep.subr.mxu0 0.0
        %535 = vmatpush2.msra.mxu0 0.0
        %536 = vmatprep.subr.mxu0 0.0
        %537 = vmatpush2.msra.mxu0 0.0
        %538 = vmatprep.subr.mxu0 0.0
        %539 = vmatpush2.msra.mxu0 0.0
        %540 = vmatprep.mubr.f32.mxu0 0.0
        %541 = vmatmul.mubr.f32.gmra.mxu0 %v225
        %v542 = vpop.f32.mrf.mxu0
        %v543 = vadd.f32 %v396, %v542
        %v544 = vpop.f32.mrf.mxu0
        %v545 = vadd.f32 %v400, %v544
        %546 = vdwg.mxu0
        %s547 = scalar_lea.vmem %s187, 32 [#allocation6]
        %548 = vst [vmem:[%s547] sm:$0xff] %v472
        %549 = vst [vmem:[%s547 + $0x8] sm:$0xff] %v474
        %550 = vst [vmem:[%s547 + $0x10] sm:$0xff] %v543
        %551 = vst [vmem:[%s547 + $0x18] sm:$0xff] %v545
        %s552 = sand.u32 %s92, 1
        %s553 = sand.u32 %s92, 1
        %s554 = smul.addr %s553, 64
        %s555 = scalar_lea.vmem [#allocation6], %s554
        // Predicated region
        $region41: #{bilstm_forward.5} parent=31 // pred_check
          %p556 = pneg %p102
        $region42: #{bilstm_forward.5} parent=31 // pred_check_branch
          %558 = sbr.rel (%p556) target = $region44
        $region43: #{bilstm_forward.5} parent=31 // pred_region
          %s559 = smul.addr %s16, 4
          %s560 = smul.addr %s559, 8
          %s561 = scalar_lea.vmem %s3, %s560
          // Predicated region
          $region45: #{bilstm_forward.5} parent=43 // pred_check
            _
          $region46: #{bilstm_forward.5} parent=43 // pred_check_branch
            %563 = sbr.rel (0) target = $region48
          $region47: #{bilstm_forward.5} parent=43 // pred_region
            // Predicated region
            $region49: #{bilstm_forward.5} parent=47 // pred_check
              _
            $region50: #{bilstm_forward.5} parent=47 // pred_check_branch
              %565 = sbr.rel (0) target = $region52
            $region51: #{bilstm_forward.5} parent=47 // pred_region
              loop: start=0, step=1, limit=1
              $region53: #{bilstm_forward.5} parent=51 // loop_pre_header
                _
              $region54: #{bilstm_forward.5} parent=51 // loop_header
                %s567 = sphi 0, %s571
                %p568 = scmp.ge.s32.totalorder %s567, 1
                %s572 = sphi %s555, %s555
                %s573 = sphi %s561, %s561
              $region55: #{bilstm_forward.5} parent=51 // loop_header_branch
                %570 = sbr.rel (%p568) target = $region59
              $region56: #{bilstm_forward.5} parent=51 // loop_body
                %v574 = vld [vmem:[%s572] sm:$0xff]
                %575 = vst [vmem:[%s573] sm:$0xff] %v574
                %v576 = vld [vmem:[%s572 + $0x8] sm:$0xff]
                %577 = vst [vmem:[%s573 + $0x8] sm:$0xff] %v576
                %v578 = vld [vmem:[%s572 + $0x10] sm:$0xff]
                %579 = vst [vmem:[%s573 + $0x10] sm:$0xff] %v578
                %v580 = vld [vmem:[%s572 + $0x18] sm:$0xff]
                %581 = vst [vmem:[%s573 + $0x18] sm:$0xff] %v580
                %v582 = vld [vmem:[%s572 + $0x20] sm:$0xff]
                %583 = vst [vmem:[%s573 + $0x40] sm:$0xff] %v582
                %v584 = vld [vmem:[%s572 + $0x28] sm:$0xff]
                %585 = vst [vmem:[%s573 + $0x48] sm:$0xff] %v584
                %v586 = vld [vmem:[%s572 + $0x30] sm:$0xff]
                %587 = vst [vmem:[%s573 + $0x50] sm:$0xff] %v586
                %v588 = vld [vmem:[%s572 + $0x38] sm:$0xff]
                %589 = vst [vmem:[%s573 + $0x58] sm:$0xff] %v588
              $region57: #{bilstm_forward.5} parent=51 // loop_footer
                %s571 = sadd.s32 1, %s567
              $region58: #{bilstm_forward.5} parent=51 // loop_footer_branch
                %566 = sbr.rel target = $region54
              $region59: #{bilstm_forward.5} parent=51 // loop_exit
                _
            $region52: #{bilstm_forward.5} parent=47 // pred_fallthru
              _
            // Predicated region
            $region60: #{bilstm_forward.5} parent=47 // pred_check
              _
            $region61: #{bilstm_forward.5} parent=47 // pred_check_branch
              %591 = sbr.rel target = $region63
            $region62: #{bilstm_forward.5} parent=47 // pred_region
              _
            $region63: #{bilstm_forward.5} parent=47 // pred_fallthru
              _
          $region48: #{bilstm_forward.5} parent=43 // pred_fallthru
            _
          %592 = vnop
        $region44: #{bilstm_forward.5} parent=31 // pred_fallthru
          _
      $region32: #{bilstm_forward.5} parent=5 // pred_fallthru
        _
      %p593 = scmp.le.s32.totalorder 2, %s11
      // Predicated region
      $region64: #{bilstm_forward.5} parent=5 // pred_check
        %p594 = pneg %p593
      $region65: #{bilstm_forward.5} parent=5 // pred_check_branch
        %596 = sbr.rel (%p594) target = $region67
      $region66: #{bilstm_forward.5} parent=5 // pred_region
        %s597 = ssub.s32 %s11, 2
        // Predicated region
        $region68: #{bilstm_forward.5} parent=66 // pred_check
          %p598 = pneg %p108
        $region69: #{bilstm_forward.5} parent=66 // pred_check_branch
          %600 = sbr.rel (%p598) target = $region71
        $region70: #{bilstm_forward.5} parent=66 // pred_region
          %s601 = sand.u32 %s93, 1
          %s602 = sand.u32 %s93, 1
          %s603 = smul.addr %s602, 64
          %s604 = scalar_lea.vmem [#allocation6], %s603
        $region71: #{bilstm_forward.5} parent=66 // pred_fallthru
          _
      $region67: #{bilstm_forward.5} parent=5 // pred_fallthru
        _
    $region6: #{bilstm_forward.5} parent=1 // loop_footer
      %s15 = sadd.s32 1, %s11
    $region7: #{bilstm_forward.5} parent=1 // loop_footer_branch
      %10 = sbr.rel target = $region3
    $region8: #{bilstm_forward.5} parent=1 // loop_exit
      _
    %605 = vsyncpa [#allocation3], 1
    %s606 = scalar_lea.sflag [#allocation3], 1
    %607 = vsyncpa %s606, 1
    %608 = vsyncpa [#allocation5], 1

// kernel: bilstm_forward.7
$region0: #{bilstm_forward.7}
  #allocation0 [shape = 'u32[]', space=smem, size = 0x4, offset = 0x4, fixed_abs, tag = 'smem constant byte address 0x4 - core index']
  #allocation1 [shape = 'u32[144,128]{1,0:T(1,128)}', space=vmem, size = 0x12000, scoped, tag = 'internal scratch']
  %s0 = inlined_call_operand.vmem [shape: f32[2,16,128], index: 0, kind: input, shape index: {}]
  %s1 = inlined_call_operand.vmem [shape: f32[2,256,512], index: 1, kind: input, shape index: {}]
  %s2 = inlined_call_operand.vmem [shape: f32[2,1,512], index: 2, kind: input, shape index: {}]
  %s3 = inlined_call_operand.vmem [shape: f32[16,512], index: 3, kind: output, shape index: {}]
  %s4 = sld [smem:[#allocation0]]
  $region83: #{bilstm_forward.7} parent=0
    _
  %s6 = ssub.s32 1, %s4
  %s7 = scalar_select 0, %s6, %s4
  $region1: #{bilstm_forward.7} parent=0
    #allocation2 [shape = 'u8[16384]{0}', space=vmem, size = 0x4000, scoped, tag = 'input window, operand 0']
    loop: start=0, step=1, limit=4
    $region2: #{bilstm_forward.7} parent=1 // loop_pre_header
      _
    $region3: #{bilstm_forward.7} parent=1 // loop_header
      %s9 = sphi 0, %s13
      %p10 = scmp.ge.s32.totalorder %s9, 4
      %s19 = sphi 0, %s21
      %s22 = sphi 0, %s19
      %s23 = sphi 0, %s22
      %s39 = sphi 0, %s23
      %s43 = sphi 0, %s43
      %s45 = sphi 0, %s43
      %s46 = sphi 0, %s45
      %s60 = sphi 0, %s46
      %s64 = sphi 0, %s64
      %s66 = sphi 0, %s64
      %s67 = sphi 0, %s66
      %s81 = sphi 0, %s67
      %s87 = sphi 0, %s89
      %s90 = sphi 0, %s87
      %s91 = sphi 0, %s90
      %s107 = sphi 0, %s91
    $region4: #{bilstm_forward.7} parent=1 // loop_header_branch
      %12 = sbr.rel (%p10) target = $region8
    $region5: #{bilstm_forward.7} parent=1 // loop_body
      %s14 = ssub.s32 %s9, 1
      %s15 = ssub.s32 %s9, 2
      %s16 = sadd.s32 %s9, 1
      %s17 = ssub.s32 %s9, %s16
      %p18 = scmp.eq.s32.totalorder %s17, 0
      %s20 = sadd.s32 %s19, 1
      %s21 = scalar_select %p18, %s19, %s20
      %p24 = pneg %p18
      %p25 = scmp.eq.s32.totalorder %s9, 1
      %p26 = por %p24, %p25
      %p27 = scmp.ne.s32.totalorder %s19, %s22
      %p28 = scmp.eq.s32.totalorder %s9, 0
      %p29 = por %p27, %p28
      %p30 = scmp.ne.s32.totalorder %s19, %s22
      %p31 = scmp.eq.s32.totalorder %s14, 1
      %p32 = por %p30, %p31
      %p33 = scmp.ne.s32.totalorder %s22, %s23
      %p34 = scmp.eq.s32.totalorder %s14, 0
      %p35 = por %p33, %p34
      %p36 = scmp.ne.s32.totalorder %s22, %s23
      %p37 = scmp.eq.s32.totalorder %s15, 1
      %p38 = por %p36, %p37
      %p40 = scmp.ne.s32.totalorder %s23, %s39
      %p41 = scmp.eq.s32.totalorder %s15, 0
      %p42 = por %p40, %p41
      %s44 = sadd.s32 %s43, 1
      %p47 = scmp.eq.s32.totalorder %s9, 1
      %p48 = scmp.ne.s32.totalorder %s43, %s45
      %p49 = scmp.eq.s32.totalorder %s9, 0
      %p50 = por %p48, %p49
      %p51 = scmp.ne.s32.totalorder %s43, %s45
      %p52 = scmp.eq.s32.totalorder %s14, 1
      %p53 = por %p51, %p52
      %p54 = scmp.ne.s32.totalorder %s45, %s46
      %p55 = scmp.eq.s32.totalorder %s14, 0
      %p56 = por %p54, %p55
      %p57 = scmp.ne.s32.totalorder %s45, %s46
      %p58 = scmp.eq.s32.totalorder %s15, 1
      %p59 = por %p57, %p58
      %p61 = scmp.ne.s32.totalorder %s46, %s60
      %p62 = scmp.eq.s32.totalorder %s15, 0
      %p63 = por %p61, %p62
      %s65 = sadd.s32 %s64, 1
      %p68 = scmp.eq.s32.totalorder %s9, 1
      %p69 = scmp.ne.s32.totalorder %s64, %s66
      %p70 = scmp.eq.s32.totalorder %s9, 0
      %p71 = por %p69, %p70
      %p72 = scmp.ne.s32.totalorder %s64, %s66
      %p73 = scmp.eq.s32.totalorder %s14, 1
      %p74 = por %p72, %p73
      %p75 = scmp.ne.s32.totalorder %s66, %s67
      %p76 = scmp.eq.s32.totalorder %s14, 0
      %p77 = por %p75, %p76
      %p78 = scmp.ne.s32.totalorder %s66, %s67
      %p79 = scmp.eq.s32.totalorder %s15, 1
      %p80 = por %p78, %p79
      %p82 = scmp.ne.s32.totalorder %s67, %s81
      %p83 = scmp.eq.s32.totalorder %s15, 0
      %p84 = por %p82, %p83
      %s85 = ssub.s32 %s9, %s16
      %p86 = scmp.eq.s32.totalorder %s85, 0
      %s88 = sadd.s32 %s87, 1
      %s89 = scalar_select %p86, %s87, %s88
      %p92 = pneg %p86
      %p93 = scmp.eq.s32.totalorder %s9, 1
      %p94 = por %p92, %p93
      %p95 = scmp.ne.s32.totalorder %s87, %s90
      %p96 = scmp.eq.s32.totalorder %s9, 0
      %p97 = por %p95, %p96
      %p98 = scmp.ne.s32.totalorder %s87, %s90
      %p99 = scmp.eq.s32.totalorder %s14, 1
      %p100 = por %p98, %p99
      %p101 = scmp.ne.s32.totalorder %s90, %s91
      %p102 = scmp.eq.s32.totalorder %s14, 0
      %p103 = por %p101, %p102
      %p104 = scmp.ne.s32.totalorder %s90, %s91
      %p105 = scmp.eq.s32.totalorder %s15, 1
      %p106 = por %p104, %p105
      %p108 = scmp.ne.s32.totalorder %s91, %s107
      %p109 = scmp.eq.s32.totalorder %s15, 0
      %p110 = por %p108, %p109
      %p111 = scmp.le.s32.totalorder 1, %s9
      %p112 = scmp.lt.s32.totalorder %s9, 3
      %p113 = pnand %p111, %p112
      %p114 = pneg %p113
      // Predicated region
      $region9: #{bilstm_forward.7} parent=5 // pred_check
        _
      $region10: #{bilstm_forward.7} parent=5 // pred_check_branch
        %116 = sbr.rel (%p113) target = $region12
      $region11: #{bilstm_forward.7} parent=5 // pred_region
        %s117 = ssub.s32 %s9, 1
        // Predicated region
        $region13: #{bilstm_forward.7} parent=11 // pred_check
          %p118 = pneg %p56
        $region14: #{bilstm_forward.7} parent=11 // pred_check_branch
          %120 = sbr.rel (%p118) target = $region16
        $region15: #{bilstm_forward.7} parent=11 // pred_region
          _
        $region16: #{bilstm_forward.7} parent=11 // pred_fallthru
          _
        // Predicated region
        $region17: #{bilstm_forward.7} parent=11 // pred_check
          %p121 = pneg %p77
        $region18: #{bilstm_forward.7} parent=11 // pred_check_branch
          %123 = sbr.rel (%p121) target = $region20
        $region19: #{bilstm_forward.7} parent=11 // pred_region
          _
        $region20: #{bilstm_forward.7} parent=11 // pred_fallthru
          _
      $region12: #{bilstm_forward.7} parent=5 // pred_fallthru
        _
      %p124 = scmp.lt.s32.totalorder %s9, 2
      // Predicated region
      $region21: #{bilstm_forward.7} parent=5 // pred_check
        %p125 = pneg %p124
      $region22: #{bilstm_forward.7} parent=5 // pred_check_branch
        %127 = sbr.rel (%p125) target = $region24
      $region23: #{bilstm_forward.7} parent=5 // pred_region
        // Predicated region
        $region25: #{bilstm_forward.7} parent=23 // pred_check
          %p128 = pneg %p29
        $region26: #{bilstm_forward.7} parent=23 // pred_check_branch
          %130 = sbr.rel (%p128) target = $region28
        $region27: #{bilstm_forward.7} parent=23 // pred_region
          %s131 = sand.u32 %s19, 1
          %s132 = sand.u32 %s19, 1
          %s133 = smul.addr %s132, 16
          %s134 = scalar_lea.vmem [#allocation2], %s133
          %s135 = smul.addr %s9, 8
          %s136 = scalar_lea.vmem %s0, %s135
          // Predicated region
          $region29: #{bilstm_forward.7} parent=27 // pred_check
            _
          $region30: #{bilstm_forward.7} parent=27 // pred_check_branch
            %138 = sbr.rel (0) target = $region32
          $region31: #{bilstm_forward.7} parent=27 // pred_region
            // Predicated region
            $region33: #{bilstm_forward.7} parent=31 // pred_check
              _
            $region34: #{bilstm_forward.7} parent=31 // pred_check_branch
              %140 = sbr.rel (0) target = $region36
            $region35: #{bilstm_forward.7} parent=31 // pred_region
              // Predicated region
              $region48: #{bilstm_forward.7} parent=35 // pred_check
                _
              $region49: #{bilstm_forward.7} parent=35 // pred_check_branch
                %158 = sbr.rel (0) target = $region51
              $region50: #{bilstm_forward.7} parent=35 // pred_region
                loop: start=0, step=1, limit=1
                $region52: #{bilstm_forward.7} parent=50 // loop_pre_header
                  _
                $region53: #{bilstm_forward.7} parent=50 // loop_header
                  %s160 = sphi 0, %s164
                  %p161 = scmp.ge.s32.totalorder %s160, 1
                  %s165 = sphi %s136, %s136
                  %s166 = sphi %s134, %s134
                $region54: #{bilstm_forward.7} parent=50 // loop_header_branch
                  %163 = sbr.rel (%p161) target = $region58
                $region55: #{bilstm_forward.7} parent=50 // loop_body
                  %v167 = vld [vmem:[%s165] sm:$0xff]
                  %168 = vst [vmem:[%s166] sm:$0xff] %v167
                  %v169 = vld [vmem:[%s165 + $0x10] sm:$0xff]
                  %170 = vst [vmem:[%s166 + $0x8] sm:$0xff] %v169
                $region56: #{bilstm_forward.7} parent=50 // loop_footer
                  %s164 = sadd.s32 1, %s160
                $region57: #{bilstm_forward.7} parent=50 // loop_footer_branch
                  %159 = sbr.rel target = $region53
                $region58: #{bilstm_forward.7} parent=50 // loop_exit
                  _
              $region51: #{bilstm_forward.7} parent=35 // pred_fallthru
                _
              // Predicated region
              $region59: #{bilstm_forward.7} parent=35 // pred_check
                _
              $region60: #{bilstm_forward.7} parent=35 // pred_check_branch
                %172 = sbr.rel target = $region62
              $region61: #{bilstm_forward.7} parent=35 // pred_region
                _
              $region62: #{bilstm_forward.7} parent=35 // pred_fallthru
                _
            $region36: #{bilstm_forward.7} parent=31 // pred_fallthru
              _
            // Predicated region
            $region37: #{bilstm_forward.7} parent=31 // pred_check
              _
            $region38: #{bilstm_forward.7} parent=31 // pred_check_branch
              %142 = sbr.rel target = $region40
            $region39: #{bilstm_forward.7} parent=31 // pred_region
              %s144 = ssub.s32 256, 1
              loop: start=0, step=1, limit=1
              $region41: #{bilstm_forward.7} parent=39 // loop_pre_header
                _
              $region42: #{bilstm_forward.7} parent=39 // loop_header
                %s146 = sphi 0, %s150
                %p147 = scmp.ge.s32.totalorder %s146, 1
                %s151 = sphi %s136, %s136
                %s152 = sphi %s134, %s134
              $region43: #{bilstm_forward.7} parent=39 // loop_header_branch
                %149 = sbr.rel (%p147) target = $region47
              $region44: #{bilstm_forward.7} parent=39 // loop_body
                %v153 = vld [vmem:[%s151] sm:%s144]
                %154 = vst [vmem:[%s152] sm:%s144] %v153
                %v155 = vld [vmem:[%s151 + $0x10] sm:%s144]
                %156 = vst [vmem:[%s152 + $0x8] sm:%s144] %v155
              $region45: #{bilstm_forward.7} parent=39 // loop_footer
                %s150 = sadd.s32 1, %s146
              $region46: #{bilstm_forward.7} parent=39 // loop_footer_branch
                %145 = sbr.rel target = $region42
              $region47: #{bilstm_forward.7} parent=39 // loop_exit
                _
            $region40: #{bilstm_forward.7} parent=31 // pred_fallthru
              _
          $region32: #{bilstm_forward.7} parent=27 // pred_fallthru
            _
          %173 = vnop
        $region28: #{bilstm_forward.7} parent=23 // pred_fallthru
          _
      $region24: #{bilstm_forward.7} parent=5 // pred_fallthru
        _
      %p174 = scmp.le.s32.totalorder 1, %s9
      %p175 = scmp.lt.s32.totalorder %s9, 3
      %p176 = pnand %p174, %p175
      %p177 = pneg %p176
      // Predicated region
      $region63: #{bilstm_forward.7} parent=5 // pred_check
        _
      $region64: #{bilstm_forward.7} parent=5 // pred_check_branch
        %179 = sbr.rel (%p176) target = $region66
      $region65: #{bilstm_forward.7} parent=5 // pred_region
        %s180 = ssub.s32 %s9, 1
        %s181 = sand.u32 %s22, 1
        %s182 = sand.u32 %s22, 1
        %s183 = smul.addr %s182, 16
        %s184 = scalar_lea.vmem [#allocation2], %s183
        // Predicated region
        $region67: #{bilstm_forward.7} parent=65 // pred_check
          %p185 = pneg %p35
        $region68: #{bilstm_forward.7} parent=65 // pred_check_branch
          %187 = sbr.rel (%p185) target = $region70
        $region69: #{bilstm_forward.7} parent=65 // pred_region
          _
        $region70: #{bilstm_forward.7} parent=65 // pred_fallthru
          _
        %s188 = sand.u32 %s22, 1
        %s189 = sand.u32 %s22, 1
        %s190 = smul.addr %s189, 16
        %s191 = scalar_lea.vmem [#allocation2], %s190
        %p192 = pneg %p35
        %p193 = pneg %p32
        %p194 = pneg %p56
        %p195 = pneg %p53
        %p196 = pneg %p77
        %p197 = pneg %p74
        %p198 = pneg %p103
        %p199 = pneg %p100
        %p200 = scmp.lt.s32.totalorder %s14, 1
        %s201 = scalar_select %p200, %s14, 1
        %s202 = smul.addr %s201, 4
        %s203 = smul.addr %s202, 8
        %s204 = scalar_lea.vmem %s3, %s203
        %p205 = scmp.lt.s32.totalorder %s14, 1
        %s206 = scalar_select %p205, %s14, 1
        %s207 = smul.addr %s206, 4
        %s208 = smul.addr %s207, 8
        %s209 = scalar_lea.vmem %s3, %s208
        %v210 = vld [vmem:[%s184] sm:$0xff]
        %v211 = vld [vmem:[%s1] sm:$0xff]
        %v212 = vld [vmem:[%s1 + $0x8] sm:$0xff]
        %v213 = vld [vmem:[%s1 + $0x10] sm:$0xff]
        %v214 = vld [vmem:[%s1 + $0x18] sm:$0xff]
        %v215 = vld [vmem:[%s1 + $0x20] sm:$0xff]
        %v216 = vld [vmem:[%s1 + $0x28] sm:$0xff]
        %v217 = vld [vmem:[%s1 + $0x30] sm:$0xff]
        %v218 = vld [vmem:[%s1 + $0x38] sm:$0xff]
        %v219 = vld [vmem:[%s1 + $0x40] sm:$0xff]
        %v220 = vld [vmem:[%s1 + $0x48] sm:$0xff]
        %v221 = vld [vmem:[%s1 + $0x50] sm:$0xff]
        %v222 = vld [vmem:[%s1 + $0x58] sm:$0xff]
        %v223 = vld [vmem:[%s1 + $0x60] sm:$0xff]
        %v224 = vld [vmem:[%s1 + $0x68] sm:$0xff]
        %v225 = vld [vmem:[%s1 + $0x70] sm:$0xff]
        %v226 = vld [vmem:[%s1 + $0x78] sm:$0xff]
        %v227 = vld [vmem:[%s1 + $0x80] sm:$0xff]
        %v228 = vld [vmem:[%s1 + $0x88] sm:$0xff]
        %v229 = vld [vmem:[%s1 + $0x90] sm:$0xff]
        %v230 = vld [vmem:[%s1 + $0x98] sm:$0xff]
        %v231 = vld [vmem:[%s1 + $0xa0] sm:$0xff]
        %v232 = vld [vmem:[%s1 + $0xa8] sm:$0xff]
        %v233 = vld [vmem:[%s1 + $0xb0] sm:$0xff]
        %v234 = vld [vmem:[%s1 + $0xb8] sm:$0xff]
        %v235 = vld [vmem:[%s1 + $0xc0] sm:$0xff]
        %v236 = vld [vmem:[%s1 + $0xc8] sm:$0xff]
        %v237 = vld [vmem:[%s1 + $0xd0] sm:$0xff]
        %v238 = vld [vmem:[%s1 + $0xd8] sm:$0xff]
        %v239 = vld [vmem:[%s1 + $0xe0] sm:$0xff]
        %v240 = vld [vmem:[%s1 + $0xe8] sm:$0xff]
        %v241 = vld [vmem:[%s1 + $0xf0] sm:$0xff]
        %v242 = vld [vmem:[%s1 + $0xf8] sm:$0xff]
        %v243 = vld [vmem:[%s1 + $0x100] sm:$0xff]
        %v244 = vld [vmem:[%s1 + $0x108] sm:$0xff]
        %v245 = vld [vmem:[%s1 + $0x110] sm:$0xff]
        %v246 = vld [vmem:[%s1 + $0x118] sm:$0xff]
        %v247 = vld [vmem:[%s1 + $0x120] sm:$0xff]
        %v248 = vld [vmem:[%s1 + $0x128] sm:$0xff]
        %v249 = vld [vmem:[%s1 + $0x130] sm:$0xff]
        %v250 = vld [vmem:[%s1 + $0x138] sm:$0xff]
        %v251 = vld [vmem:[%s1 + $0x140] sm:$0xff]
        %v252 = vld [vmem:[%s1 + $0x148] sm:$0xff]
        %v253 = vld [vmem:[%s1 + $0x150] sm:$0xff]
        %v254 = vld [vmem:[%s1 + $0x158] sm:$0xff]
        %v255 = vld [vmem:[%s1 + $0x160] sm:$0xff]
        %v256 = vld [vmem:[%s1 + $0x168] sm:$0xff]
        %v257 = vld [vmem:[%s1 + $0x170] sm:$0xff]
        %v258 = vld [vmem:[%s1 + $0x178] sm:$0xff]
        %v259 = vld [vmem:[%s1 + $0x180] sm:$0xff]
        %v260 = vld [vmem:[%s1 + $0x188] sm:$0xff]
        %v261 = vld [vmem:[%s1 + $0x190] sm:$0xff]
        %v262 = vld [vmem:[%s1 + $0x198] sm:$0xff]
        %v263 = vld [vmem:[%s1 + $0x1a0] sm:$0xff]
        %v264 = vld [vmem:[%s1 + $0x1a8] sm:$0xff]
        %v265 = vld [vmem:[%s1 + $0x1b0] sm:$0xff]
        %v266 = vld [vmem:[%s1 + $0x1b8] sm:$0xff]
        %v267 = vld [vmem:[%s1 + $0x1c0] sm:$0xff]
        %v268 = vld [vmem:[%s1 + $0x1c8] sm:$0xff]
        %v269 = vld [vmem:[%s1 + $0x1d0] sm:$0xff]
        %v270 = vld [vmem:[%s1 + $0x1d8] sm:$0xff]
        %v271 = vld [vmem:[%s1 + $0x1e0] sm:$0xff]
        %v272 = vld [vmem:[%s1 + $0x1e8] sm:$0xff]
        %v273 = vld [vmem:[%s1 + $0x1f0] sm:$0xff]
        %v274 = vld [vmem:[%s1 + $0x1f8] sm:$0xff]
        %s275 = scalar_lea.vmem %s184, 8 [#allocation2]
        %v276 = vld [vmem:[%s275] sm:$0xff]
        %v277 = vld [vmem:[%s1 + $0x200] sm:$0xff]
        %v278 = vld [vmem:[%s1 + $0x208] sm:$0xff]
        %v279 = vld [vmem:[%s1 + $0x210] sm:$0xff]
        %v280 = vld [vmem:[%s1 + $0x218] sm:$0xff]
        %v281 = vld [vmem:[%s1 + $0x220] sm:$0xff]
        %v282 = vld [vmem:[%s1 + $0x228] sm:$0xff]
        %v283 = vld [vmem:[%s1 + $0x230] sm:$0xff]
        %v284 = vld [vmem:[%s1 + $0x238] sm:$0xff]
        %v285 = vld [vmem:[%s1 + $0x240] sm:$0xff]
        %v286 = vld [vmem:[%s1 + $0x248] sm:$0xff]
        %v287 = vld [vmem:[%s1 + $0x250] sm:$0xff]
        %v288 = vld [vmem:[%s1 + $0x258] sm:$0xff]
        %v289 = vld [vmem:[%s1 + $0x260] sm:$0xff]
        %v290 = vld [vmem:[%s1 + $0x268] sm:$0xff]
        %v291 = vld [vmem:[%s1 + $0x270] sm:$0xff]
        %v292 = vld [vmem:[%s1 + $0x278] sm:$0xff]
        %v293 = vld [vmem:[%s1 + $0x280] sm:$0xff]
        %v294 = vld [vmem:[%s1 + $0x288] sm:$0xff]
        %v295 = vld [vmem:[%s1 + $0x290] sm:$0xff]
        %v296 = vld [vmem:[%s1 + $0x298] sm:$0xff]
        %v297 = vld [vmem:[%s1 + $0x2a0] sm:$0xff]
        %v298 = vld [vmem:[%s1 + $0x2a8] sm:$0xff]
        %v299 = vld [vmem:[%s1 + $0x2b0] sm:$0xff]
        %v300 = vld [vmem:[%s1 + $0x2b8] sm:$0xff]
        %v301 = vld [vmem:[%s1 + $0x2c0] sm:$0xff]
        %v302 = vld [vmem:[%s1 + $0x2c8] sm:$0xff]
        %v303 = vld [vmem:[%s1 + $0x2d0] sm:$0xff]
        %v304 = vld [vmem:[%s1 + $0x2d8] sm:$0xff]
        %v305 = vld [vmem:[%s1 + $0x2e0] sm:$0xff]
        %v306 = vld [vmem:[%s1 + $0x2e8] sm:$0xff]
        %v307 = vld [vmem:[%s1 + $0x2f0] sm:$0xff]
        %v308 = vld [vmem:[%s1 + $0x2f8] sm:$0xff]
        %v309 = vld [vmem:[%s1 + $0x300] sm:$0xff]
        %v310 = vld [vmem:[%s1 + $0x308] sm:$0xff]
        %v311 = vld [vmem:[%s1 + $0x310] sm:$0xff]
        %v312 = vld [vmem:[%s1 + $0x318] sm:$0xff]
        %v313 = vld [vmem:[%s1 + $0x320] sm:$0xff]
        %v314 = vld [vmem:[%s1 + $0x328] sm:$0xff]
        %v315 = vld [vmem:[%s1 + $0x330] sm:$0xff]
        %v316 = vld [vmem:[%s1 + $0x338] sm:$0xff]
        %v317 = vld [vmem:[%s1 + $0x340] sm:$0xff]
        %v318 = vld [vmem:[%s1 + $0x348] sm:$0xff]
        %v319 = vld [vmem:[%s1 + $0x350] sm:$0xff]
        %v320 = vld [vmem:[%s1 + $0x358] sm:$0xff]
        %v321 = vld [vmem:[%s1 + $0x360] sm:$0xff]
        %v322 = vld [vmem:[%s1 + $0x368] sm:$0xff]
        %v323 = vld [vmem:[%s1 + $0x370] sm:$0xff]
        %v324 = vld [vmem:[%s1 + $0x378] sm:$0xff]
        %v325 = vld [vmem:[%s1 + $0x380] sm:$0xff]
        %v326 = vld [vmem:[%s1 + $0x388] sm:$0xff]
        %v327 = vld [vmem:[%s1 + $0x390] sm:$0xff]
        %v328 = vld [vmem:[%s1 + $0x398] sm:$0xff]
        %v329 = vld [vmem:[%s1 + $0x3a0] sm:$0xff]
        %v330 = vld [vmem:[%s1 + $0x3a8] sm:$0xff]
        %v331 = vld [vmem:[%s1 + $0x3b0] sm:$0xff]
        %v332 = vld [vmem:[%s1 + $0x3b8] sm:$0xff]
        %v333 = vld [vmem:[%s1 + $0x3c0] sm:$0xff]
        %v334 = vld [vmem:[%s1 + $0x3c8] sm:$0xff]
        %v335 = vld [vmem:[%s1 + $0x3d0] sm:$0xff]
        %v336 = vld [vmem:[%s1 + $0x3d8] sm:$0xff]
        %v337 = vld [vmem:[%s1 + $0x3e0] sm:$0xff]
        %v338 = vld [vmem:[%s1 + $0x3e8] sm:$0xff]
        %v339 = vld [vmem:[%s1 + $0x3f0] sm:$0xff]
        %v340 = vld [vmem:[%s1 + $0x3f8] sm:$0xff]
        %341 = vmatprep.subr.mxu0 %v338
        %342 = vmatpush1.msra.mxu0 %v337
        %343 = vmatprep.subr.mxu0 %v334
        %344 = vmatpush1.msra.mxu0 %v333
        %345 = vmatprep.subr.mxu0 %v330
        %346 = vmatpush1.msra.mxu0 %v329
        %347 = vmatprep.subr.mxu0 %v326
        %348 = vmatpush1.msra.mxu0 %v325
        %349 = vmatprep.subr.mxu0 %v322
        %350 = vmatpush1.msra.mxu0 %v321
        %351 = vmatprep.subr.mxu0 %v318
        %352 = vmatpush1.msra.mxu0 %v317
        %353 = vmatprep.subr.mxu0 %v314
        %354 = vmatpush1.msra.mxu0 %v313
        %355 = vmatprep.subr.mxu0 %v310
        %356 = vmatpush1.msra.mxu0 %v309
        %357 = vmatprep.subr.mxu0 %v306
        %358 = vmatpush1.msra.mxu0 %v305
        %359 = vmatprep.subr.mxu0 %v302
        %360 = vmatpush1.msra.mxu0 %v301
        %361 = vmatprep.subr.mxu0 %v298
        %362 = vmatpush1.msra.mxu0 %v297
        %363 = vmatprep.subr.mxu0 %v294
        %364 = vmatpush1.msra.mxu0 %v293
        %365 = vmatprep.subr.mxu0 %v290
        %366 = vmatpush1.msra.mxu0 %v289
        %367 = vmatprep.subr.mxu0 %v286
        %368 = vmatpush1.msra.mxu0 %v285
        %369 = vmatprep.subr.mxu0 %v282
        %370 = vmatpush1.msra.mxu0 %v281
        %371 = vmatprep.subr.mxu0 %v278
        %372 = vmatpush1.msra.mxu0 %v277
        %373 = vmatprep.subr.mxu0 0.0
        %374 = vmatpush2.msra.mxu0 0.0
        %375 = vmatprep.subr.mxu0 0.0
        %376 = vmatpush2.msra.mxu0 0.0
        %377 = vmatprep.subr.mxu0 0.0
        %378 = vmatpush2.msra.mxu0 0.0
        %379 = vmatprep.subr.mxu0 0.0
        %380 = vmatpush2.msra.mxu0 0.0
        %381 = vmatprep.subr.mxu0 0.0
        %382 = vmatpush2.msra.mxu0 0.0
        %383 = vmatprep.subr.mxu0 0.0
        %384 = vmatpush2.msra.mxu0 0.0
        %385 = vmatprep.subr.mxu0 0.0
        %386 = vmatpush2.msra.mxu0 0.0
        %387 = vmatprep.subr.mxu0 0.0
        %388 = vmatpush2.msra.mxu0 0.0
        %389 = vmatprep.subr.mxu0 0.0
        %390 = vmatpush2.msra.mxu0 0.0
        %391 = vmatprep.subr.mxu0 0.0
        %392 = vmatpush2.msra.mxu0 0.0
        %393 = vmatprep.subr.mxu0 0.0
        %394 = vmatpush2.msra.mxu0 0.0
        %395 = vmatprep.subr.mxu0 0.0
        %396 = vmatpush2.msra.mxu0 0.0
        %397 = vmatprep.subr.mxu0 0.0
        %398 = vmatpush2.msra.mxu0 0.0
        %399 = vmatprep.subr.mxu0 0.0
        %400 = vmatpush2.msra.mxu0 0.0
        %401 = vmatprep.subr.mxu0 0.0
        %402 = vmatpush2.msra.mxu0 0.0
        %403 = vmatprep.subr.mxu0 0.0
        %404 = vmatpush2.msra.mxu0 0.0
        %405 = vmatprep.mubr.f32.mxu0 0.0
        %406 = vmatmul.mubr.f32.gmra.mxu0 %v276
        %v407 = vpop.f32.mrf.mxu0
        %v408 = vadd.f32 0.0, %v407
        %v409 = vpop.f32.mrf.mxu0
        %v410 = vadd.f32 0.0, %v409
        %411 = vdwg.mxu0
        %412 = vmatprep.subr.mxu0 %v340
        %413 = vmatpush1.msra.mxu0 %v339
        %414 = vmatprep.subr.mxu0 %v336
        %415 = vmatpush1.msra.mxu0 %v335
        %416 = vmatprep.subr.mxu0 %v332
        %417 = vmatpush1.msra.mxu0 %v331
        %418 = vmatprep.subr.mxu0 %v328
        %419 = vmatpush1.msra.mxu0 %v327
        %420 = vmatprep.subr.mxu0 %v324
        %421 = vmatpush1.msra.mxu0 %v323
        %422 = vmatprep.subr.mxu0 %v320
        %423 = vmatpush1.msra.mxu0 %v319
        %424 = vmatprep.subr.mxu0 %v316
        %425 = vmatpush1.msra.mxu0 %v315
        %426 = vmatprep.subr.mxu0 %v312
        %427 = vmatpush1.msra.mxu0 %v311
        %428 = vmatprep.subr.mxu0 %v308
        %429 = vmatpush1.msra.mxu0 %v307
        %430 = vmatprep.subr.mxu0 %v304
        %431 = vmatpush1.msra.mxu0 %v303
        %432 = vmatprep.subr.mxu0 %v300
        %433 = vmatpush1.msra.mxu0 %v299
        %434 = vmatprep.subr.mxu0 %v296
        %435 = vmatpush1.msra.mxu0 %v295
        %436 = vmatprep.subr.mxu0 %v292
        %437 = vmatpush1.msra.mxu0 %v291
        %438 = vmatprep.subr.mxu0 %v288
        %439 = vmatpush1.msra.mxu0 %v287
        %440 = vmatprep.subr.mxu0 %v284
        %441 = vmatpush1.msra.mxu0 %v283
        %442 = vmatprep.subr.mxu0 %v280
        %443 = vmatpush1.msra.mxu0 %v279
        %444 = vmatprep.subr.mxu0 0.0
        %445 = vmatpush2.msra.mxu0 0.0
        %446 = vmatprep.subr.mxu0 0.0
        %447 = vmatpush2.msra.mxu0 0.0
        %448 = vmatprep.subr.mxu0 0.0
        %449 = vmatpush2.msra.mxu0 0.0
        %450 = vmatprep.subr.mxu0 0.0
        %451 = vmatpush2.msra.mxu0 0.0
        %452 = vmatprep.subr.mxu0 0.0
        %453 = vmatpush2.msra.mxu0 0.0
        %454 = vmatprep.subr.mxu0 0.0
        %455 = vmatpush2.msra.mxu0 0.0
        %456 = vmatprep.subr.mxu0 0.0
        %457 = vmatpush2.msra.mxu0 0.0
        %458 = vmatprep.subr.mxu0 0.0
        %459 = vmatpush2.msra.mxu0 0.0
        %460 = vmatprep.subr.mxu0 0.0
        %461 = vmatpush2.msra.mxu0 0.0
        %462 = vmatprep.subr.mxu0 0.0
        %463 = vmatpush2.msra.mxu0 0.0
        %464 = vmatprep.subr.mxu0 0.0
        %465 = vmatpush2.msra.mxu0 0.0
        %466 = vmatprep.subr.mxu0 0.0
        %467 = vmatpush2.msra.mxu0 0.0
        %468 = vmatprep.subr.mxu0 0.0
        %469 = vmatpush2.msra.mxu0 0.0
        %470 = vmatprep.subr.mxu0 0.0
        %471 = vmatpush2.msra.mxu0 0.0
        %472 = vmatprep.subr.mxu0 0.0
        %473 = vmatpush2.msra.mxu0 0.0
        %474 = vmatprep.subr.mxu0 0.0
        %475 = vmatpush2.msra.mxu0 0.0
        %476 = vmatprep.mubr.f32.mxu0 0.0
        %477 = vmatmul.mubr.f32.gmra.mxu0 %v276
        %v478 = vpop.f32.mrf.mxu0
        %v479 = vadd.f32 0.0, %v478
        %v480 = vpop.f32.mrf.mxu0
        %v481 = vadd.f32 0.0, %v480
        %482 = vdwg.mxu0
        %483 = vmatprep.subr.mxu0 %v272
        %484 = vmatpush1.msra.mxu0 %v271
        %485 = vmatprep.subr.mxu0 %v268
        %486 = vmatpush1.msra.mxu0 %v267
        %487 = vmatprep.subr.mxu0 %v264
        %488 = vmatpush1.msra.mxu0 %v263
        %489 = vmatprep.subr.mxu0 %v260
        %490 = vmatpush1.msra.mxu0 %v259
        %491 = vmatprep.subr.mxu0 %v256
        %492 = vmatpush1.msra.mxu0 %v255
        %493 = vmatprep.subr.mxu0 %v252
        %494 = vmatpush1.msra.mxu0 %v251
        %495 = vmatprep.subr.mxu0 %v248
        %496 = vmatpush1.msra.mxu0 %v247
        %497 = vmatprep.subr.mxu0 %v244
        %498 = vmatpush1.msra.mxu0 %v243
        %499 = vmatprep.subr.mxu0 %v240
        %500 = vmatpush1.msra.mxu0 %v239
        %501 = vmatprep.subr.mxu0 %v236
        %502 = vmatpush1.msra.mxu0 %v235
        %503 = vmatprep.subr.mxu0 %v232
        %504 = vmatpush1.msra.mxu0 %v231
        %505 = vmatprep.subr.mxu0 %v228
        %506 = vmatpush1.msra.mxu0 %v227
        %507 = vmatprep.subr.mxu0 %v224
        %508 = vmatpush1.msra.mxu0 %v223
        %509 = vmatprep.subr.mxu0 %v220
        %510 = vmatpush1.msra.mxu0 %v219
        %511 = vmatprep.subr.mxu0 %v216
        %512 = vmatpush1.msra.mxu0 %v215
        %513 = vmatprep.subr.mxu0 %v212
        %514 = vmatpush1.msra.mxu0 %v211
        %515 = vmatprep.subr.mxu0 0.0
        %516 = vmatpush2.msra.mxu0 0.0
        %517 = vmatprep.subr.mxu0 0.0
        %518 = vmatpush2.msra.mxu0 0.0
        %519 = vmatprep.subr.mxu0 0.0
        %520 = vmatpush2.msra.mxu0 0.0
        %521 = vmatprep.subr.mxu0 0.0
        %522 = vmatpush2.msra.mxu0 0.0
        %523 = vmatprep.subr.mxu0 0.0
        %524 = vmatpush2.msra.mxu0 0.0
        %525 = vmatprep.subr.mxu0 0.0
        %526 = vmatpush2.msra.mxu0 0.0
        %527 = vmatprep.subr.mxu0 0.0
        %528 = vmatpush2.msra.mxu0 0.0
        %529 = vmatprep.subr.mxu0 0.0
        %530 = vmatpush2.msra.mxu0 0.0
        %531 = vmatprep.subr.mxu0 0.0
        %532 = vmatpush2.msra.mxu0 0.0
        %533 = vmatprep.subr.mxu0 0.0
        %534 = vmatpush2.msra.mxu0 0.0
        %535 = vmatprep.subr.mxu0 0.0
        %536 = vmatpush2.msra.mxu0 0.0
        %537 = vmatprep.subr.mxu0 0.0
        %538 = vmatpush2.msra.mxu0 0.0
        %539 = vmatprep.subr.mxu0 0.0
        %540 = vmatpush2.msra.mxu0 0.0
        %541 = vmatprep.subr.mxu0 0.0
        %542 = vmatpush2.msra.mxu0 0.0
        %543 = vmatprep.subr.mxu0 0.0
        %544 = vmatpush2.msra.mxu0 0.0
        %545 = vmatprep.subr.mxu0 0.0
        %546 = vmatpush2.msra.mxu0 0.0
        %547 = vmatprep.mubr.f32.mxu0 0.0
        %548 = vmatmul.mubr.f32.gmra.mxu0 %v210
        %v549 = vpop.f32.mrf.mxu0
        %v550 = vadd.f32 %v408, %v549
        %v551 = vpop.f32.mrf.mxu0
        %v552 = vadd.f32 %v410, %v551
        %553 = vdwg.mxu0
        %554 = vmatprep.subr.mxu0 %v274
        %555 = vmatpush1.msra.mxu0 %v273
        %556 = vmatprep.subr.mxu0 %v270
        %557 = vmatpush1.msra.mxu0 %v269
        %558 = vmatprep.subr.mxu0 %v266
        %559 = vmatpush1.msra.mxu0 %v265
        %560 = vmatprep.subr.mxu0 %v262
        %561 = vmatpush1.msra.mxu0 %v261
        %562 = vmatprep.subr.mxu0 %v258
        %563 = vmatpush1.msra.mxu0 %v257
        %564 = vmatprep.subr.mxu0 %v254
        %565 = vmatpush1.msra.mxu0 %v253
        %566 = vmatprep.subr.mxu0 %v250
        %567 = vmatpush1.msra.mxu0 %v249
        %568 = vmatprep.subr.mxu0 %v246
        %569 = vmatpush1.msra.mxu0 %v245
        %570 = vmatprep.subr.mxu0 %v242
        %571 = vmatpush1.msra.mxu0 %v241
        %572 = vmatprep.subr.mxu0 %v238
        %573 = vmatpush1.msra.mxu0 %v237
        %574 = vmatprep.subr.mxu0 %v234
        %575 = vmatpush1.msra.mxu0 %v233
        %576 = vmatprep.subr.mxu0 %v230
        %577 = vmatpush1.msra.mxu0 %v229
        %578 = vmatprep.subr.mxu0 %v226
        %579 = vmatpush1.msra.mxu0 %v225
        %580 = vmatprep.subr.mxu0 %v222
        %581 = vmatpush1.msra.mxu0 %v221
        %582 = vmatprep.subr.mxu0 %v218
        %583 = vmatpush1.msra.mxu0 %v217
        %584 = vmatprep.subr.mxu0 %v214
        %585 = vmatpush1.msra.mxu0 %v213
        %586 = vmatprep.subr.mxu0 0.0
        %587 = vmatpush2.msra.mxu0 0.0
        %588 = vmatprep.subr.mxu0 0.0
        %589 = vmatpush2.msra.mxu0 0.0
        %590 = vmatprep.subr.mxu0 0.0
        %591 = vmatpush2.msra.mxu0 0.0
        %592 = vmatprep.subr.mxu0 0.0
        %593 = vmatpush2.msra.mxu0 0.0
        %594 = vmatprep.subr.mxu0 0.0
        %595 = vmatpush2.msra.mxu0 0.0
        %596 = vmatprep.subr.mxu0 0.0
        %597 = vmatpush2.msra.mxu0 0.0
        %598 = vmatprep.subr.mxu0 0.0
        %599 = vmatpush2.msra.mxu0 0.0
        %600 = vmatprep.subr.mxu0 0.0
        %601 = vmatpush2.msra.mxu0 0.0
        %602 = vmatprep.subr.mxu0 0.0
        %603 = vmatpush2.msra.mxu0 0.0
        %604 = vmatprep.subr.mxu0 0.0
        %605 = vmatpush2.msra.mxu0 0.0
        %606 = vmatprep.subr.mxu0 0.0
        %607 = vmatpush2.msra.mxu0 0.0
        %608 = vmatprep.subr.mxu0 0.0
        %609 = vmatpush2.msra.mxu0 0.0
        %610 = vmatprep.subr.mxu0 0.0
        %611 = vmatpush2.msra.mxu0 0.0
        %612 = vmatprep.subr.mxu0 0.0
        %613 = vmatpush2.msra.mxu0 0.0
        %614 = vmatprep.subr.mxu0 0.0
        %615 = vmatpush2.msra.mxu0 0.0
        %616 = vmatprep.subr.mxu0 0.0
        %617 = vmatpush2.msra.mxu0 0.0
        %618 = vmatprep.mubr.f32.mxu0 0.0
        %619 = vmatmul.mubr.f32.gmra.mxu0 %v210
        %v620 = vpop.f32.mrf.mxu0
        %v621 = vadd.f32 %v479, %v620
        %v622 = vpop.f32.mrf.mxu0
        %v623 = vadd.f32 %v481, %v622
        %624 = vdwg.mxu0
        %v625 = vld [vmem:[%s2] sm:$0xf]
        %v627 = vlaneseq
        %v628 = vshrl.u32 %v627, 7
        %v629 = vsub.s32 0, %v628
        %v630 = vrot.slane %v625, %v629
        %v631 = vlaneseq
        %v632 = vshrl.u32 %v631, 7
        %v633 = vsub.s32 1, %v632
        %v634 = vrot.slane %v625, %v633
        %v635 = vlaneseq
        %v636 = vshrl.u32 %v635, 7
        %v637 = vsub.s32 2, %v636
        %v638 = vrot.slane %v625, %v637
        %v639 = vlaneseq
        %v640 = vshrl.u32 %v639, 7
        %v641 = vsub.s32 3, %v640
        %v642 = vrot.slane %v625, %v641
        %v647 = vadd.f32 %v550, %v630
        %v648 = vadd.f32 %v552, %v634
        %v649 = vadd.f32 %v621, %v638
        %v650 = vadd.f32 %v623, %v642
        %651 = vst [vmem:[%s209] sm:$0xff] %v647
        %652 = vst [vmem:[%s209 + $0x8] sm:$0xff] %v648
        %653 = vst [vmem:[%s209 + $0x10] sm:$0xff] %v649
        %654 = vst [vmem:[%s209 + $0x18] sm:$0xff] %v650
        %p655 = scmp.lt.s32.totalorder %s14, 1
        %s656 = scalar_select %p655, %s14, 1
        %s657 = smul.addr %s656, 4
        %s658 = smul.addr %s657, 8
        %s659 = scalar_lea.vmem %s3, %s658
        // Predicated region
        $region71: #{bilstm_forward.7} parent=65 // pred_check
          %p660 = pneg %p100
        $region72: #{bilstm_forward.7} parent=65 // pred_check_branch
          %662 = sbr.rel (%p660) target = $region74
        $region73: #{bilstm_forward.7} parent=65 // pred_region
          _
        $region74: #{bilstm_forward.7} parent=65 // pred_fallthru
          _
      $region66: #{bilstm_forward.7} parent=5 // pred_fallthru
        _
      %p663 = scmp.le.s32.totalorder 2, %s9
      // Predicated region
      $region75: #{bilstm_forward.7} parent=5 // pred_check
        %p664 = pneg %p663
      $region76: #{bilstm_forward.7} parent=5 // pred_check_branch
        %666 = sbr.rel (%p664) target = $region78
      $region77: #{bilstm_forward.7} parent=5 // pred_region
        %s667 = ssub.s32 %s9, 2
        // Predicated region
        $region79: #{bilstm_forward.7} parent=77 // pred_check
          %p668 = pneg %p106
        $region80: #{bilstm_forward.7} parent=77 // pred_check_branch
          %670 = sbr.rel (%p668) target = $region82
        $region81: #{bilstm_forward.7} parent=77 // pred_region
          %p671 = scmp.lt.s32.totalorder %s15, 1
          %s672 = scalar_select %p671, %s15, 1
          %s673 = smul.addr %s672, 4
          %s674 = smul.addr %s673, 8
          %s675 = scalar_lea.vmem %s3, %s674
        $region82: #{bilstm_forward.7} parent=77 // pred_fallthru
          _
      $region78: #{bilstm_forward.7} parent=5 // pred_fallthru
        _
    $region6: #{bilstm_forward.7} parent=1 // loop_footer
      %s13 = sadd.s32 1, %s9
    $region7: #{bilstm_forward.7} parent=1 // loop_footer_branch
      %8 = sbr.rel target = $region3
    $region8: #{bilstm_forward.7} parent=1 // loop_exit
      _

// kernel: bilstm_forward.6
$region0: #{bilstm_forward.6}
  #allocation0 [shape = 'u32[]', space=smem, size = 0x4, offset = 0x4, fixed_abs, tag = 'smem constant byte address 0x4 - core index']
  #allocation1 [shape = 'u32[144,128]{1,0:T(1,128)}', space=vmem, size = 0x12000, scoped, tag = 'internal scratch']
  #allocation2 [shape = 'f32[2,2,128]{2,1,0:T(2,128)}', space=vmem, size = 0x800, scoped, tag = 'scratch operand']
  #allocation3 [shape = 'f32[2,2,128]{2,1,0:T(2,128)}', space=vmem, size = 0x800, scoped, tag = 'scratch operand']
  %s0 = inlined_call_operand.vmem [shape: f32[2,8,2,512], index: 0, kind: input, shape index: {}]
  %s1 = inlined_call_operand.hbm [shape: f32[2,128,512], index: 1, kind: input, shape index: {}]
  %s2 = inlined_call_operand.vmem [shape: f32[2,8,2,128], index: 2, kind: output, shape index: {}]
  %s3 = sld [smem:[#allocation0]]
  $region49: #{bilstm_forward.6} parent=0
    _
  %s5 = ssub.s32 1, %s3
  %s6 = scalar_select 0, %s5, %s3
  $region1: #{bilstm_forward.6} parent=0
    #allocation4 [shape = 'u8[524288]{0}', space=vmem, size = 0x80000, scoped, tag = 'input window, operand 1']
    #allocation5 [shape = 's32[2]{0}', space=sflag, size = 0x8, scoped, tag = 'scoped memory for bilstm_forward.6']
    %7 = vsyncpa [#allocation5], 0
    %s8 = scalar_lea.sflag [#allocation5], 1
    %9 = vsyncpa %s8, 0
    loop: start=0, step=1, limit=6
    $region2: #{bilstm_forward.6} parent=1 // loop_pre_header
      _
    $region3: #{bilstm_forward.6} parent=1 // loop_header
      %s11 = sphi 0, %s15
      %p12 = scmp.ge.s32.totalorder %s11, 6
      %s18 = sphi 0, %s30
      %s19 = sphi 0, %s26
      %s20 = sphi 0, %s18
      %s21 = sphi 0, %s19
      %s22 = sphi 0, %s20
      %s23 = sphi 0, %s21
      %s43 = sphi 0, %s45
      %s46 = sphi 0, %s43
      %s47 = sphi 0, %s46
      %s63 = sphi 0, %s47
      %s69 = sphi 0, %s71
      %s72 = sphi 0, %s69
      %s73 = sphi 0, %s72
      %s89 = sphi 0, %s73
      %s105 = sphi 0, %s107
      %s108 = sphi 0, %s105
      %s109 = sphi 0, %s108
      %s125 = sphi 0, %s109
    $region4: #{bilstm_forward.6} parent=1 // loop_header_branch
      %14 = sbr.rel (%p12) target = $region8
    $region5: #{bilstm_forward.6} parent=1 // loop_body
      %s16 = ssub.s32 %s11, 1
      %s17 = ssub.s32 %s11, 2
      %s24 = sadd.s32 1, %s19
      %p25 = scmp.ge.s32.totalorder %s24, 2
      %s26 = scalar_select %p25, 0, %s24
      %s27 = sadd.s32 1, %s18
      %s28 = scalar_select %p25, %s27, %s18
      %p29 = scmp.ge.s32.totalorder %s28, 2
      %s30 = scalar_select %p29, 0, %s28
      %s31 = smul.u32 %s19, 2
      %s32 = ssub.s32 1, %s31
      %s33 = smul.u32 %s18, %s32
      %s34 = sadd.s32 %s19, %s33
      %s35 = smul.u32 %s26, 2
      %s36 = ssub.s32 1, %s35
      %s37 = smul.u32 %s30, %s36
      %s38 = sadd.s32 %s26, %s37
      %s39 = ssub.s32 %s18, %s30
      %s40 = ssub.s32 %s34, %s38
      %s41 = sor.u32 %s39, %s40
      %p42 = scmp.eq.s32.totalorder %s41, 0
      %s44 = sadd.s32 %s43, 1
      %s45 = scalar_select %p42, %s43, %s44
      %p48 = pneg %p42
      %p49 = scmp.eq.s32.totalorder %s11, 3
      %p50 = por %p48, %p49
      %p51 = scmp.ne.s32.totalorder %s43, %s46
      %p52 = scmp.eq.s32.totalorder %s11, 0
      %p53 = por %p51, %p52
      %p54 = scmp.ne.s32.totalorder %s43, %s46
      %p55 = scmp.eq.s32.totalorder %s16, 3
      %p56 = por %p54, %p55
      %p57 = scmp.ne.s32.totalorder %s46, %s47
      %p58 = scmp.eq.s32.totalorder %s16, 0
      %p59 = por %p57, %p58
      %p60 = scmp.ne.s32.totalorder %s46, %s47
      %p61 = scmp.eq.s32.totalorder %s17, 3
      %p62 = por %p60, %p61
      %p64 = scmp.ne.s32.totalorder %s47, %s63
      %p65 = scmp.eq.s32.totalorder %s17, 0
      %p66 = por %p64, %p65
      %s67 = ssub.s32 %s18, %s30
      %p68 = scmp.eq.s32.totalorder %s67, 0
      %s70 = sadd.s32 %s69, 1
      %s71 = scalar_select %p68, %s69, %s70
      %p74 = pneg %p68
      %p75 = scmp.eq.s32.totalorder %s11, 3
      %p76 = por %p74, %p75
      %p77 = scmp.ne.s32.totalorder %s69, %s72
      %p78 = scmp.eq.s32.totalorder %s11, 0
      %p79 = por %p77, %p78
      %p80 = scmp.ne.s32.totalorder %s69, %s72
      %p81 = scmp.eq.s32.totalorder %s16, 3
      %p82 = por %p80, %p81
      %p83 = scmp.ne.s32.totalorder %s72, %s73
      %p84 = scmp.eq.s32.totalorder %s16, 0
      %p85 = por %p83, %p84
      %p86 = scmp.ne.s32.totalorder %s72, %s73
      %p87 = scmp.eq.s32.totalorder %s17, 3
      %p88 = por %p86, %p87
      %p90 = scmp.ne.s32.totalorder %s73, %s89
      %p91 = scmp.eq.s32.totalorder %s17, 0
      %p92 = por %p90, %p91
      %s93 = smul.u32 %s19, 2
      %s94 = ssub.s32 1, %s93
      %s95 = smul.u32 %s18, %s94
      %s96 = sadd.s32 %s19, %s95
      %s97 = smul.u32 %s26, 2
      %s98 = ssub.s32 1, %s97
      %s99 = smul.u32 %s30, %s98
      %s100 = sadd.s32 %s26, %s99
      %s101 = ssub.s32 %s18, %s30
      %s102 = ssub.s32 %s96, %s100
      %s103 = sor.u32 %s101, %s102
      %p104 = scmp.eq.s32.totalorder %s103, 0
      %s106 = sadd.s32 %s105, 1
      %s107 = scalar_select %p104, %s105, %s106
      %p110 = pneg %p104
      %p111 = scmp.eq.s32.totalorder %s11, 3
      %p112 = por %p110, %p111
      %p113 = scmp.ne.s32.totalorder %s105, %s108
      %p114 = scmp.eq.s32.totalorder %s11, 0
      %p115 = por %p113, %p114
      %p116 = scmp.ne.s32.totalorder %s105, %s108
      %p117 = scmp.eq.s32.totalorder %s16, 3
      %p118 = por %p116, %p117
      %p119 = scmp.ne.s32.totalorder %s108, %s109
      %p120 = scmp.eq.s32.totalorder %s16, 0
      %p121 = por %p119, %p120
      %p122 = scmp.ne.s32.totalorder %s108, %s109
      %p123 = scmp.eq.s32.totalorder %s17, 3
      %p124 = por %p122, %p123
      %p126 = scmp.ne.s32.totalorder %s109, %s125
      %p127 = scmp.eq.s32.totalorder %s17, 0
      %p128 = por %p126, %p127
      %p129 = scmp.le.s32.totalorder 1, %s11
      %p130 = scmp.lt.s32.totalorder %s11, 5
      %p131 = pnand %p129, %p130
      %p132 = pneg %p131
      // Predicated region
      $region9: #{bilstm_forward.6} parent=5 // pred_check
        _
      $region10: #{bilstm_forward.6} parent=5 // pred_check_branch
        %134 = sbr.rel (%p131) target = $region12
      $region11: #{bilstm_forward.6} parent=5 // pred_region
        %s135 = ssub.s32 %s11, 1
      $region12: #{bilstm_forward.6} parent=5 // pred_fallthru
        _
      %p136 = scmp.lt.s32.totalorder %s11, 4
      // Predicated region
      $region13: #{bilstm_forward.6} parent=5 // pred_check
        %p137 = pneg %p136
      $region14: #{bilstm_forward.6} parent=5 // pred_check_branch
        %139 = sbr.rel (%p137) target = $region16
      $region15: #{bilstm_forward.6} parent=5 // pred_region
        // Predicated region
        $region17: #{bilstm_forward.6} parent=15 // pred_check
          %p140 = pneg %p53
        $region18: #{bilstm_forward.6} parent=15 // pred_check_branch
          %142 = sbr.rel (%p140) target = $region20
        $region19: #{bilstm_forward.6} parent=15 // pred_region
          %s143 = smul.u32 %s19, 2
          %s144 = ssub.s32 1, %s143
          %s145 = smul.u32 %s18, %s144
          %s146 = sadd.s32 %s19, %s145
          %s147 = smul.u32 4, %s146
          %p148 = scmp.lt.s32.totalorder %s18, 1
          %s149 = scalar_select %p148, %s18, 1
          %p150 = scmp.lt.s32.totalorder %s147, 7
          %s151 = scalar_select %p150, %s147, 7
          %s152 = smul.addr %s151, 4
          %s153 = smul.addr %s149, 32
          %s154 = sadd.s32 %s152, %s153
          %s155 = smul.addr %s154, 2
          %s156 = scalar_lea.vmem %s0, %s155
          %s157 = smul.u32 %s19, 2
          %s158 = ssub.s32 1, %s157
          %s159 = smul.u32 %s18, %s158
          %s160 = sadd.s32 %s19, %s159
          %s161 = smul.u32 4, %s160
        $region20: #{bilstm_forward.6} parent=15 // pred_fallthru
          _
        // Predicated region
        $region21: #{bilstm_forward.6} parent=15 // pred_check
          %p162 = pneg %p79
        $region22: #{bilstm_forward.6} parent=15 // pred_check_branch
          %164 = sbr.rel (%p162) target = $region24
        $region23: #{bilstm_forward.6} parent=15 // pred_region
          %s165 = sand.u32 %s69, 1
          %s166 = scalar_lea.sflag [#allocation5], %s165
          %s167 = sand.u32 %s69, 1
          %s168 = smul.addr %s167, 512
          %s169 = scalar_lea.vmem [#allocation4], %s168
          %s171 = ssub.s32 8192, 8192
          %172 = vsyncadd %s166, %s171
          %s173 = smul.addr %s18, 64
          %s174 = smul.addr %s173, 128
          %s175 = scalar_lea.hbm %s1, %s174
          %s176 = sshll.u32 %s169, 4
          %s177 = int_to_ptr.vmem [resolvable:$true] %s176
          %182 = dma.hbm_to_vmem [thread:$0]  %s175, 8192, %s177, %s166, 512, 512, 32
        $region24: #{bilstm_forward.6} parent=15 // pred_fallthru
          _
      $region16: #{bilstm_forward.6} parent=5 // pred_fallthru
        _
      %p183 = scmp.le.s32.totalorder 1, %s11
      %p184 = scmp.lt.s32.totalorder %s11, 5
      %p185 = pnand %p183, %p184
      %p186 = pneg %p185
      // Predicated region
      $region25: #{bilstm_forward.6} parent=5 // pred_check
        _
      $region26: #{bilstm_forward.6} parent=5 // pred_check_branch
        %188 = sbr.rel (%p185) target = $region28
      $region27: #{bilstm_forward.6} parent=5 // pred_region
        %s189 = ssub.s32 %s11, 1
        %s190 = sand.u32 %s72, 1
        %s191 = scalar_lea.sflag [#allocation5], %s190
        %s192 = sand.u32 %s72, 1
        %s193 = smul.addr %s192, 512
        %s194 = scalar_lea.vmem [#allocation4], %s193
        // Predicated region
        $region29: #{bilstm_forward.6} parent=27 // pred_check
          %p195 = pneg %p85
        $region30: #{bilstm_forward.6} parent=27 // pred_check_branch
          %197 = sbr.rel (%p195) target = $region32
        $region31: #{bilstm_forward.6} parent=27 // pred_region
          %198 = dma.done %s191, 8192
        $region32: #{bilstm_forward.6} parent=27 // pred_fallthru
          _
        %s199 = smul.u32 %s21, 2
        %s200 = ssub.s32 1, %s199
        %s201 = smul.u32 %s20, %s200
        %s202 = sadd.s32 %s21, %s201
        %s203 = smul.u32 4, %s202
        %p204 = scmp.lt.s32.totalorder %s20, 1
        %s205 = scalar_select %p204, %s20, 1
        %p206 = scmp.lt.s32.totalorder %s203, 7
        %s207 = scalar_select %p206, %s203, 7
        %s208 = smul.addr %s207, 4
        %s209 = smul.addr %s205, 32
        %s210 = sadd.s32 %s208, %s209
        %s211 = smul.addr %s210, 2
        %s212 = scalar_lea.vmem %s0, %s211
        %p213 = pneg %p59
        %p214 = pneg %p56
        %s215 = sand.u32 %s72, 1
        %s216 = scalar_lea.sflag [#allocation5], %s215
        %s217 = sand.u32 %s72, 1
        %s218 = smul.addr %s217, 512
        %s219 = scalar_lea.vmem [#allocation4], %s218
        %p220 = pneg %p85
        %p221 = pneg %p82
        %p222 = pneg %p121
        %p223 = pneg %p118
        %s224 = smul.u32 %s21, 2
        %s225 = ssub.s32 1, %s224
        %s226 = smul.u32 %s20, %s225
        %s227 = sadd.s32 %s21, %s226
        %s228 = smul.u32 4, %s227
        %p229 = scmp.lt.s32.totalorder %s20, 1
        %s230 = scalar_select %p229, %s20, 1
        %p231 = scmp.lt.s32.totalorder %s228, 7
        %s232 = scalar_select %p231, %s228, 7
        %s233 = smul.addr %s230, 8
        %s234 = sadd.s32 %s232, %s233
        %s235 = smul.addr %s234, 2
        %s236 = scalar_lea.vmem %s2, %s235
        %s237 = smul.u32 %s21, 2
        %s238 = ssub.s32 1, %s237
        %s239 = smul.u32 %s20, %s238
        %s240 = sadd.s32 %s21, %s239
        %s241 = smul.u32 4, %s240
        %p242 = scmp.lt.s32.totalorder %s20, 1
        %s243 = scalar_select %p242, %s20, 1
        %p244 = scmp.lt.s32.totalorder %s241, 7
        %s245 = scalar_select %p244, %s241, 7
        %s246 = smul.addr %s245, 4
        %s247 = smul.addr %s243, 32
        %s248 = sadd.s32 %s246, %s247
        %s249 = smul.addr %s248, 2
        %s250 = scalar_lea.vmem %s0, %s249
        %s251 = smul.u32 %s21, 2
        %s252 = ssub.s32 1, %s251
        %s253 = smul.u32 %s20, %s252
        %s254 = sadd.s32 %s21, %s253
        %s255 = smul.u32 4, %s254
        %s256 = smul.u32 %s21, 2
        %s257 = ssub.s32 1, %s256
        %s258 = smul.u32 %s20, %s257
        %s259 = sadd.s32 %s21, %s258
        %s260 = smul.u32 4, %s259
        %p261 = scmp.lt.s32.totalorder %s20, 1
        %s262 = scalar_select %p261, %s20, 1
        %p263 = scmp.lt.s32.totalorder %s260, 7
        %s264 = scalar_select %p263, %s260, 7
        %s265 = smul.addr %s262, 8
        %s266 = sadd.s32 %s264, %s265
        %s267 = smul.addr %s266, 2
        %s268 = scalar_lea.vmem %s2, %s267
        %s269 = smul.u32 %s21, 2
        %s270 = ssub.s32 1, %s269
        %s271 = smul.u32 %s20, %s270
        %s272 = sadd.s32 %s21, %s271
        %s273 = smul.u32 4, %s272
        %p274 = scmp.eq.s32.totalorder %s21, 0
        // Predicated region
        $region33: #{bilstm_forward.6} parent=27 // pred_check
          %p275 = pneg %p274
        $region34: #{bilstm_forward.6} parent=27 // pred_check_branch
          %277 = sbr.rel (%p275) target = $region36
        $region35: #{bilstm_forward.6} parent=27 // pred_region
          %s278 = smul.u32 %s20, 2
          %s279 = scalar_lea.vmem [#allocation2], %s278
          %280 = vst [vmem:[%s279] sm:$0x3] 0.0
          %s281 = scalar_lea.vmem [#allocation3], %s278
          %282 = vst [vmem:[%s281] sm:$0x3] 0.0
        $region36: #{bilstm_forward.6} parent=27 // pred_fallthru
          _
        %v283 = vld [vmem:[%s194] sm:$0xff]
        %v284 = vld [vmem:[%s194 + $0x8] sm:$0xff]
        %v285 = vld [vmem:[%s194 + $0x10] sm:$0xff]
        %v286 = vld [vmem:[%s194 + $0x18] sm:$0xff]
        %v287 = vld [vmem:[%s194 + $0x20] sm:$0xff]
        %v288 = vld [vmem:[%s194 + $0x28] sm:$0xff]
        %v289 = vld [vmem:[%s194 + $0x30] sm:$0xff]
        %v290 = vld [vmem:[%s194 + $0x38] sm:$0xff]
        %v291 = vld [vmem:[%s194 + $0x40] sm:$0xff]
        %v292 = vld [vmem:[%s194 + $0x48] sm:$0xff]
        %v293 = vld [vmem:[%s194 + $0x50] sm:$0xff]
        %v294 = vld [vmem:[%s194 + $0x58] sm:$0xff]
        %v295 = vld [vmem:[%s194 + $0x60] sm:$0xff]
        %v296 = vld [vmem:[%s194 + $0x68] sm:$0xff]
        %v297 = vld [vmem:[%s194 + $0x70] sm:$0xff]
        %v298 = vld [vmem:[%s194 + $0x78] sm:$0xff]
        %v299 = vld [vmem:[%s194 + $0x80] sm:$0xff]
        %v300 = vld [vmem:[%s194 + $0x88] sm:$0xff]
        %v301 = vld [vmem:[%s194 + $0x90] sm:$0xff]
        %v302 = vld [vmem:[%s194 + $0x98] sm:$0xff]
        %v303 = vld [vmem:[%s194 + $0xa0] sm:$0xff]
        %v304 = vld [vmem:[%s194 + $0xa8] sm:$0xff]
        %v305 = vld [vmem:[%s194 + $0xb0] sm:$0xff]
        %v306 = vld [vmem:[%s194 + $0xb8] sm:$0xff]
        %v307 = vld [vmem:[%s194 + $0xc0] sm:$0xff]
        %v308 = vld [vmem:[%s194 + $0xc8] sm:$0xff]
        %v309 = vld [vmem:[%s194 + $0xd0] sm:$0xff]
        %v310 = vld [vmem:[%s194 + $0xd8] sm:$0xff]
        %v311 = vld [vmem:[%s194 + $0xe0] sm:$0xff]
        %v312 = vld [vmem:[%s194 + $0xe8] sm:$0xff]
        %v313 = vld [vmem:[%s194 + $0xf0] sm:$0xff]
        %v314 = vld [vmem:[%s194 + $0xf8] sm:$0xff]
        %v315 = vld [vmem:[%s194 + $0x100] sm:$0xff]
        %v316 = vld [vmem:[%s194 + $0x108] sm:$0xff]
        %v317 = vld [vmem:[%s194 + $0x110] sm:$0xff]
        %v318 = vld [vmem:[%s194 + $0x118] sm:$0xff]
        %v319 = vld [vmem:[%s194 + $0x120] sm:$0xff]
        %v320 = vld [vmem:[%s194 + $0x128] sm:$0xff]
        %v321 = vld [vmem:[%s194 + $0x130] sm:$0xff]
        %v322 = vld [vmem:[%s194 + $0x138] sm:$0xff]
        %v323 = vld [vmem:[%s194 + $0x140] sm:$0xff]
        %v324 = vld [vmem:[%s194 + $0x148] sm:$0xff]
        %v325 = vld [vmem:[%s194 + $0x150] sm:$0xff]
        %v326 = vld [vmem:[%s194 + $0x158] sm:$0xff]
        %v327 = vld [vmem:[%s194 + $0x160] sm:$0xff]
        %v328 = vld [vmem:[%s194 + $0x168] sm:$0xff]
        %v329 = vld [vmem:[%s194 + $0x170] sm:$0xff]
        %v330 = vld [vmem:[%s194 + $0x178] sm:$0xff]
        %v331 = vld [vmem:[%s194 + $0x180] sm:$0xff]
        %v332 = vld [vmem:[%s194 + $0x188] sm:$0xff]
        %v333 = vld [vmem:[%s194 + $0x190] sm:$0xff]
        %v334 = vld [vmem:[%s194 + $0x198] sm:$0xff]
        %v335 = vld [vmem:[%s194 + $0x1a0] sm:$0xff]
        %v336 = vld [vmem:[%s194 + $0x1a8] sm:$0xff]
        %v337 = vld [vmem:[%s194 + $0x1b0] sm:$0xff]
        %v338 = vld [vmem:[%s194 + $0x1b8] sm:$0xff]
        %v339 = vld [vmem:[%s194 + $0x1c0] sm:$0xff]
        %v340 = vld [vmem:[%s194 + $0x1c8] sm:$0xff]
        %v341 = vld [vmem:[%s194 + $0x1d0] sm:$0xff]
        %v342 = vld [vmem:[%s194 + $0x1d8] sm:$0xff]
        %v343 = vld [vmem:[%s194 + $0x1e0] sm:$0xff]
        %v344 = vld [vmem:[%s194 + $0x1e8] sm:$0xff]
        %v345 = vld [vmem:[%s194 + $0x1f0] sm:$0xff]
        %v346 = vld [vmem:[%s194 + $0x1f8] sm:$0xff]
        %s347 = smul.u32 %s20, 2
        %s348 = scalar_lea.vmem [#allocation2], %s347
        %v349 = vld [vmem:[%s348] sm:$0x3]
        %s350 = scalar_lea.vmem [#allocation3], %s347
        %v351 = vld [vmem:[%s350] sm:$0x3]
        %s352 = smul.u32 %s20, 3
        %s353 = smul.u32 %s352, 4
        %s354 = smul.addr %s353, 2
        %s355 = scalar_lea.vmem %s250, %s354
        %v356 = vld [vmem:[%s355] sm:$0xff]
        %357 = vmatprep.subr.mxu0 %v344
        %358 = vmatpush1.msra.mxu0 %v343
        %359 = vmatprep.subr.mxu0 %v340
        %360 = vmatpush1.msra.mxu0 %v339
        %361 = vmatprep.subr.mxu0 %v336
        %362 = vmatpush1.msra.mxu0 %v335
        %363 = vmatprep.subr.mxu0 %v332
        %364 = vmatpush1.msra.mxu0 %v331
        %365 = vmatprep.subr.mxu0 %v328
        %366 = vmatpush1.msra.mxu0 %v327
        %367 = vmatprep.subr.mxu0 %v324
        %368 = vmatpush1.msra.mxu0 %v323
        %369 = vmatprep.subr.mxu0 %v320
        %370 = vmatpush1.msra.mxu0 %v319
        %371 = vmatprep.subr.mxu0 %v316
        %372 = vmatpush1.msra.mxu0 %v315
        %373 = vmatprep.subr.mxu0 %v312
        %374 = vmatpush1.msra.mxu0 %v311
        %375 = vmatprep.subr.mxu0 %v308
        %376 = vmatpush1.msra.mxu0 %v307
        %377 = vmatprep.subr.mxu0 %v304
        %378 = vmatpush1.msra.mxu0 %v303
        %379 = vmatprep.subr.mxu0 %v300
        %380 = vmatpush1.msra.mxu0 %v299
        %381 = vmatprep.subr.mxu0 %v296
        %382 = vmatpush1.msra.mxu0 %v295
        %383 = vmatprep.subr.mxu0 %v292
        %384 = vmatpush1.msra.mxu0 %v291
        %385 = vmatprep.subr.mxu0 %v288
        %386 = vmatpush1.msra.mxu0 %v287
        %387 = vmatprep.subr.mxu0 %v284
        %388 = vmatpush1.msra.mxu0 %v283
        %389 = vmatprep.subr.mxu0 0.0
        %390 = vmatpush2.msra.mxu0 0.0
        %391 = vmatprep.subr.mxu0 0.0
        %392 = vmatpush2.msra.mxu0 0.0
        %393 = vmatprep.subr.mxu0 0.0
        %394 = vmatpush2.msra.mxu0 0.0
        %395 = vmatprep.subr.mxu0 0.0
        %396 = vmatpush2.msra.mxu0 0.0
        %397 = vmatprep.subr.mxu0 0.0
        %398 = vmatpush2.msra.mxu0 0.0
        %399 = vmatprep.subr.mxu0 0.0
        %400 = vmatpush2.msra.mxu0 0.0
        %401 = vmatprep.subr.mxu0 0.0
        %402 = vmatpush2.msra.mxu0 0.0
        %403 = vmatprep.subr.mxu0 0.0
        %404 = vmatpush2.msra.mxu0 0.0
        %405 = vmatprep.subr.mxu0 0.0
        %406 = vmatpush2.msra.mxu0 0.0
        %407 = vmatprep.subr.mxu0 0.0
        %408 = vmatpush2.msra.mxu0 0.0
        %409 = vmatprep.subr.mxu0 0.0
        %410 = vmatpush2.msra.mxu0 0.0
        %411 = vmatprep.subr.mxu0 0.0
        %412 = vmatpush2.msra.mxu0 0.0
        %413 = vmatprep.subr.mxu0 0.0
        %414 = vmatpush2.msra.mxu0 0.0
        %415 = vmatprep.subr.mxu0 0.0
        %416 = vmatpush2.msra.mxu0 0.0
        %417 = vmatprep.subr.mxu0 0.0
        %418 = vmatpush2.msra.mxu0 0.0
        %419 = vmatprep.subr.mxu0 0.0
        %420 = vmatpush2.msra.mxu0 0.0
        %421 = vmatprep.mubr.f32.mxu0 0.0
        %422 = vmatmul.mubr.f32.gmra.mxu0 %v349
        %v423 = vpop.f32.mrf.mxu0
        %v424 = vadd.f32 0.0, %v423
        %v425 = vpop.f32.mrf.mxu0
        %v426 = vadd.f32 0.0, %v425
        %427 = vdwg.mxu0
        %428 = vmatprep.subr.mxu0 %v346
        %429 = vmatpush1.msra.mxu0 %v345
        %430 = vmatprep.subr.mxu0 %v342
        %431 = vmatpush1.msra.mxu0 %v341
        %432 = vmatprep.subr.mxu0 %v338
        %433 = vmatpush1.msra.mxu0 %v337
        %434 = vmatprep.subr.mxu0 %v334
        %435 = vmatpush1.msra.mxu0 %v333
        %436 = vmatprep.subr.mxu0 %v330
        %437 = vmatpush1.msra.mxu0 %v329
        %438 = vmatprep.subr.mxu0 %v326
        %439 = vmatpush1.msra.mxu0 %v325
        %440 = vmatprep.subr.mxu0 %v322
        %441 = vmatpush1.msra.mxu0 %v321
        %442 = vmatprep.subr.mxu0 %v318
        %443 = vmatpush1.msra.mxu0 %v317
        %444 = vmatprep.subr.mxu0 %v314
        %445 = vmatpush1.msra.mxu0 %v313
        %446 = vmatprep.subr.mxu0 %v310
        %447 = vmatpush1.msra.mxu0 %v309
        %448 = vmatprep.subr.mxu0 %v306
        %449 = vmatpush1.msra.mxu0 %v305
        %450 = vmatprep.subr.mxu0 %v302
        %451 = vmatpush1.msra.mxu0 %v301
        %452 = vmatprep.subr.mxu0 %v298
        %453 = vmatpush1.msra.mxu0 %v297
        %454 = vmatprep.subr.mxu0 %v294
        %455 = vmatpush1.msra.mxu0 %v293
        %456 = vmatprep.subr.mxu0 %v290
        %457 = vmatpush1.msra.mxu0 %v289
        %458 = vmatprep.subr.mxu0 %v286
        %459 = vmatpush1.msra.mxu0 %v285
        %460 = vmatprep.subr.mxu0 0.0
        %461 = vmatpush2.msra.mxu0 0.0
        %462 = vmatprep.subr.mxu0 0.0
        %463 = vmatpush2.msra.mxu0 0.0
        %464 = vmatprep.subr.mxu0 0.0
        %465 = vmatpush2.msra.mxu0 0.0
        %466 = vmatprep.subr.mxu0 0.0
        %467 = vmatpush2.msra.mxu0 0.0
        %468 = vmatprep.subr.mxu0 0.0
        %469 = vmatpush2.msra.mxu0 0.0
        %470 = vmatprep.subr.mxu0 0.0
        %471 = vmatpush2.msra.mxu0 0.0
        %472 = vmatprep.subr.mxu0 0.0
        %473 = vmatpush2.msra.mxu0 0.0
        %474 = vmatprep.subr.mxu0 0.0
        %475 = vmatpush2.msra.mxu0 0.0
        %476 = vmatprep.subr.mxu0 0.0
        %477 = vmatpush2.msra.mxu0 0.0
        %478 = vmatprep.subr.mxu0 0.0
        %479 = vmatpush2.msra.mxu0 0.0
        %480 = vmatprep.subr.mxu0 0.0
        %481 = vmatpush2.msra.mxu0 0.0
        %482 = vmatprep.subr.mxu0 0.0
        %483 = vmatpush2.msra.mxu0 0.0
        %484 = vmatprep.subr.mxu0 0.0
        %485 = vmatpush2.msra.mxu0 0.0
        %486 = vmatprep.subr.mxu0 0.0
        %487 = vmatpush2.msra.mxu0 0.0
        %488 = vmatprep.subr.mxu0 0.0
        %489 = vmatpush2.msra.mxu0 0.0
        %490 = vmatprep.subr.mxu0 0.0
        %491 = vmatpush2.msra.mxu0 0.0
        %492 = vmatprep.mubr.f32.mxu0 0.0
        %493 = vmatmul.mubr.f32.gmra.mxu0 %v349
        %v494 = vpop.f32.mrf.mxu0
        %v495 = vadd.f32 0.0, %v494
        %v496 = vpop.f32.mrf.mxu0
        %v497 = vadd.f32 0.0, %v496
        %498 = vdwg.mxu0
        %v503 = vcombine.low %v424, %v426
        %v504 = vcombine.low %v495, %v497
        %v506 = vunpack.c.l.s4 1983009808
        %v507 = vunpack.c.0.s8 %v506
        %v508 = vlaneseq
        %v509 = vshrl.u32 %v508, 7
        %v510 = vsub.s32 %v507, %v509
        %v511 = vrot.slane %v503, %v510
        %v513 = vunpack.c.l.s4 1983009808
        %v514 = vunpack.c.0.s8 %v513
        %v515 = vlaneseq
        %v516 = vshrl.u32 %v515, 7
        %v517 = vsub.s32 %v514, %v516
        %v518 = vrot.slane %v504, %v517
        %v519 = vcombine.low %v511, %v518
        %v521 = vadd.f32 %v356, %v519
        %v522 = vxor.u32 %v521, 2147483648
        %v523 = vmul.f32 %v522, 1.442695
        %v524 = vpow.pop %v523
        %v525 = vadd.f32 %v524, 1.0
        %v526 = vrcp.pop %v525
        %v527 = vmul.f32 1.0, %v526
        %v529 = vrot.slane %v521, 2
        %v531 = vxor.u32 %v529, 2147483648
        %v532 = vmul.f32 %v531, 1.442695
        %v533 = vpow.pop %v532
        %v534 = vadd.f32 %v533, 1.0
        %v535 = vrcp.pop %v534
        %v536 = vmul.f32 1.0, %v535
        %v537 = vrot.slane %v521, 4
        %v539 = vtanh.pop %v537
        %v540 = vrot.slane %v521, 6
        %v542 = vxor.u32 %v540, 2147483648
        %v543 = vmul.f32 %v542, 1.442695
        %v544 = vpow.pop %v543
        %v545 = vadd.f32 %v544, 1.0
        %v546 = vrcp.pop %v545
        %v547 = vmul.f32 1.0, %v546
        %v548 = vmul.f32 %v536, %v351
        %v549 = vmul.f32 %v527, %v539
        %v550 = vadd.f32 %v548, %v549
        %v551 = vtanh.pop %v550
        %v552 = vmul.f32 %v547, %v551
        %s553 = smul.u32 %s352, 2
        %s554 = scalar_lea.vmem %s268, %s553
        %555 = vst [vmem:[%s554] sm:$0x3] %v552
        %s556 = sadd.s32 %s20, 1
        %s557 = smul.u32 %s556, 4
        %s558 = smul.addr %s557, 2
        %s559 = scalar_lea.vmem %s250, %s558
        %v560 = vld [vmem:[%s559] sm:$0xff]
        %561 = vmatprep.subr.mxu0 %v344
        %562 = vmatpush1.msra.mxu0 %v343
        %563 = vmatprep.subr.mxu0 %v340
        %564 = vmatpush1.msra.mxu0 %v339
        %565 = vmatprep.subr.mxu0 %v336
        %566 = vmatpush1.msra.mxu0 %v335
        %567 = vmatprep.subr.mxu0 %v332
        %568 = vmatpush1.msra.mxu0 %v331
        %569 = vmatprep.subr.mxu0 %v328
        %570 = vmatpush1.msra.mxu0 %v327
        %571 = vmatprep.subr.mxu0 %v324
        %572 = vmatpush1.msra.mxu0 %v323
        %573 = vmatprep.subr.mxu0 %v320
        %574 = vmatpush1.msra.mxu0 %v319
        %575 = vmatprep.subr.mxu0 %v316
        %576 = vmatpush1.msra.mxu0 %v315
        %577 = vmatprep.subr.mxu0 %v312
        %578 = vmatpush1.msra.mxu0 %v311
        %579 = vmatprep.subr.mxu0 %v308
        %580 = vmatpush1.msra.mxu0 %v307
        %581 = vmatprep.subr.mxu0 %v304
        %582 = vmatpush1.msra.mxu0 %v303
        %583 = vmatprep.subr.mxu0 %v300
        %584 = vmatpush1.msra.mxu0 %v299
        %585 = vmatprep.subr.mxu0 %v296
        %586 = vmatpush1.msra.mxu0 %v295
        %587 = vmatprep.subr.mxu0 %v292
        %588 = vmatpush1.msra.mxu0 %v291
        %589 = vmatprep.subr.mxu0 %v288
        %590 = vmatpush1.msra.mxu0 %v287
        %591 = vmatprep.subr.mxu0 %v284
        %592 = vmatpush1.msra.mxu0 %v283
        %593 = vmatprep.subr.mxu0 0.0
        %594 = vmatpush2.msra.mxu0 0.0
        %595 = vmatprep.subr.mxu0 0.0
        %596 = vmatpush2.msra.mxu0 0.0
        %597 = vmatprep.subr.mxu0 0.0
        %598 = vmatpush2.msra.mxu0 0.0
        %599 = vmatprep.subr.mxu0 0.0
        %600 = vmatpush2.msra.mxu0 0.0
        %601 = vmatprep.subr.mxu0 0.0
        %602 = vmatpush2.msra.mxu0 0.0
        %603 = vmatprep.subr.mxu0 0.0
        %604 = vmatpush2.msra.mxu0 0.0
        %605 = vmatprep.subr.mxu0 0.0
        %606 = vmatpush2.msra.mxu0 0.0
        %607 = vmatprep.subr.mxu0 0.0
        %608 = vmatpush2.msra.mxu0 0.0
        %609 = vmatprep.subr.mxu0 0.0
        %610 = vmatpush2.msra.mxu0 0.0
        %611 = vmatprep.subr.mxu0 0.0
        %612 = vmatpush2.msra.mxu0 0.0
        %613 = vmatprep.subr.mxu0 0.0
        %614 = vmatpush2.msra.mxu0 0.0
        %615 = vmatprep.subr.mxu0 0.0
        %616 = vmatpush2.msra.mxu0 0.0
        %617 = vmatprep.subr.mxu0 0.0
        %618 = vmatpush2.msra.mxu0 0.0
        %619 = vmatprep.subr.mxu0 0.0
        %620 = vmatpush2.msra.mxu0 0.0
        %621 = vmatprep.subr.mxu0 0.0
        %622 = vmatpush2.msra.mxu0 0.0
        %623 = vmatprep.subr.mxu0 0.0
        %624 = vmatpush2.msra.mxu0 0.0
        %625 = vmatprep.mubr.f32.mxu0 0.0
        %626 = vmatmul.mubr.f32.gmra.mxu0 %v552
        %v627 = vpop.f32.mrf.mxu0
        %v628 = vadd.f32 0.0, %v627
        %v629 = vpop.f32.mrf.mxu0
        %v630 = vadd.f32 0.0, %v629
        %631 = vdwg.mxu0
        %632 = vmatprep.subr.mxu0 %v346
        %633 = vmatpush1.msra.mxu0 %v345
        %634 = vmatprep.subr.mxu0 %v342
        %635 = vmatpush1.msra.mxu0 %v341
        %636 = vmatprep.subr.mxu0 %v338
        %637 = vmatpush1.msra.mxu0 %v337
        %638 = vmatprep.subr.mxu0 %v334
        %639 = vmatpush1.msra.mxu0 %v333
        %640 = vmatprep.subr.mxu0 %v330
        %641 = vmatpush1.msra.mxu0 %v329
        %642 = vmatprep.subr.mxu0 %v326
        %643 = vmatpush1.msra.mxu0 %v325
        %644 = vmatprep.subr.mxu0 %v322
        %645 = vmatpush1.msra.mxu0 %v321
        %646 = vmatprep.subr.mxu0 %v318
        %647 = vmatpush1.msra.mxu0 %v317
        %648 = vmatprep.subr.mxu0 %v314
        %649 = vmatpush1.msra.mxu0 %v313
        %650 = vmatprep.subr.mxu0 %v310
        %651 = vmatpush1.msra.mxu0 %v309
        %652 = vmatprep.subr.mxu0 %v306
        %653 = vmatpush1.msra.mxu0 %v305
        %654 = vmatprep.subr.mxu0 %v302
        %655 = vmatpush1.msra.mxu0 %v301
        %656 = vmatprep.subr.mxu0 %v298
        %657 = vmatpush1.msra.mxu0 %v297
        %658 = vmatprep.subr.mxu0 %v294
        %659 = vmatpush1.msra.mxu0 %v293
        %660 = vmatprep.subr.mxu0 %v290
        %661 = vmatpush1.msra.mxu0 %v289
        %662 = vmatprep.subr.mxu0 %v286
        %663 = vmatpush1.msra.mxu0 %v285
        %664 = vmatprep.subr.mxu0 0.0
        %665 = vmatpush2.msra.mxu0 0.0
        %666 = vmatprep.subr.mxu0 0.0
        %667 = vmatpush2.msra.mxu0 0.0
        %668 = vmatprep.subr.mxu0 0.0
        %669 = vmatpush2.msra.mxu0 0.0
        %670 = vmatprep.subr.mxu0 0.0
        %671 = vmatpush2.msra.mxu0 0.0
        %672 = vmatprep.subr.mxu0 0.0
        %673 = vmatpush2.msra.mxu0 0.0
        %674 = vmatprep.subr.mxu0 0.0
        %675 = vmatpush2.msra.mxu0 0.0
        %676 = vmatprep.subr.mxu0 0.0
        %677 = vmatpush2.msra.mxu0 0.0
        %678 = vmatprep.subr.mxu0 0.0
        %679 = vmatpush2.msra.mxu0 0.0
        %680 = vmatprep.subr.mxu0 0.0
        %681 = vmatpush2.msra.mxu0 0.0
        %682 = vmatprep.subr.mxu0 0.0
        %683 = vmatpush2.msra.mxu0 0.0
        %684 = vmatprep.subr.mxu0 0.0
        %685 = vmatpush2.msra.mxu0 0.0
        %686 = vmatprep.subr.mxu0 0.0
        %687 = vmatpush2.msra.mxu0 0.0
        %688 = vmatprep.subr.mxu0 0.0
        %689 = vmatpush2.msra.mxu0 0.0
        %690 = vmatprep.subr.mxu0 0.0
        %691 = vmatpush2.msra.mxu0 0.0
        %692 = vmatprep.subr.mxu0 0.0
        %693 = vmatpush2.msra.mxu0 0.0
        %694 = vmatprep.subr.mxu0 0.0
        %695 = vmatpush2.msra.mxu0 0.0
        %696 = vmatprep.mubr.f32.mxu0 0.0
        %697 = vmatmul.mubr.f32.gmra.mxu0 %v552
        %v698 = vpop.f32.mrf.mxu0
        %v699 = vadd.f32 0.0, %v698
        %v700 = vpop.f32.mrf.mxu0
        %v701 = vadd.f32 0.0, %v700
        %702 = vdwg.mxu0
        %v707 = vcombine.low %v628, %v630
        %v708 = vcombine.low %v699, %v701
        %v710 = vunpack.c.l.s4 1983009808
        %v711 = vunpack.c.0.s8 %v710
        %v712 = vlaneseq
        %v713 = vshrl.u32 %v712, 7
        %v714 = vsub.s32 %v711, %v713
        %v715 = vrot.slane %v707, %v714
        %v717 = vunpack.c.l.s4 1983009808
        %v718 = vunpack.c.0.s8 %v717
        %v719 = vlaneseq
        %v720 = vshrl.u32 %v719, 7
        %v721 = vsub.s32 %v718, %v720
        %v722 = vrot.slane %v708, %v721
        %v723 = vcombine.low %v715, %v722
        %v725 = vadd.f32 %v560, %v723
        %v726 = vxor.u32 %v725, 2147483648
        %v727 = vmul.f32 %v726, 1.442695
        %v728 = vpow.pop %v727
        %v729 = vadd.f32 %v728, 1.0
        %v730 = vrcp.pop %v729
        %v731 = vmul.f32 1.0, %v730
        %v733 = vrot.slane %v725, 2
        %v735 = vxor.u32 %v733, 2147483648
        %v736 = vmul.f32 %v735, 1.442695
        %v737 = vpow.pop %v736
        %v738 = vadd.f32 %v737, 1.0
        %v739 = vrcp.pop %v738
        %v740 = vmul.f32 1.0, %v739
        %v741 = vrot.slane %v725, 4
        %v743 = vtanh.pop %v741
        %v744 = vrot.slane %v725, 6
        %v746 = vxor.u32 %v744, 2147483648
        %v747 = vmul.f32 %v746, 1.442695
        %v748 = vpow.pop %v747
        %v749 = vadd.f32 %v748, 1.0
        %v750 = vrcp.pop %v749
        %v751 = vmul.f32 1.0, %v750
        %v752 = vmul.f32 %v740, %v550
        %v753 = vmul.f32 %v731, %v743
        %v754 = vadd.f32 %v752, %v753
        %v755 = vtanh.pop %v754
        %v756 = vmul.f32 %v751, %v755
        %s757 = smul.u32 %s556, 2
        %s758 = scalar_lea.vmem %s268, %s757
        %759 = vst [vmem:[%s758] sm:$0x3] %v756
        %s760 = ssub.s32 2, %s20
        %s761 = smul.u32 %s760, 4
        %s762 = smul.addr %s761, 2
        %s763 = scalar_lea.vmem %s250, %s762
        %v764 = vld [vmem:[%s763] sm:$0xff]
        %765 = vmatprep.subr.mxu0 %v344
        %766 = vmatpush1.msra.mxu0 %v343
        %767 = vmatprep.subr.mxu0 %v340
        %768 = vmatpush1.msra.mxu0 %v339
        %769 = vmatprep.subr.mxu0 %v336
        %770 = vmatpush1.msra.mxu0 %v335
        %771 = vmatprep.subr.mxu0 %v332
        %772 = vmatpush1.msra.mxu0 %v331
        %773 = vmatprep.subr.mxu0 %v328
        %774 = vmatpush1.msra.mxu0 %v327
        %775 = vmatprep.subr.mxu0 %v324
        %776 = vmatpush1.msra.mxu0 %v323
        %777 = vmatprep.subr.mxu0 %v320
        %778 = vmatpush1.msra.mxu0 %v319
        %779 = vmatprep.subr.mxu0 %v316
        %780 = vmatpush1.msra.mxu0 %v315
        %781 = vmatprep.subr.mxu0 %v312
        %782 = vmatpush1.msra.mxu0 %v311
        %783 = vmatprep.subr.mxu0 %v308
        %784 = vmatpush1.msra.mxu0 %v307
        %785 = vmatprep.subr.mxu0 %v304
        %786 = vmatpush1.msra.mxu0 %v303
        %787 = vmatprep.subr.mxu0 %v300
        %788 = vmatpush1.msra.mxu0 %v299
        %789 = vmatprep.subr.mxu0 %v296
        %790 = vmatpush1.msra.mxu0 %v295
        %791 = vmatprep.subr.mxu0 %v292
        %792 = vmatpush1.msra.mxu0 %v291
        %793 = vmatprep.subr.mxu0 %v288
        %794 = vmatpush1.msra.mxu0 %v287
        %795 = vmatprep.subr.mxu0 %v284
        %796 = vmatpush1.msra.mxu0 %v283
        %797 = vmatprep.subr.mxu0 0.0
        %798 = vmatpush2.msra.mxu0 0.0
        %799 = vmatprep.subr.mxu0 0.0
        %800 = vmatpush2.msra.mxu0 0.0
        %801 = vmatprep.subr.mxu0 0.0
        %802 = vmatpush2.msra.mxu0 0.0
        %803 = vmatprep.subr.mxu0 0.0
        %804 = vmatpush2.msra.mxu0 0.0
        %805 = vmatprep.subr.mxu0 0.0
        %806 = vmatpush2.msra.mxu0 0.0
        %807 = vmatprep.subr.mxu0 0.0
        %808 = vmatpush2.msra.mxu0 0.0
        %809 = vmatprep.subr.mxu0 0.0
        %810 = vmatpush2.msra.mxu0 0.0
        %811 = vmatprep.subr.mxu0 0.0
        %812 = vmatpush2.msra.mxu0 0.0
        %813 = vmatprep.subr.mxu0 0.0
        %814 = vmatpush2.msra.mxu0 0.0
        %815 = vmatprep.subr.mxu0 0.0
        %816 = vmatpush2.msra.mxu0 0.0
        %817 = vmatprep.subr.mxu0 0.0
        %818 = vmatpush2.msra.mxu0 0.0
        %819 = vmatprep.subr.mxu0 0.0
        %820 = vmatpush2.msra.mxu0 0.0
        %821 = vmatprep.subr.mxu0 0.0
        %822 = vmatpush2.msra.mxu0 0.0
        %823 = vmatprep.subr.mxu0 0.0
        %824 = vmatpush2.msra.mxu0 0.0
        %825 = vmatprep.subr.mxu0 0.0
        %826 = vmatpush2.msra.mxu0 0.0
        %827 = vmatprep.subr.mxu0 0.0
        %828 = vmatpush2.msra.mxu0 0.0
        %829 = vmatprep.mubr.f32.mxu0 0.0
        %830 = vmatmul.mubr.f32.gmra.mxu0 %v756
        %v831 = vpop.f32.mrf.mxu0
        %v832 = vadd.f32 0.0, %v831
        %v833 = vpop.f32.mrf.mxu0
        %v834 = vadd.f32 0.0, %v833
        %835 = vdwg.mxu0
        %836 = vmatprep.subr.mxu0 %v346
        %837 = vmatpush1.msra.mxu0 %v345
        %838 = vmatprep.subr.mxu0 %v342
        %839 = vmatpush1.msra.mxu0 %v341
        %840 = vmatprep.subr.mxu0 %v338
        %841 = vmatpush1.msra.mxu0 %v337
        %842 = vmatprep.subr.mxu0 %v334
        %843 = vmatpush1.msra.mxu0 %v333
        %844 = vmatprep.subr.mxu0 %v330
        %845 = vmatpush1.msra.mxu0 %v329
        %846 = vmatprep.subr.mxu0 %v326
        %847 = vmatpush1.msra.mxu0 %v325
        %848 = vmatprep.subr.mxu0 %v322
        %849 = vmatpush1.msra.mxu0 %v321
        %850 = vmatprep.subr.mxu0 %v318
        %851 = vmatpush1.msra.mxu0 %v317
        %852 = vmatprep.subr.mxu0 %v314
        %853 = vmatpush1.msra.mxu0 %v313
        %854 = vmatprep.subr.mxu0 %v310
        %855 = vmatpush1.msra.mxu0 %v309
        %856 = vmatprep.subr.mxu0 %v306
        %857 = vmatpush1.msra.mxu0 %v305
        %858 = vmatprep.subr.mxu0 %v302
        %859 = vmatpush1.msra.mxu0 %v301
        %860 = vmatprep.subr.mxu0 %v298
        %861 = vmatpush1.msra.mxu0 %v297
        %862 = vmatprep.subr.mxu0 %v294
        %863 = vmatpush1.msra.mxu0 %v293
        %864 = vmatprep.subr.mxu0 %v290
        %865 = vmatpush1.msra.mxu0 %v289
        %866 = vmatprep.subr.mxu0 %v286
        %867 = vmatpush1.msra.mxu0 %v285
        %868 = vmatprep.subr.mxu0 0.0
        %869 = vmatpush2.msra.mxu0 0.0
        %870 = vmatprep.subr.mxu0 0.0
        %871 = vmatpush2.msra.mxu0 0.0
        %872 = vmatprep.subr.mxu0 0.0
        %873 = vmatpush2.msra.mxu0 0.0
        %874 = vmatprep.subr.mxu0 0.0
        %875 = vmatpush2.msra.mxu0 0.0
        %876 = vmatprep.subr.mxu0 0.0
        %877 = vmatpush2.msra.mxu0 0.0
        %878 = vmatprep.subr.mxu0 0.0
        %879 = vmatpush2.msra.mxu0 0.0
        %880 = vmatprep.subr.mxu0 0.0
        %881 = vmatpush2.msra.mxu0 0.0
        %882 = vmatprep.subr.mxu0 0.0
        %883 = vmatpush2.msra.mxu0 0.0
        %884 = vmatprep.subr.mxu0 0.0
        %885 = vmatpush2.msra.mxu0 0.0
        %886 = vmatprep.subr.mxu0 0.0
        %887 = vmatpush2.msra.mxu0 0.0
        %888 = vmatprep.subr.mxu0 0.0
        %889 = vmatpush2.msra.mxu0 0.0
        %890 = vmatprep.subr.mxu0 0.0
        %891 = vmatpush2.msra.mxu0 0.0
        %892 = vmatprep.subr.mxu0 0.0
        %893 = vmatpush2.msra.mxu0 0.0
        %894 = vmatprep.subr.mxu0 0.0
        %895 = vmatpush2.msra.mxu0 0.0
        %896 = vmatprep.subr.mxu0 0.0
        %897 = vmatpush2.msra.mxu0 0.0
        %898 = vmatprep.subr.mxu0 0.0
        %899 = vmatpush2.msra.mxu0 0.0
        %900 = vmatprep.mubr.f32.mxu0 0.0
        %901 = vmatmul.mubr.f32.gmra.mxu0 %v756
        %v902 = vpop.f32.mrf.mxu0
        %v903 = vadd.f32 0.0, %v902
        %v904 = vpop.f32.mrf.mxu0
        %v905 = vadd.f32 0.0, %v904
        %906 = vdwg.mxu0
        %v911 = vcombine.low %v832, %v834
        %v912 = vcombine.low %v903, %v905
        %v914 = vunpack.c.l.s4 1983009808
        %v915 = vunpack.c.0.s8 %v914
        %v916 = vlaneseq
        %v917 = vshrl.u32 %v916, 7
        %v918 = vsub.s32 %v915, %v917
        %v919 = vrot.slane %v911, %v918
        %v921 = vunpack.c.l.s4 1983009808
        %v922 = vunpack.c.0.s8 %v921
        %v923 = vlaneseq
        %v924 = vshrl.u32 %v923, 7
        %v925 = vsub.s32 %v922, %v924
        %v926 = vrot.slane %v912, %v925
        %v927 = vcombine.low %v919, %v926
        %v929 = vadd.f32 %v764, %v927
        %v930 = vxor.u32 %v929, 2147483648
        %v931 = vmul.f32 %v930, 1.442695
        %v932 = vpow.pop %v931
        %v933 = vadd.f32 %v932, 1.0
        %v934 = vrcp.pop %v933
        %v935 = vmul.f32 1.0, %v934
        %v937 = vrot.slane %v929, 2
        %v939 = vxor.u32 %v937, 2147483648
        %v940 = vmul.f32 %v939, 1.442695
        %v941 = vpow.pop %v940
        %v942 = vadd.f32 %v941, 1.0
        %v943 = vrcp.pop %v942
        %v944 = vmul.f32 1.0, %v943
        %v945 = vrot.slane %v929, 4
        %v947 = vtanh.pop %v945
        %v948 = vrot.slane %v929, 6
        %v950 = vxor.u32 %v948, 2147483648
        %v951 = vmul.f32 %v950, 1.442695
        %v952 = vpow.pop %v951
        %v953 = vadd.f32 %v952, 1.0
        %v954 = vrcp.pop %v953
        %v955 = vmul.f32 1.0, %v954
        %v956 = vmul.f32 %v944, %v754
        %v957 = vmul.f32 %v935, %v947
        %v958 = vadd.f32 %v956, %v957
        %v959 = vtanh.pop %v958
        %v960 = vmul.f32 %v955, %v959
        %s961 = smul.u32 %s760, 2
        %s962 = scalar_lea.vmem %s268, %s961
        %963 = vst [vmem:[%s962] sm:$0x3] %v960
        %s964 = smul.u32 %s20, 4294967293
        %s965 = sadd.s32 %s964, 3
        %s966 = smul.u32 %s965, 4
        %s967 = smul.addr %s966, 2
        %s968 = scalar_lea.vmem %s250, %s967
        %v969 = vld [vmem:[%s968] sm:$0xff]
        %970 = vmatprep.subr.mxu0 %v344
        %971 = vmatpush1.msra.mxu0 %v343
        %972 = vmatprep.subr.mxu0 %v340
        %973 = vmatpush1.msra.mxu0 %v339
        %974 = vmatprep.subr.mxu0 %v336
        %975 = vmatpush1.msra.mxu0 %v335
        %976 = vmatprep.subr.mxu0 %v332
        %977 = vmatpush1.msra.mxu0 %v331
        %978 = vmatprep.subr.mxu0 %v328
        %979 = vmatpush1.msra.mxu0 %v327
        %980 = vmatprep.subr.mxu0 %v324
        %981 = vmatpush1.msra.mxu0 %v323
        %982 = vmatprep.subr.mxu0 %v320
        %983 = vmatpush1.msra.mxu0 %v319
        %984 = vmatprep.subr.mxu0 %v316
        %985 = vmatpush1.msra.mxu0 %v315
        %986 = vmatprep.subr.mxu0 %v312
        %987 = vmatpush1.msra.mxu0 %v311
        %988 = vmatprep.subr.mxu0 %v308
        %989 = vmatpush1.msra.mxu0 %v307
        %990 = vmatprep.subr.mxu0 %v304
        %991 = vmatpush1.msra.mxu0 %v303
        %992 = vmatprep.subr.mxu0 %v300
        %993 = vmatpush1.msra.mxu0 %v299
        %994 = vmatprep.subr.mxu0 %v296
        %995 = vmatpush1.msra.mxu0 %v295
        %996 = vmatprep.subr.mxu0 %v292
        %997 = vmatpush1.msra.mxu0 %v291
        %998 = vmatprep.subr.mxu0 %v288
        %999 = vmatpush1.msra.mxu0 %v287
        %1000 = vmatprep.subr.mxu0 %v284
        %1001 = vmatpush1.msra.mxu0 %v283
        %1002 = vmatprep.subr.mxu0 0.0
        %1003 = vmatpush2.msra.mxu0 0.0
        %1004 = vmatprep.subr.mxu0 0.0
        %1005 = vmatpush2.msra.mxu0 0.0
        %1006 = vmatprep.subr.mxu0 0.0
        %1007 = vmatpush2.msra.mxu0 0.0
        %1008 = vmatprep.subr.mxu0 0.0
        %1009 = vmatpush2.msra.mxu0 0.0
        %1010 = vmatprep.subr.mxu0 0.0
        %1011 = vmatpush2.msra.mxu0 0.0
        %1012 = vmatprep.subr.mxu0 0.0
        %1013 = vmatpush2.msra.mxu0 0.0
        %1014 = vmatprep.subr.mxu0 0.0
        %1015 = vmatpush2.msra.mxu0 0.0
        %1016 = vmatprep.subr.mxu0 0.0
        %1017 = vmatpush2.msra.mxu0 0.0
        %1018 = vmatprep.subr.mxu0 0.0
        %1019 = vmatpush2.msra.mxu0 0.0
        %1020 = vmatprep.subr.mxu0 0.0
        %1021 = vmatpush2.msra.mxu0 0.0
        %1022 = vmatprep.subr.mxu0 0.0
        %1023 = vmatpush2.msra.mxu0 0.0
        %1024 = vmatprep.subr.mxu0 0.0
        %1025 = vmatpush2.msra.mxu0 0.0
        %1026 = vmatprep.subr.mxu0 0.0
        %1027 = vmatpush2.msra.mxu0 0.0
        %1028 = vmatprep.subr.mxu0 0.0
        %1029 = vmatpush2.msra.mxu0 0.0
        %1030 = vmatprep.subr.mxu0 0.0
        %1031 = vmatpush2.msra.mxu0 0.0
        %1032 = vmatprep.subr.mxu0 0.0
        %1033 = vmatpush2.msra.mxu0 0.0
        %1034 = vmatprep.mubr.f32.mxu0 0.0
        %1035 = vmatmul.mubr.f32.gmra.mxu0 %v960
        %v1036 = vpop.f32.mrf.mxu0
        %v1037 = vadd.f32 0.0, %v1036
        %v1038 = vpop.f32.mrf.mxu0
        %v1039 = vadd.f32 0.0, %v1038
        %1040 = vdwg.mxu0
        %1041 = vmatprep.subr.mxu0 %v346
        %1042 = vmatpush1.msra.mxu0 %v345
        %1043 = vmatprep.subr.mxu0 %v342
        %1044 = vmatpush1.msra.mxu0 %v341
        %1045 = vmatprep.subr.mxu0 %v338
        %1046 = vmatpush1.msra.mxu0 %v337
        %1047 = vmatprep.subr.mxu0 %v334
        %1048 = vmatpush1.msra.mxu0 %v333
        %1049 = vmatprep.subr.mxu0 %v330
        %1050 = vmatpush1.msra.mxu0 %v329
        %1051 = vmatprep.subr.mxu0 %v326
        %1052 = vmatpush1.msra.mxu0 %v325
        %1053 = vmatprep.subr.mxu0 %v322
        %1054 = vmatpush1.msra.mxu0 %v321
        %1055 = vmatprep.subr.mxu0 %v318
        %1056 = vmatpush1.msra.mxu0 %v317
        %1057 = vmatprep.subr.mxu0 %v314
        %1058 = vmatpush1.msra.mxu0 %v313
        %1059 = vmatprep.subr.mxu0 %v310
        %1060 = vmatpush1.msra.mxu0 %v309
        %1061 = vmatprep.subr.mxu0 %v306
        %1062 = vmatpush1.msra.mxu0 %v305
        %1063 = vmatprep.subr.mxu0 %v302
        %1064 = vmatpush1.msra.mxu0 %v301
        %1065 = vmatprep.subr.mxu0 %v298
        %1066 = vmatpush1.msra.mxu0 %v297
        %1067 = vmatprep.subr.mxu0 %v294
        %1068 = vmatpush1.msra.mxu0 %v293
        %1069 = vmatprep.subr.mxu0 %v290
        %1070 = vmatpush1.msra.mxu0 %v289
        %1071 = vmatprep.subr.mxu0 %v286
        %1072 = vmatpush1.msra.mxu0 %v285
        %1073 = vmatprep.subr.mxu0 0.0
        %1074 = vmatpush2.msra.mxu0 0.0
        %1075 = vmatprep.subr.mxu0 0.0
        %1076 = vmatpush2.msra.mxu0 0.0
        %1077 = vmatprep.subr.mxu0 0.0
        %1078 = vmatpush2.msra.mxu0 0.0
        %1079 = vmatprep.subr.mxu0 0.0
        %1080 = vmatpush2.msra.mxu0 0.0
        %1081 = vmatprep.subr.mxu0 0.0
        %1082 = vmatpush2.msra.mxu0 0.0
        %1083 = vmatprep.subr.mxu0 0.0
        %1084 = vmatpush2.msra.mxu0 0.0
        %1085 = vmatprep.subr.mxu0 0.0
        %1086 = vmatpush2.msra.mxu0 0.0
        %1087 = vmatprep.subr.mxu0 0.0
        %1088 = vmatpush2.msra.mxu0 0.0
        %1089 = vmatprep.subr.mxu0 0.0
        %1090 = vmatpush2.msra.mxu0 0.0
        %1091 = vmatprep.subr.mxu0 0.0
        %1092 = vmatpush2.msra.mxu0 0.0
        %1093 = vmatprep.subr.mxu0 0.0
        %1094 = vmatpush2.msra.mxu0 0.0
        %1095 = vmatprep.subr.mxu0 0.0
        %1096 = vmatpush2.msra.mxu0 0.0
        %1097 = vmatprep.subr.mxu0 0.0
        %1098 = vmatpush2.msra.mxu0 0.0
        %1099 = vmatprep.subr.mxu0 0.0
        %1100 = vmatpush2.msra.mxu0 0.0
        %1101 = vmatprep.subr.mxu0 0.0
        %1102 = vmatpush2.msra.mxu0 0.0
        %1103 = vmatprep.subr.mxu0 0.0
        %1104 = vmatpush2.msra.mxu0 0.0
        %1105 = vmatprep.mubr.f32.mxu0 0.0
        %1106 = vmatmul.mubr.f32.gmra.mxu0 %v960
        %v1107 = vpop.f32.mrf.mxu0
        %v1108 = vadd.f32 0.0, %v1107
        %v1109 = vpop.f32.mrf.mxu0
        %v1110 = vadd.f32 0.0, %v1109
        %1111 = vdwg.mxu0
        %v1116 = vcombine.low %v1037, %v1039
        %v1117 = vcombine.low %v1108, %v1110
        %v1119 = vunpack.c.l.s4 1983009808
        %v1120 = vunpack.c.0.s8 %v1119
        %v1121 = vlaneseq
        %v1122 = vshrl.u32 %v1121, 7
        %v1123 = vsub.s32 %v1120, %v1122
        %v1124 = vrot.slane %v1116, %v1123
        %v1126 = vunpack.c.l.s4 1983009808
        %v1127 = vunpack.c.0.s8 %v1126
        %v1128 = vlaneseq
        %v1129 = vshrl.u32 %v1128, 7
        %v1130 = vsub.s32 %v1127, %v1129
        %v1131 = vrot.slane %v1117, %v1130
        %v1132 = vcombine.low %v1124, %v1131
        %v1134 = vadd.f32 %v969, %v1132
        %v1135 = vxor.u32 %v1134, 2147483648
        %v1136 = vmul.f32 %v1135, 1.442695
        %v1137 = vpow.pop %v1136
        %v1138 = vadd.f32 %v1137, 1.0
        %v1139 = vrcp.pop %v1138
        %v1140 = vmul.f32 1.0, %v1139
        %v1142 = vrot.slane %v1134, 2
        %v1144 = vxor.u32 %v1142, 2147483648
        %v1145 = vmul.f32 %v1144, 1.442695
        %v1146 = vpow.pop %v1145
        %v1147 = vadd.f32 %v1146, 1.0
        %v1148 = vrcp.pop %v1147
        %v1149 = vmul.f32 1.0, %v1148
        %v1150 = vrot.slane %v1134, 4
        %v1152 = vtanh.pop %v1150
        %v1153 = vrot.slane %v1134, 6
        %v1155 = vxor.u32 %v1153, 2147483648
        %v1156 = vmul.f32 %v1155, 1.442695
        %v1157 = vpow.pop %v1156
        %v1158 = vadd.f32 %v1157, 1.0
        %v1159 = vrcp.pop %v1158
        %v1160 = vmul.f32 1.0, %v1159
        %v1161 = vmul.f32 %v1149, %v958
        %v1162 = vmul.f32 %v1140, %v1152
        %v1163 = vadd.f32 %v1161, %v1162
        %v1164 = vtanh.pop %v1163
        %v1165 = vmul.f32 %v1160, %v1164
        %s1166 = smul.u32 %s965, 2
        %s1167 = scalar_lea.vmem %s268, %s1166
        %1168 = vst [vmem:[%s1167] sm:$0x3] %v1165
        %1169 = vst [vmem:[%s348] sm:$0x3] %v1165
        %1170 = vst [vmem:[%s350] sm:$0x3] %v1163
        %s1171 = smul.u32 %s21, 2
        %s1172 = ssub.s32 1, %s1171
        %s1173 = smul.u32 %s20, %s1172
        %s1174 = sadd.s32 %s21, %s1173
        %s1175 = smul.u32 4, %s1174
        %p1176 = scmp.lt.s32.totalorder %s20, 1
        %s1177 = scalar_select %p1176, %s20, 1
        %p1178 = scmp.lt.s32.totalorder %s1175, 7
        %s1179 = scalar_select %p1178, %s1175, 7
        %s1180 = smul.addr %s1177, 8
        %s1181 = sadd.s32 %s1179, %s1180
        %s1182 = smul.addr %s1181, 2
        %s1183 = scalar_lea.vmem %s2, %s1182
        // Predicated region
        $region37: #{bilstm_forward.6} parent=27 // pred_check
          %p1184 = pneg %p118
        $region38: #{bilstm_forward.6} parent=27 // pred_check_branch
          %1186 = sbr.rel (%p1184) target = $region40
        $region39: #{bilstm_forward.6} parent=27 // pred_region
          %s1187 = smul.u32 %s21, 2
          %s1188 = ssub.s32 1, %s1187
          %s1189 = smul.u32 %s20, %s1188
          %s1190 = sadd.s32 %s21, %s1189
          %s1191 = smul.u32 4, %s1190
        $region40: #{bilstm_forward.6} parent=27 // pred_fallthru
          _
      $region28: #{bilstm_forward.6} parent=5 // pred_fallthru
        _
      %p1192 = scmp.le.s32.totalorder 2, %s11
      // Predicated region
      $region41: #{bilstm_forward.6} parent=5 // pred_check
        %p1193 = pneg %p1192
      $region42: #{bilstm_forward.6} parent=5 // pred_check_branch
        %1195 = sbr.rel (%p1193) target = $region44
      $region43: #{bilstm_forward.6} parent=5 // pred_region
        %s1196 = ssub.s32 %s11, 2
        // Predicated region
        $region45: #{bilstm_forward.6} parent=43 // pred_check
          %p1197 = pneg %p124
        $region46: #{bilstm_forward.6} parent=43 // pred_check_branch
          %1199 = sbr.rel (%p1197) target = $region48
        $region47: #{bilstm_forward.6} parent=43 // pred_region
          %s1200 = smul.u32 %s23, 2
          %s1201 = ssub.s32 1, %s1200
          %s1202 = smul.u32 %s22, %s1201
          %s1203 = sadd.s32 %s23, %s1202
          %s1204 = smul.u32 4, %s1203
          %p1205 = scmp.lt.s32.totalorder %s22, 1
          %s1206 = scalar_select %p1205, %s22, 1
          %p1207 = scmp.lt.s32.totalorder %s1204, 7
          %s1208 = scalar_select %p1207, %s1204, 7
          %s1209 = smul.addr %s1206, 8
          %s1210 = sadd.s32 %s1208, %s1209
          %s1211 = smul.addr %s1210, 2
          %s1212 = scalar_lea.vmem %s2, %s1211
        $region48: #{bilstm_forward.6} parent=43 // pred_fallthru
          _
      $region44: #{bilstm_forward.6} parent=5 // pred_fallthru
        _
    $region6: #{bilstm_forward.6} parent=1 // loop_footer
      %s15 = sadd.s32 1, %s11
    $region7: #{bilstm_forward.6} parent=1 // loop_footer_branch
      %10 = sbr.rel target = $region3
    $region8: #{bilstm_forward.6} parent=1 // loop_exit
      _
    %1213 = vsyncpa [#allocation5], 1
    %s1214 = scalar_lea.sflag [#allocation5], 1
    %1215 = vsyncpa %s1214, 1

// kernel: bilstm_forward.8
$region0: #{bilstm_forward.8}
  #allocation0 [shape = 'u32[]', space=smem, size = 0x4, offset = 0x4, fixed_abs, tag = 'smem constant byte address 0x4 - core index']
  #allocation1 [shape = 'u32[144,128]{1,0:T(1,128)}', space=vmem, size = 0x12000, scoped, tag = 'internal scratch']
  %s0 = inlined_call_operand.vmem [shape: f32[2,2,128], index: 0, kind: input, shape index: {}]
  %s1 = inlined_call_operand.hbm [shape: f32[2,256,512], index: 1, kind: input, shape index: {}]
  %s2 = inlined_call_operand.hbm [shape: f32[2,1,512], index: 2, kind: input, shape index: {}]
  %s3 = inlined_call_operand.vmem [shape: f32[2,512], index: 3, kind: output, shape index: {}]
  %s4 = sld [smem:[#allocation0]]
  $region30: #{bilstm_forward.8} parent=0
    _
  %s6 = ssub.s32 1, %s4
  %s7 = scalar_select 0, %s6, %s4
  $region1: #{bilstm_forward.8} parent=0
    #allocation2 [shape = 'u8[524288]{0}', space=vmem, size = 0x80000, scoped, tag = 'input window, operand 1, single buffered']
    #allocation3 [shape = 's32[1]{0}', space=sflag, size = 0x4, scoped, tag = 'scoped memory for bilstm_forward.8']
    #allocation4 [shape = 'u8[2048]{0}', space=vmem, size = 0x800, scoped, tag = 'input window, operand 2, single buffered']
    #allocation5 [shape = 's32[1]{0}', space=sflag, size = 0x4, scoped, tag = 'scoped memory for bilstm_forward.8']
    %8 = vsyncpa [#allocation3], 0
    %9 = vsyncpa [#allocation5], 0
    // Predicated region
    $region2: #{bilstm_forward.8} parent=1 // pred_check
      _
    $region3: #{bilstm_forward.8} parent=1 // pred_check_branch
      %11 = sbr.rel (0) target = $region5
    $region4: #{bilstm_forward.8} parent=1 // pred_region
      _
    $region5: #{bilstm_forward.8} parent=1 // pred_fallthru
      _
    // Predicated region
    $region6: #{bilstm_forward.8} parent=1 // pred_check
      _
    $region7: #{bilstm_forward.8} parent=1 // pred_check_branch
      %13 = sbr.rel (0) target = $region9
    $region8: #{bilstm_forward.8} parent=1 // pred_region
      %s15 = ssub.s32 16384, 16384
      %16 = vsyncadd [#allocation3], %s15
      %s17 = scalar_lea.hbm %s1, 16384
      %s18 = sshll.u32 [#allocation2], 4
      %s19 = int_to_ptr.vmem [resolvable:$true] %s18
      %24 = dma.hbm_to_vmem [thread:$0]  %s17, 16384, %s19, [#allocation3], 512, 512, 32
    $region9: #{bilstm_forward.8} parent=1 // pred_fallthru
      _
    // Predicated region
    $region10: #{bilstm_forward.8} parent=1 // pred_check
      _
    $region11: #{bilstm_forward.8} parent=1 // pred_check_branch
      %26 = sbr.rel (0) target = $region13
    $region12: #{bilstm_forward.8} parent=1 // pred_region
      %s28 = ssub.s32 64, 64
      %29 = vsyncadd [#allocation5], %s28
      %s30 = scalar_lea.hbm %s2, 64
      %s32 = sshll.u32 [#allocation4], 4
      %s33 = int_to_ptr.vmem [resolvable:$true] %s32
      %35 = dma.hbm_to_vmem [thread:$0]  %s30, 64, %s33, [#allocation5]
    $region13: #{bilstm_forward.8} parent=1 // pred_fallthru
      _
    // Predicated region
    $region14: #{bilstm_forward.8} parent=1 // pred_check
      _
    $region15: #{bilstm_forward.8} parent=1 // pred_check_branch
      %37 = sbr.rel (0) target = $region17
    $region16: #{bilstm_forward.8} parent=1 // pred_region
      %38 = dma.done [#allocation3], 16384
    $region17: #{bilstm_forward.8} parent=1 // pred_fallthru
      _
    // Predicated region
    $region18: #{bilstm_forward.8} parent=1 // pred_check
      _
    $region19: #{bilstm_forward.8} parent=1 // pred_check_branch
      %40 = sbr.rel (0) target = $region21
    $region20: #{bilstm_forward.8} parent=1 // pred_region
      %41 = dma.done [#allocation5], 64
    $region21: #{bilstm_forward.8} parent=1 // pred_fallthru
      _
    %v42 = vld [vmem:[%s0] sm:$0x3]
    %v43 = vld [vmem:[#allocation2] sm:$0xff]
    %v44 = vld [vmem:[#allocation2 + $0x8] sm:$0xff]
    %v45 = vld [vmem:[#allocation2 + $0x10] sm:$0xff]
    %v46 = vld [vmem:[#allocation2 + $0x18] sm:$0xff]
    %v47 = vld [vmem:[#allocation2 + $0x20] sm:$0xff]
    %v48 = vld [vmem:[#allocation2 + $0x28] sm:$0xff]
    %v49 = vld [vmem:[#allocation2 + $0x30] sm:$0xff]
    %v50 = vld [vmem:[#allocation2 + $0x38] sm:$0xff]
    %v51 = vld [vmem:[#allocation2 + $0x40] sm:$0xff]
    %v52 = vld [vmem:[#allocation2 + $0x48] sm:$0xff]
    %v53 = vld [vmem:[#allocation2 + $0x50] sm:$0xff]
    %v54 = vld [vmem:[#allocation2 + $0x58] sm:$0xff]
    %v55 = vld [vmem:[#allocation2 + $0x60] sm:$0xff]
    %v56 = vld [vmem:[#allocation2 + $0x68] sm:$0xff]
    %v57 = vld [vmem:[#allocation2 + $0x70] sm:$0xff]
    %v58 = vld [vmem:[#allocation2 + $0x78] sm:$0xff]
    %v59 = vld [vmem:[#allocation2 + $0x80] sm:$0xff]
    %v60 = vld [vmem:[#allocation2 + $0x88] sm:$0xff]
    %v61 = vld [vmem:[#allocation2 + $0x90] sm:$0xff]
    %v62 = vld [vmem:[#allocation2 + $0x98] sm:$0xff]
    %v63 = vld [vmem:[#allocation2 + $0xa0] sm:$0xff]
    %v64 = vld [vmem:[#allocation2 + $0xa8] sm:$0xff]
    %v65 = vld [vmem:[#allocation2 + $0xb0] sm:$0xff]
    %v66 = vld [vmem:[#allocation2 + $0xb8] sm:$0xff]
    %v67 = vld [vmem:[#allocation2 + $0xc0] sm:$0xff]
    %v68 = vld [vmem:[#allocation2 + $0xc8] sm:$0xff]
    %v69 = vld [vmem:[#allocation2 + $0xd0] sm:$0xff]
    %v70 = vld [vmem:[#allocation2 + $0xd8] sm:$0xff]
    %v71 = vld [vmem:[#allocation2 + $0xe0] sm:$0xff]
    %v72 = vld [vmem:[#allocation2 + $0xe8] sm:$0xff]
    %v73 = vld [vmem:[#allocation2 + $0xf0] sm:$0xff]
    %v74 = vld [vmem:[#allocation2 + $0xf8] sm:$0xff]
    %v75 = vld [vmem:[#allocation2 + $0x100] sm:$0xff]
    %v76 = vld [vmem:[#allocation2 + $0x108] sm:$0xff]
    %v77 = vld [vmem:[#allocation2 + $0x110] sm:$0xff]
    %v78 = vld [vmem:[#allocation2 + $0x118] sm:$0xff]
    %v79 = vld [vmem:[#allocation2 + $0x120] sm:$0xff]
    %v80 = vld [vmem:[#allocation2 + $0x128] sm:$0xff]
    %v81 = vld [vmem:[#allocation2 + $0x130] sm:$0xff]
    %v82 = vld [vmem:[#allocation2 + $0x138] sm:$0xff]
    %v83 = vld [vmem:[#allocation2 + $0x140] sm:$0xff]
    %v84 = vld [vmem:[#allocation2 + $0x148] sm:$0xff]
    %v85 = vld [vmem:[#allocation2 + $0x150] sm:$0xff]
    %v86 = vld [vmem:[#allocation2 + $0x158] sm:$0xff]
    %v87 = vld [vmem:[#allocation2 + $0x160] sm:$0xff]
    %v88 = vld [vmem:[#allocation2 + $0x168] sm:$0xff]
    %v89 = vld [vmem:[#allocation2 + $0x170] sm:$0xff]
    %v90 = vld [vmem:[#allocation2 + $0x178] sm:$0xff]
    %v91 = vld [vmem:[#allocation2 + $0x180] sm:$0xff]
    %v92 = vld [vmem:[#allocation2 + $0x188] sm:$0xff]
    %v93 = vld [vmem:[#allocation2 + $0x190] sm:$0xff]
    %v94 = vld [vmem:[#allocation2 + $0x198] sm:$0xff]
    %v95 = vld [vmem:[#allocation2 + $0x1a0] sm:$0xff]
    %v96 = vld [vmem:[#allocation2 + $0x1a8] sm:$0xff]
    %v97 = vld [vmem:[#allocation2 + $0x1b0] sm:$0xff]
    %v98 = vld [vmem:[#allocation2 + $0x1b8] sm:$0xff]
    %v99 = vld [vmem:[#allocation2 + $0x1c0] sm:$0xff]
    %v100 = vld [vmem:[#allocation2 + $0x1c8] sm:$0xff]
    %v101 = vld [vmem:[#allocation2 + $0x1d0] sm:$0xff]
    %v102 = vld [vmem:[#allocation2 + $0x1d8] sm:$0xff]
    %v103 = vld [vmem:[#allocation2 + $0x1e0] sm:$0xff]
    %v104 = vld [vmem:[#allocation2 + $0x1e8] sm:$0xff]
    %v105 = vld [vmem:[#allocation2 + $0x1f0] sm:$0xff]
    %v106 = vld [vmem:[#allocation2 + $0x1f8] sm:$0xff]
    %s107 = scalar_lea.vmem %s0, 2
    %v108 = vld [vmem:[%s107] sm:$0x3]
    %v109 = vld [vmem:[#allocation2 + $0x200] sm:$0xff]
    %v110 = vld [vmem:[#allocation2 + $0x208] sm:$0xff]
    %v111 = vld [vmem:[#allocation2 + $0x210] sm:$0xff]
    %v112 = vld [vmem:[#allocation2 + $0x218] sm:$0xff]
    %v113 = vld [vmem:[#allocation2 + $0x220] sm:$0xff]
    %v114 = vld [vmem:[#allocation2 + $0x228] sm:$0xff]
    %v115 = vld [vmem:[#allocation2 + $0x230] sm:$0xff]
    %v116 = vld [vmem:[#allocation2 + $0x238] sm:$0xff]
    %v117 = vld [vmem:[#allocation2 + $0x240] sm:$0xff]
    %v118 = vld [vmem:[#allocation2 + $0x248] sm:$0xff]
    %v119 = vld [vmem:[#allocation2 + $0x250] sm:$0xff]
    %v120 = vld [vmem:[#allocation2 + $0x258] sm:$0xff]
    %v121 = vld [vmem:[#allocation2 + $0x260] sm:$0xff]
    %v122 = vld [vmem:[#allocation2 + $0x268] sm:$0xff]
    %v123 = vld [vmem:[#allocation2 + $0x270] sm:$0xff]
    %v124 = vld [vmem:[#allocation2 + $0x278] sm:$0xff]
    %v125 = vld [vmem:[#allocation2 + $0x280] sm:$0xff]
    %v126 = vld [vmem:[#allocation2 + $0x288] sm:$0xff]
    %v127 = vld [vmem:[#allocation2 + $0x290] sm:$0xff]
    %v128 = vld [vmem:[#allocation2 + $0x298] sm:$0xff]
    %v129 = vld [vmem:[#allocation2 + $0x2a0] sm:$0xff]
    %v130 = vld [vmem:[#allocation2 + $0x2a8] sm:$0xff]
    %v131 = vld [vmem:[#allocation2 + $0x2b0] sm:$0xff]
    %v132 = vld [vmem:[#allocation2 + $0x2b8] sm:$0xff]
    %v133 = vld [vmem:[#allocation2 + $0x2c0] sm:$0xff]
    %v134 = vld [vmem:[#allocation2 + $0x2c8] sm:$0xff]
    %v135 = vld [vmem:[#allocation2 + $0x2d0] sm:$0xff]
    %v136 = vld [vmem:[#allocation2 + $0x2d8] sm:$0xff]
    %v137 = vld [vmem:[#allocation2 + $0x2e0] sm:$0xff]
    %v138 = vld [vmem:[#allocation2 + $0x2e8] sm:$0xff]
    %v139 = vld [vmem:[#allocation2 + $0x2f0] sm:$0xff]
    %v140 = vld [vmem:[#allocation2 + $0x2f8] sm:$0xff]
    %v141 = vld [vmem:[#allocation2 + $0x300] sm:$0xff]
    %v142 = vld [vmem:[#allocation2 + $0x308] sm:$0xff]
    %v143 = vld [vmem:[#allocation2 + $0x310] sm:$0xff]
    %v144 = vld [vmem:[#allocation2 + $0x318] sm:$0xff]
    %v145 = vld [vmem:[#allocation2 + $0x320] sm:$0xff]
    %v146 = vld [vmem:[#allocation2 + $0x328] sm:$0xff]
    %v147 = vld [vmem:[#allocation2 + $0x330] sm:$0xff]
    %v148 = vld [vmem:[#allocation2 + $0x338] sm:$0xff]
    %v149 = vld [vmem:[#allocation2 + $0x340] sm:$0xff]
    %v150 = vld [vmem:[#allocation2 + $0x348] sm:$0xff]
    %v151 = vld [vmem:[#allocation2 + $0x350] sm:$0xff]
    %v152 = vld [vmem:[#allocation2 + $0x358] sm:$0xff]
    %v153 = vld [vmem:[#allocation2 + $0x360] sm:$0xff]
    %v154 = vld [vmem:[#allocation2 + $0x368] sm:$0xff]
    %v155 = vld [vmem:[#allocation2 + $0x370] sm:$0xff]
    %v156 = vld [vmem:[#allocation2 + $0x378] sm:$0xff]
    %v157 = vld [vmem:[#allocation2 + $0x380] sm:$0xff]
    %v158 = vld [vmem:[#allocation2 + $0x388] sm:$0xff]
    %v159 = vld [vmem:[#allocation2 + $0x390] sm:$0xff]
    %v160 = vld [vmem:[#allocation2 + $0x398] sm:$0xff]
    %v161 = vld [vmem:[#allocation2 + $0x3a0] sm:$0xff]
    %v162 = vld [vmem:[#allocation2 + $0x3a8] sm:$0xff]
    %v163 = vld [vmem:[#allocation2 + $0x3b0] sm:$0xff]
    %v164 = vld [vmem:[#allocation2 + $0x3b8] sm:$0xff]
    %v165 = vld [vmem:[#allocation2 + $0x3c0] sm:$0xff]
    %v166 = vld [vmem:[#allocation2 + $0x3c8] sm:$0xff]
    %v167 = vld [vmem:[#allocation2 + $0x3d0] sm:$0xff]
    %v168 = vld [vmem:[#allocation2 + $0x3d8] sm:$0xff]
    %v169 = vld [vmem:[#allocation2 + $0x3e0] sm:$0xff]
    %v170 = vld [vmem:[#allocation2 + $0x3e8] sm:$0xff]
    %v171 = vld [vmem:[#allocation2 + $0x3f0] sm:$0xff]
    %v172 = vld [vmem:[#allocation2 + $0x3f8] sm:$0xff]
    %173 = vmatprep.subr.mxu0 %v170
    %174 = vmatpush1.msra.mxu0 %v169
    %175 = vmatprep.subr.mxu0 %v166
    %176 = vmatpush1.msra.mxu0 %v165
    %177 = vmatprep.subr.mxu0 %v162
    %178 = vmatpush1.msra.mxu0 %v161
    %179 = vmatprep.subr.mxu0 %v158
    %180 = vmatpush1.msra.mxu0 %v157
    %181 = vmatprep.subr.mxu0 %v154
    %182 = vmatpush1.msra.mxu0 %v153
    %183 = vmatprep.subr.mxu0 %v150
    %184 = vmatpush1.msra.mxu0 %v149
    %185 = vmatprep.subr.mxu0 %v146
    %186 = vmatpush1.msra.mxu0 %v145
    %187 = vmatprep.subr.mxu0 %v142
    %188 = vmatpush1.msra.mxu0 %v141
    %189 = vmatprep.subr.mxu0 %v138
    %190 = vmatpush1.msra.mxu0 %v137
    %191 = vmatprep.subr.mxu0 %v134
    %192 = vmatpush1.msra.mxu0 %v133
    %193 = vmatprep.subr.mxu0 %v130
    %194 = vmatpush1.msra.mxu0 %v129
    %195 = vmatprep.subr.mxu0 %v126
    %196 = vmatpush1.msra.mxu0 %v125
    %197 = vmatprep.subr.mxu0 %v122
    %198 = vmatpush1.msra.mxu0 %v121
    %199 = vmatprep.subr.mxu0 %v118
    %200 = vmatpush1.msra.mxu0 %v117
    %201 = vmatprep.subr.mxu0 %v114
    %202 = vmatpush1.msra.mxu0 %v113
    %203 = vmatprep.subr.mxu0 %v110
    %204 = vmatpush1.msra.mxu0 %v109
    %205 = vmatprep.subr.mxu0 0.0
    %206 = vmatpush2.msra.mxu0 0.0
    %207 = vmatprep.subr.mxu0 0.0
    %208 = vmatpush2.msra.mxu0 0.0
    %209 = vmatprep.subr.mxu0 0.0
    %210 = vmatpush2.msra.mxu0 0.0
    %211 = vmatprep.subr.mxu0 0.0
    %212 = vmatpush2.msra.mxu0 0.0
    %213 = vmatprep.subr.mxu0 0.0
    %214 = vmatpush2.msra.mxu0 0.0
    %215 = vmatprep.subr.mxu0 0.0
    %216 = vmatpush2.msra.mxu0 0.0
    %217 = vmatprep.subr.mxu0 0.0
    %218 = vmatpush2.msra.mxu0 0.0
    %219 = vmatprep.subr.mxu0 0.0
    %220 = vmatpush2.msra.mxu0 0.0
    %221 = vmatprep.subr.mxu0 0.0
    %222 = vmatpush2.msra.mxu0 0.0
    %223 = vmatprep.subr.mxu0 0.0
    %224 = vmatpush2.msra.mxu0 0.0
    %225 = vmatprep.subr.mxu0 0.0
    %226 = vmatpush2.msra.mxu0 0.0
    %227 = vmatprep.subr.mxu0 0.0
    %228 = vmatpush2.msra.mxu0 0.0
    %229 = vmatprep.subr.mxu0 0.0
    %230 = vmatpush2.msra.mxu0 0.0
    %231 = vmatprep.subr.mxu0 0.0
    %232 = vmatpush2.msra.mxu0 0.0
    %233 = vmatprep.subr.mxu0 0.0
    %234 = vmatpush2.msra.mxu0 0.0
    %235 = vmatprep.subr.mxu0 0.0
    %236 = vmatpush2.msra.mxu0 0.0
    %237 = vmatprep.mubr.f32.mxu0 0.0
    %238 = vmatmul.mubr.f32.gmra.mxu0 %v108
    %v239 = vpop.f32.mrf.mxu0
    %v240 = vadd.f32 0.0, %v239
    %v241 = vpop.f32.mrf.mxu0
    %v242 = vadd.f32 0.0, %v241
    %243 = vdwg.mxu0
    %244 = vmatprep.subr.mxu0 %v172
    %245 = vmatpush1.msra.mxu0 %v171
    %246 = vmatprep.subr.mxu0 %v168
    %247 = vmatpush1.msra.mxu0 %v167
    %248 = vmatprep.subr.mxu0 %v164
    %249 = vmatpush1.msra.mxu0 %v163
    %250 = vmatprep.subr.mxu0 %v160
    %251 = vmatpush1.msra.mxu0 %v159
    %252 = vmatprep.subr.mxu0 %v156
    %253 = vmatpush1.msra.mxu0 %v155
    %254 = vmatprep.subr.mxu0 %v152
    %255 = vmatpush1.msra.mxu0 %v151
    %256 = vmatprep.subr.mxu0 %v148
    %257 = vmatpush1.msra.mxu0 %v147
    %258 = vmatprep.subr.mxu0 %v144
    %259 = vmatpush1.msra.mxu0 %v143
    %260 = vmatprep.subr.mxu0 %v140
    %261 = vmatpush1.msra.mxu0 %v139
    %262 = vmatprep.subr.mxu0 %v136
    %263 = vmatpush1.msra.mxu0 %v135
    %264 = vmatprep.subr.mxu0 %v132
    %265 = vmatpush1.msra.mxu0 %v131
    %266 = vmatprep.subr.mxu0 %v128
    %267 = vmatpush1.msra.mxu0 %v127
    %268 = vmatprep.subr.mxu0 %v124
    %269 = vmatpush1.msra.mxu0 %v123
    %270 = vmatprep.subr.mxu0 %v120
    %271 = vmatpush1.msra.mxu0 %v119
    %272 = vmatprep.subr.mxu0 %v116
    %273 = vmatpush1.msra.mxu0 %v115
    %274 = vmatprep.subr.mxu0 %v112
    %275 = vmatpush1.msra.mxu0 %v111
    %276 = vmatprep.subr.mxu0 0.0
    %277 = vmatpush2.msra.mxu0 0.0
    %278 = vmatprep.subr.mxu0 0.0
    %279 = vmatpush2.msra.mxu0 0.0
    %280 = vmatprep.subr.mxu0 0.0
    %281 = vmatpush2.msra.mxu0 0.0
    %282 = vmatprep.subr.mxu0 0.0
    %283 = vmatpush2.msra.mxu0 0.0
    %284 = vmatprep.subr.mxu0 0.0
    %285 = vmatpush2.msra.mxu0 0.0
    %286 = vmatprep.subr.mxu0 0.0
    %287 = vmatpush2.msra.mxu0 0.0
    %288 = vmatprep.subr.mxu0 0.0
    %289 = vmatpush2.msra.mxu0 0.0
    %290 = vmatprep.subr.mxu0 0.0
    %291 = vmatpush2.msra.mxu0 0.0
    %292 = vmatprep.subr.mxu0 0.0
    %293 = vmatpush2.msra.mxu0 0.0
    %294 = vmatprep.subr.mxu0 0.0
    %295 = vmatpush2.msra.mxu0 0.0
    %296 = vmatprep.subr.mxu0 0.0
    %297 = vmatpush2.msra.mxu0 0.0
    %298 = vmatprep.subr.mxu0 0.0
    %299 = vmatpush2.msra.mxu0 0.0
    %300 = vmatprep.subr.mxu0 0.0
    %301 = vmatpush2.msra.mxu0 0.0
    %302 = vmatprep.subr.mxu0 0.0
    %303 = vmatpush2.msra.mxu0 0.0
    %304 = vmatprep.subr.mxu0 0.0
    %305 = vmatpush2.msra.mxu0 0.0
    %306 = vmatprep.subr.mxu0 0.0
    %307 = vmatpush2.msra.mxu0 0.0
    %308 = vmatprep.mubr.f32.mxu0 0.0
    %309 = vmatmul.mubr.f32.gmra.mxu0 %v108
    %v310 = vpop.f32.mrf.mxu0
    %v311 = vadd.f32 0.0, %v310
    %v312 = vpop.f32.mrf.mxu0
    %v313 = vadd.f32 0.0, %v312
    %314 = vdwg.mxu0
    %315 = vmatprep.subr.mxu0 %v104
    %316 = vmatpush1.msra.mxu0 %v103
    %317 = vmatprep.subr.mxu0 %v100
    %318 = vmatpush1.msra.mxu0 %v99
    %319 = vmatprep.subr.mxu0 %v96
    %320 = vmatpush1.msra.mxu0 %v95
    %321 = vmatprep.subr.mxu0 %v92
    %322 = vmatpush1.msra.mxu0 %v91
    %323 = vmatprep.subr.mxu0 %v88
    %324 = vmatpush1.msra.mxu0 %v87
    %325 = vmatprep.subr.mxu0 %v84
    %326 = vmatpush1.msra.mxu0 %v83
    %327 = vmatprep.subr.mxu0 %v80
    %328 = vmatpush1.msra.mxu0 %v79
    %329 = vmatprep.subr.mxu0 %v76
    %330 = vmatpush1.msra.mxu0 %v75
    %331 = vmatprep.subr.mxu0 %v72
    %332 = vmatpush1.msra.mxu0 %v71
    %333 = vmatprep.subr.mxu0 %v68
    %334 = vmatpush1.msra.mxu0 %v67
    %335 = vmatprep.subr.mxu0 %v64
    %336 = vmatpush1.msra.mxu0 %v63
    %337 = vmatprep.subr.mxu0 %v60
    %338 = vmatpush1.msra.mxu0 %v59
    %339 = vmatprep.subr.mxu0 %v56
    %340 = vmatpush1.msra.mxu0 %v55
    %341 = vmatprep.subr.mxu0 %v52
    %342 = vmatpush1.msra.mxu0 %v51
    %343 = vmatprep.subr.mxu0 %v48
    %344 = vmatpush1.msra.mxu0 %v47
    %345 = vmatprep.subr.mxu0 %v44
    %346 = vmatpush1.msra.mxu0 %v43
    %347 = vmatprep.subr.mxu0 0.0
    %348 = vmatpush2.msra.mxu0 0.0
    %349 = vmatprep.subr.mxu0 0.0
    %350 = vmatpush2.msra.mxu0 0.0
    %351 = vmatprep.subr.mxu0 0.0
    %352 = vmatpush2.msra.mxu0 0.0
    %353 = vmatprep.subr.mxu0 0.0
    %354 = vmatpush2.msra.mxu0 0.0
    %355 = vmatprep.subr.mxu0 0.0
    %356 = vmatpush2.msra.mxu0 0.0
    %357 = vmatprep.subr.mxu0 0.0
    %358 = vmatpush2.msra.mxu0 0.0
    %359 = vmatprep.subr.mxu0 0.0
    %360 = vmatpush2.msra.mxu0 0.0
    %361 = vmatprep.subr.mxu0 0.0
    %362 = vmatpush2.msra.mxu0 0.0
    %363 = vmatprep.subr.mxu0 0.0
    %364 = vmatpush2.msra.mxu0 0.0
    %365 = vmatprep.subr.mxu0 0.0
    %366 = vmatpush2.msra.mxu0 0.0
    %367 = vmatprep.subr.mxu0 0.0
    %368 = vmatpush2.msra.mxu0 0.0
    %369 = vmatprep.subr.mxu0 0.0
    %370 = vmatpush2.msra.mxu0 0.0
    %371 = vmatprep.subr.mxu0 0.0
    %372 = vmatpush2.msra.mxu0 0.0
    %373 = vmatprep.subr.mxu0 0.0
    %374 = vmatpush2.msra.mxu0 0.0
    %375 = vmatprep.subr.mxu0 0.0
    %376 = vmatpush2.msra.mxu0 0.0
    %377 = vmatprep.subr.mxu0 0.0
    %378 = vmatpush2.msra.mxu0 0.0
    %379 = vmatprep.mubr.f32.mxu0 0.0
    %380 = vmatmul.mubr.f32.gmra.mxu0 %v42
    %v381 = vpop.f32.mrf.mxu0
    %v382 = vadd.f32 %v240, %v381
    %v383 = vpop.f32.mrf.mxu0
    %v384 = vadd.f32 %v242, %v383
    %385 = vdwg.mxu0
    %386 = vmatprep.subr.mxu0 %v106
    %387 = vmatpush1.msra.mxu0 %v105
    %388 = vmatprep.subr.mxu0 %v102
    %389 = vmatpush1.msra.mxu0 %v101
    %390 = vmatprep.subr.mxu0 %v98
    %391 = vmatpush1.msra.mxu0 %v97
    %392 = vmatprep.subr.mxu0 %v94
    %393 = vmatpush1.msra.mxu0 %v93
    %394 = vmatprep.subr.mxu0 %v90
    %395 = vmatpush1.msra.mxu0 %v89
    %396 = vmatprep.subr.mxu0 %v86
    %397 = vmatpush1.msra.mxu0 %v85
    %398 = vmatprep.subr.mxu0 %v82
    %399 = vmatpush1.msra.mxu0 %v81
    %400 = vmatprep.subr.mxu0 %v78
    %401 = vmatpush1.msra.mxu0 %v77
    %402 = vmatprep.subr.mxu0 %v74
    %403 = vmatpush1.msra.mxu0 %v73
    %404 = vmatprep.subr.mxu0 %v70
    %405 = vmatpush1.msra.mxu0 %v69
    %406 = vmatprep.subr.mxu0 %v66
    %407 = vmatpush1.msra.mxu0 %v65
    %408 = vmatprep.subr.mxu0 %v62
    %409 = vmatpush1.msra.mxu0 %v61
    %410 = vmatprep.subr.mxu0 %v58
    %411 = vmatpush1.msra.mxu0 %v57
    %412 = vmatprep.subr.mxu0 %v54
    %413 = vmatpush1.msra.mxu0 %v53
    %414 = vmatprep.subr.mxu0 %v50
    %415 = vmatpush1.msra.mxu0 %v49
    %416 = vmatprep.subr.mxu0 %v46
    %417 = vmatpush1.msra.mxu0 %v45
    %418 = vmatprep.subr.mxu0 0.0
    %419 = vmatpush2.msra.mxu0 0.0
    %420 = vmatprep.subr.mxu0 0.0
    %421 = vmatpush2.msra.mxu0 0.0
    %422 = vmatprep.subr.mxu0 0.0
    %423 = vmatpush2.msra.mxu0 0.0
    %424 = vmatprep.subr.mxu0 0.0
    %425 = vmatpush2.msra.mxu0 0.0
    %426 = vmatprep.subr.mxu0 0.0
    %427 = vmatpush2.msra.mxu0 0.0
    %428 = vmatprep.subr.mxu0 0.0
    %429 = vmatpush2.msra.mxu0 0.0
    %430 = vmatprep.subr.mxu0 0.0
    %431 = vmatpush2.msra.mxu0 0.0
    %432 = vmatprep.subr.mxu0 0.0
    %433 = vmatpush2.msra.mxu0 0.0
    %434 = vmatprep.subr.mxu0 0.0
    %435 = vmatpush2.msra.mxu0 0.0
    %436 = vmatprep.subr.mxu0 0.0
    %437 = vmatpush2.msra.mxu0 0.0
    %438 = vmatprep.subr.mxu0 0.0
    %439 = vmatpush2.msra.mxu0 0.0
    %440 = vmatprep.subr.mxu0 0.0
    %441 = vmatpush2.msra.mxu0 0.0
    %442 = vmatprep.subr.mxu0 0.0
    %443 = vmatpush2.msra.mxu0 0.0
    %444 = vmatprep.subr.mxu0 0.0
    %445 = vmatpush2.msra.mxu0 0.0
    %446 = vmatprep.subr.mxu0 0.0
    %447 = vmatpush2.msra.mxu0 0.0
    %448 = vmatprep.subr.mxu0 0.0
    %449 = vmatpush2.msra.mxu0 0.0
    %450 = vmatprep.mubr.f32.mxu0 0.0
    %451 = vmatmul.mubr.f32.gmra.mxu0 %v42
    %v452 = vpop.f32.mrf.mxu0
    %v453 = vadd.f32 %v311, %v452
    %v454 = vpop.f32.mrf.mxu0
    %v455 = vadd.f32 %v313, %v454
    %456 = vdwg.mxu0
    %v457 = vld [vmem:[#allocation4] sm:$0xf]
    %v459 = vlaneseq
    %v460 = vshrl.u32 %v459, 7
    %v461 = vsub.s32 0, %v460
    %v462 = vrot.slane %v457, %v461
    %v463 = vlaneseq
    %v464 = vshrl.u32 %v463, 7
    %v465 = vsub.s32 1, %v464
    %v466 = vrot.slane %v457, %v465
    %v467 = vlaneseq
    %v468 = vshrl.u32 %v467, 7
    %v469 = vsub.s32 2, %v468
    %v470 = vrot.slane %v457, %v469
    %v471 = vlaneseq
    %v472 = vshrl.u32 %v471, 7
    %v473 = vsub.s32 3, %v472
    %v474 = vrot.slane %v457, %v473
    %v479 = vadd.f32 %v382, %v462
    %v480 = vadd.f32 %v384, %v466
    %v481 = vadd.f32 %v453, %v470
    %v482 = vadd.f32 %v455, %v474
    %v487 = vcombine.low %v479, %v480
    %v488 = vcombine.low %v481, %v482
    %v490 = vunpack.c.l.s4 1983009808
    %v491 = vunpack.c.0.s8 %v490
    %v492 = vlaneseq
    %v493 = vshrl.u32 %v492, 7
    %v494 = vsub.s32 %v491, %v493
    %v495 = vrot.slane %v487, %v494
    %v497 = vunpack.c.l.s4 1983009808
    %v498 = vunpack.c.0.s8 %v497
    %v499 = vlaneseq
    %v500 = vshrl.u32 %v499, 7
    %v501 = vsub.s32 %v498, %v500
    %v502 = vrot.slane %v488, %v501
    %v503 = vcombine.low %v495, %v502
    %505 = vst [vmem:[%s3] sm:$0xff] %v503
    // Predicated region
    $region22: #{bilstm_forward.8} parent=1 // pred_check
      _
    $region23: #{bilstm_forward.8} parent=1 // pred_check_branch
      %507 = sbr.rel (0) target = $region25
    $region24: #{bilstm_forward.8} parent=1 // pred_region
      _
    $region25: #{bilstm_forward.8} parent=1 // pred_fallthru
      _
    // Predicated region
    $region26: #{bilstm_forward.8} parent=1 // pred_check
      _
    $region27: #{bilstm_forward.8} parent=1 // pred_check_branch
      %509 = sbr.rel (0) target = $region29
    $region28: #{bilstm_forward.8} parent=1 // pred_region
      _
    $region29: #{bilstm_forward.8} parent=1 // pred_fallthru
      _
    %510 = vsyncpa [#allocation3], 1
    %511 = vsyncpa [#allocation5], 1

// kernel: bilstm_forward.9
$region0: #{bilstm_forward.9}
  #allocation0 [shape = 'u32[]', space=smem, size = 0x4, offset = 0x4, fixed_abs, tag = 'smem constant byte address 0x4 - core index']
  #allocation1 [shape = 'u32[144,128]{1,0:T(1,128)}', space=vmem, size = 0x12000, scoped, tag = 'internal scratch']
  #allocation2 [shape = 'f32[2,128]{1,0:T(2,128)}', space=vmem, size = 0x400, scoped, tag = 'scratch operand']
  #allocation3 [shape = 'f32[2,128]{1,0:T(2,128)}', space=vmem, size = 0x400, scoped, tag = 'scratch operand']
  %s0 = inlined_call_operand.vmem [shape: f32[8,2,512], index: 0, kind: input, shape index: {}]
  %s1 = inlined_call_operand.vmem [shape: f32[2,512], index: 1, kind: input, shape index: {}]
  %s2 = inlined_call_operand.vmem [shape: f32[2,128,512], index: 2, kind: input, shape index: {}]
  %s3 = inlined_call_operand.vmem [shape: f32[256,5], index: 3, kind: input, shape index: {}]
  %s4 = inlined_call_operand.vmem [shape: f32[1,5], index: 4, kind: input, shape index: {}]
  %s5 = inlined_call_operand.hbm [shape: f32[2,5], index: 5, kind: output, shape index: {}]
  %s6 = sld [smem:[#allocation0]]
  $region61: #{bilstm_forward.9} parent=0
    _
  %s8 = ssub.s32 1, %s6
  %s9 = scalar_select 0, %s8, %s6
  $region1: #{bilstm_forward.9} parent=0
    #allocation4 [shape = 'u8[1024]{0}', space=vmem, size = 0x400, scoped, tag = 'output window, operand 0, single buffered']
    #allocation5 [shape = 's32[2]{0}', space=sflag, size = 0x8, scoped, tag = 'scoped memory for bilstm_forward.9']
    %10 = vsyncpa [#allocation5], 0
    loop: start=0, step=1, limit=4
    $region2: #{bilstm_forward.9} parent=1 // loop_pre_header
      _
    $region3: #{bilstm_forward.9} parent=1 // loop_header
      %s12 = sphi 0, %s16
      %p13 = scmp.ge.s32.totalorder %s12, 4
      %s22 = sphi 0, %s24
      %s25 = sphi 0, %s22
      %s26 = sphi 0, %s25
      %s42 = sphi 0, %s26
      %s46 = sphi 0, %s46
      %s48 = sphi 0, %s46
      %s49 = sphi 0, %s48
      %s63 = sphi 0, %s49
      %s67 = sphi 0, %s67
      %s69 = sphi 0, %s67
      %s70 = sphi 0, %s69
      %s84 = sphi 0, %s70
      %s88 = sphi 0, %s88
      %s90 = sphi 0, %s88
      %s91 = sphi 0, %s90
      %s105 = sphi 0, %s91
      %s109 = sphi 0, %s109
      %s111 = sphi 0, %s109
      %s112 = sphi 0, %s111
      %s126 = sphi 0, %s112
      %s130 = sphi 0, %s130
      %s132 = sphi 0, %s130
      %s133 = sphi 0, %s132
      %s147 = sphi 0, %s133
    $region4: #{bilstm_forward.9} parent=1 // loop_header_branch
      %15 = sbr.rel (%p13) target = $region8
    $region5: #{bilstm_forward.9} parent=1 // loop_body
      %s17 = ssub.s32 %s12, 1
      %s18 = ssub.s32 %s12, 2
      %s19 = sadd.s32 %s12, 1
      %s20 = ssub.s32 %s12, %s19
      %p21 = scmp.eq.s32.totalorder %s20, 0
      %s23 = sadd.s32 %s22, 1
      %s24 = scalar_select %p21, %s22, %s23
      %p27 = pneg %p21
      %p28 = scmp.eq.s32.totalorder %s12, 1
      %p29 = por %p27, %p28
      %p30 = scmp.ne.s32.totalorder %s22, %s25
      %p31 = scmp.eq.s32.totalorder %s12, 0
      %p32 = por %p30, %p31
      %p33 = scmp.ne.s32.totalorder %s22, %s25
      %p34 = scmp.eq.s32.totalorder %s17, 1
      %p35 = por %p33, %p34
      %p36 = scmp.ne.s32.totalorder %s25, %s26
      %p37 = scmp.eq.s32.totalorder %s17, 0
      %p38 = por %p36, %p37
      %p39 = scmp.ne.s32.totalorder %s25, %s26
      %p40 = scmp.eq.s32.totalorder %s18, 1
      %p41 = por %p39, %p40
      %p43 = scmp.ne.s32.totalorder %s26, %s42
      %p44 = scmp.eq.s32.totalorder %s18, 0
      %p45 = por %p43, %p44
      %s47 = sadd.s32 %s46, 1
      %p50 = scmp.eq.s32.totalorder %s12, 1
      %p51 = scmp.ne.s32.totalorder %s46, %s48
      %p52 = scmp.eq.s32.totalorder %s12, 0
      %p53 = por %p51, %p52
      %p54 = scmp.ne.s32.totalorder %s46, %s48
      %p55 = scmp.eq.s32.totalorder %s17, 1
      %p56 = por %p54, %p55
      %p57 = scmp.ne.s32.totalorder %s48, %s49
      %p58 = scmp.eq.s32.totalorder %s17, 0
      %p59 = por %p57, %p58
      %p60 = scmp.ne.s32.totalorder %s48, %s49
      %p61 = scmp.eq.s32.totalorder %s18, 1
      %p62 = por %p60, %p61
      %p64 = scmp.ne.s32.totalorder %s49, %s63
      %p65 = scmp.eq.s32.totalorder %s18, 0
      %p66 = por %p64, %p65
      %s68 = sadd.s32 %s67, 1
      %p71 = scmp.eq.s32.totalorder %s12, 1
      %p72 = scmp.ne.s32.totalorder %s67, %s69
      %p73 = scmp.eq.s32.totalorder %s12, 0
      %p74 = por %p72, %p73
      %p75 = scmp.ne.s32.totalorder %s67, %s69
      %p76 = scmp.eq.s32.totalorder %s17, 1
      %p77 = por %p75, %p76
      %p78 = scmp.ne.s32.totalorder %s69, %s70
      %p79 = scmp.eq.s32.totalorder %s17, 0
      %p80 = por %p78, %p79
      %p81 = scmp.ne.s32.totalorder %s69, %s70
      %p82 = scmp.eq.s32.totalorder %s18, 1
      %p83 = por %p81, %p82
      %p85 = scmp.ne.s32.totalorder %s70, %s84
      %p86 = scmp.eq.s32.totalorder %s18, 0
      %p87 = por %p85, %p86
      %s89 = sadd.s32 %s88, 1
      %p92 = scmp.eq.s32.totalorder %s12, 1
      %p93 = scmp.ne.s32.totalorder %s88, %s90
      %p94 = scmp.eq.s32.totalorder %s12, 0
      %p95 = por %p93, %p94
      %p96 = scmp.ne.s32.totalorder %s88, %s90
      %p97 = scmp.eq.s32.totalorder %s17, 1
      %p98 = por %p96, %p97
      %p99 = scmp.ne.s32.totalorder %s90, %s91
      %p100 = scmp.eq.s32.totalorder %s17, 0
      %p101 = por %p99, %p100
      %p102 = scmp.ne.s32.totalorder %s90, %s91
      %p103 = scmp.eq.s32.totalorder %s18, 1
      %p104 = por %p102, %p103
      %p106 = scmp.ne.s32.totalorder %s91, %s105
      %p107 = scmp.eq.s32.totalorder %s18, 0
      %p108 = por %p106, %p107
      %s110 = sadd.s32 %s109, 1
      %p113 = scmp.eq.s32.totalorder %s12, 1
      %p114 = scmp.ne.s32.totalorder %s109, %s111
      %p115 = scmp.eq.s32.totalorder %s12, 0
      %p116 = por %p114, %p115
      %p117 = scmp.ne.s32.totalorder %s109, %s111
      %p118 = scmp.eq.s32.totalorder %s17, 1
      %p119 = por %p117, %p118
      %p120 = scmp.ne.s32.totalorder %s111, %s112
      %p121 = scmp.eq.s32.totalorder %s17, 0
      %p122 = por %p120, %p121
      %p123 = scmp.ne.s32.totalorder %s111, %s112
      %p124 = scmp.eq.s32.totalorder %s18, 1
      %p125 = por %p123, %p124
      %p127 = scmp.ne.s32.totalorder %s112, %s126
      %p128 = scmp.eq.s32.totalorder %s18, 0
      %p129 = por %p127, %p128
      %s131 = sadd.s32 %s130, 1
      %p134 = scmp.eq.s32.totalorder %s12, 1
      %p135 = scmp.ne.s32.totalorder %s130, %s132
      %p136 = scmp.eq.s32.totalorder %s12, 0
      %p137 = por %p135, %p136
      %p138 = scmp.ne.s32.totalorder %s130, %s132
      %p139 = scmp.eq.s32.totalorder %s17, 1
      %p140 = por %p138, %p139
      %p141 = scmp.ne.s32.totalorder %s132, %s133
      %p142 = scmp.eq.s32.totalorder %s17, 0
      %p143 = por %p141, %p142
      %p144 = scmp.ne.s32.totalorder %s132, %s133
      %p145 = scmp.eq.s32.totalorder %s18, 1
      %p146 = por %p144, %p145
      %p148 = scmp.ne.s32.totalorder %s133, %s147
      %p149 = scmp.eq.s32.totalorder %s18, 0
      %p150 = por %p148, %p149
      %p151 = scmp.le.s32.totalorder 1, %s12
      %p152 = scmp.lt.s32.totalorder %s12, 3
      %p153 = pnand %p151, %p152
      %p154 = pneg %p153
      // Predicated region
      $region9: #{bilstm_forward.9} parent=5 // pred_check
        _
      $region10: #{bilstm_forward.9} parent=5 // pred_check_branch
        %156 = sbr.rel (%p153) target = $region12
      $region11: #{bilstm_forward.9} parent=5 // pred_region
        %s157 = ssub.s32 %s12, 1
        // Predicated region
        $region13: #{bilstm_forward.9} parent=11 // pred_check
          %p158 = pneg %p59
        $region14: #{bilstm_forward.9} parent=11 // pred_check_branch
          %160 = sbr.rel (%p158) target = $region16
        $region15: #{bilstm_forward.9} parent=11 // pred_region
          _
        $region16: #{bilstm_forward.9} parent=11 // pred_fallthru
          _
        // Predicated region
        $region17: #{bilstm_forward.9} parent=11 // pred_check
          %p161 = pneg %p80
        $region18: #{bilstm_forward.9} parent=11 // pred_check_branch
          %163 = sbr.rel (%p161) target = $region20
        $region19: #{bilstm_forward.9} parent=11 // pred_region
          _
        $region20: #{bilstm_forward.9} parent=11 // pred_fallthru
          _
        // Predicated region
        $region21: #{bilstm_forward.9} parent=11 // pred_check
          %p164 = pneg %p101
        $region22: #{bilstm_forward.9} parent=11 // pred_check_branch
          %166 = sbr.rel (%p164) target = $region24
        $region23: #{bilstm_forward.9} parent=11 // pred_region
          _
        $region24: #{bilstm_forward.9} parent=11 // pred_fallthru
          _
        // Predicated region
        $region25: #{bilstm_forward.9} parent=11 // pred_check
          %p167 = pneg %p122
        $region26: #{bilstm_forward.9} parent=11 // pred_check_branch
          %169 = sbr.rel (%p167) target = $region28
        $region27: #{bilstm_forward.9} parent=11 // pred_region
          _
        $region28: #{bilstm_forward.9} parent=11 // pred_fallthru
          _
      $region12: #{bilstm_forward.9} parent=5 // pred_fallthru
        _
      %p170 = scmp.lt.s32.totalorder %s12, 2
      // Predicated region
      $region29: #{bilstm_forward.9} parent=5 // pred_check
        %p171 = pneg %p170
      $region30: #{bilstm_forward.9} parent=5 // pred_check_branch
        %173 = sbr.rel (%p171) target = $region32
      $region31: #{bilstm_forward.9} parent=5 // pred_region
        // Predicated region
        $region33: #{bilstm_forward.9} parent=31 // pred_check
          %p174 = pneg %p32
        $region34: #{bilstm_forward.9} parent=31 // pred_check_branch
          %176 = sbr.rel (%p174) target = $region36
        $region35: #{bilstm_forward.9} parent=31 // pred_region
          %s177 = smul.u32 4, %s12
          %p178 = scmp.lt.s32.totalorder %s177, 7
          %s179 = scalar_select %p178, %s177, 7
          %s180 = smul.addr %s179, 4
          %s181 = smul.addr %s180, 2
          %s182 = scalar_lea.vmem %s0, %s181
          %s183 = smul.u32 4, %s12
        $region36: #{bilstm_forward.9} parent=31 // pred_fallthru
          _
      $region32: #{bilstm_forward.9} parent=5 // pred_fallthru
        _
      %p184 = scmp.le.s32.totalorder 1, %s12
      %p185 = scmp.lt.s32.totalorder %s12, 3
      %p186 = pnand %p184, %p185
      %p187 = pneg %p186
      // Predicated region
      $region37: #{bilstm_forward.9} parent=5 // pred_check
        _
      $region38: #{bilstm_forward.9} parent=5 // pred_check_branch
        %189 = sbr.rel (%p186) target = $region40
      $region39: #{bilstm_forward.9} parent=5 // pred_region
        %s190 = ssub.s32 %s12, 1
        %s191 = smul.u32 4, %s17
        %p192 = scmp.lt.s32.totalorder %s191, 7
        %s193 = scalar_select %p192, %s191, 7
        %s194 = smul.addr %s193, 4
        %s195 = smul.addr %s194, 2
        %s196 = scalar_lea.vmem %s0, %s195
        %p197 = pneg %p38
        %p198 = pneg %p35
        %p199 = pneg %p59
        %p200 = pneg %p56
        %p201 = pneg %p80
        %p202 = pneg %p77
        %p203 = pneg %p101
        %p204 = pneg %p98
        %p205 = pneg %p122
        %p206 = pneg %p119
        %p207 = pneg %p143
        %p208 = pneg %p140
        %s209 = smul.u32 4, %s17
        %p210 = scmp.lt.s32.totalorder %s209, 7
        %s211 = scalar_select %p210, %s209, 7
        %s212 = smul.addr %s211, 4
        %s213 = smul.addr %s212, 2
        %s214 = scalar_lea.vmem %s0, %s213
        %s215 = smul.u32 4, %s17
        %p216 = scmp.eq.s32.totalorder %s17, 0
        // Predicated region
        $region41: #{bilstm_forward.9} parent=39 // pred_check
          %p217 = pneg %p216
        $region42: #{bilstm_forward.9} parent=39 // pred_check_branch
          %219 = sbr.rel (%p217) target = $region44
        $region43: #{bilstm_forward.9} parent=39 // pred_region
          %220 = vst [vmem:[#allocation2] sm:$0x3] 0.0
          %221 = vst [vmem:[#allocation3] sm:$0x3] 0.0
        $region44: #{bilstm_forward.9} parent=39 // pred_fallthru
          _
        %v222 = vld [vmem:[%s2] sm:$0xff]
        %v223 = vld [vmem:[%s2 + $0x8] sm:$0xff]
        %v224 = vld [vmem:[%s2 + $0x10] sm:$0xff]
        %v225 = vld [vmem:[%s2 + $0x18] sm:$0xff]
        %v226 = vld [vmem:[%s2 + $0x20] sm:$0xff]
        %v227 = vld [vmem:[%s2 + $0x28] sm:$0xff]
        %v228 = vld [vmem:[%s2 + $0x30] sm:$0xff]
        %v229 = vld [vmem:[%s2 + $0x38] sm:$0xff]
        %v230 = vld [vmem:[%s2 + $0x40] sm:$0xff]
        %v231 = vld [vmem:[%s2 + $0x48] sm:$0xff]
        %v232 = vld [vmem:[%s2 + $0x50] sm:$0xff]
        %v233 = vld [vmem:[%s2 + $0x58] sm:$0xff]
        %v234 = vld [vmem:[%s2 + $0x60] sm:$0xff]
        %v235 = vld [vmem:[%s2 + $0x68] sm:$0xff]
        %v236 = vld [vmem:[%s2 + $0x70] sm:$0xff]
        %v237 = vld [vmem:[%s2 + $0x78] sm:$0xff]
        %v238 = vld [vmem:[%s2 + $0x80] sm:$0xff]
        %v239 = vld [vmem:[%s2 + $0x88] sm:$0xff]
        %v240 = vld [vmem:[%s2 + $0x90] sm:$0xff]
        %v241 = vld [vmem:[%s2 + $0x98] sm:$0xff]
        %v242 = vld [vmem:[%s2 + $0xa0] sm:$0xff]
        %v243 = vld [vmem:[%s2 + $0xa8] sm:$0xff]
        %v244 = vld [vmem:[%s2 + $0xb0] sm:$0xff]
        %v245 = vld [vmem:[%s2 + $0xb8] sm:$0xff]
        %v246 = vld [vmem:[%s2 + $0xc0] sm:$0xff]
        %v247 = vld [vmem:[%s2 + $0xc8] sm:$0xff]
        %v248 = vld [vmem:[%s2 + $0xd0] sm:$0xff]
        %v249 = vld [vmem:[%s2 + $0xd8] sm:$0xff]
        %v250 = vld [vmem:[%s2 + $0xe0] sm:$0xff]
        %v251 = vld [vmem:[%s2 + $0xe8] sm:$0xff]
        %v252 = vld [vmem:[%s2 + $0xf0] sm:$0xff]
        %v253 = vld [vmem:[%s2 + $0xf8] sm:$0xff]
        %v254 = vld [vmem:[%s2 + $0x100] sm:$0xff]
        %v255 = vld [vmem:[%s2 + $0x108] sm:$0xff]
        %v256 = vld [vmem:[%s2 + $0x110] sm:$0xff]
        %v257 = vld [vmem:[%s2 + $0x118] sm:$0xff]
        %v258 = vld [vmem:[%s2 + $0x120] sm:$0xff]
        %v259 = vld [vmem:[%s2 + $0x128] sm:$0xff]
        %v260 = vld [vmem:[%s2 + $0x130] sm:$0xff]
        %v261 = vld [vmem:[%s2 + $0x138] sm:$0xff]
        %v262 = vld [vmem:[%s2 + $0x140] sm:$0xff]
        %v263 = vld [vmem:[%s2 + $0x148] sm:$0xff]
        %v264 = vld [vmem:[%s2 + $0x150] sm:$0xff]
        %v265 = vld [vmem:[%s2 + $0x158] sm:$0xff]
        %v266 = vld [vmem:[%s2 + $0x160] sm:$0xff]
        %v267 = vld [vmem:[%s2 + $0x168] sm:$0xff]
        %v268 = vld [vmem:[%s2 + $0x170] sm:$0xff]
        %v269 = vld [vmem:[%s2 + $0x178] sm:$0xff]
        %v270 = vld [vmem:[%s2 + $0x180] sm:$0xff]
        %v271 = vld [vmem:[%s2 + $0x188] sm:$0xff]
        %v272 = vld [vmem:[%s2 + $0x190] sm:$0xff]
        %v273 = vld [vmem:[%s2 + $0x198] sm:$0xff]
        %v274 = vld [vmem:[%s2 + $0x1a0] sm:$0xff]
        %v275 = vld [vmem:[%s2 + $0x1a8] sm:$0xff]
        %v276 = vld [vmem:[%s2 + $0x1b0] sm:$0xff]
        %v277 = vld [vmem:[%s2 + $0x1b8] sm:$0xff]
        %v278 = vld [vmem:[%s2 + $0x1c0] sm:$0xff]
        %v279 = vld [vmem:[%s2 + $0x1c8] sm:$0xff]
        %v280 = vld [vmem:[%s2 + $0x1d0] sm:$0xff]
        %v281 = vld [vmem:[%s2 + $0x1d8] sm:$0xff]
        %v282 = vld [vmem:[%s2 + $0x1e0] sm:$0xff]
        %v283 = vld [vmem:[%s2 + $0x1e8] sm:$0xff]
        %v284 = vld [vmem:[%s2 + $0x1f0] sm:$0xff]
        %v285 = vld [vmem:[%s2 + $0x1f8] sm:$0xff]
        %v286 = vld [vmem:[#allocation2] sm:$0x3]
        %v287 = vld [vmem:[#allocation3] sm:$0x3]
        %v288 = vld [vmem:[%s214] sm:$0xff]
        %289 = vmatprep.subr.mxu0 %v283
        %290 = vmatpush1.msra.mxu0 %v282
        %291 = vmatprep.subr.mxu0 %v279
        %292 = vmatpush1.msra.mxu0 %v278
        %293 = vmatprep.subr.mxu0 %v275
        %294 = vmatpush1.msra.mxu0 %v274
        %295 = vmatprep.subr.mxu0 %v271
        %296 = vmatpush1.msra.mxu0 %v270
        %297 = vmatprep.subr.mxu0 %v267
        %298 = vmatpush1.msra.mxu0 %v266
        %299 = vmatprep.subr.mxu0 %v263
        %300 = vmatpush1.msra.mxu0 %v262
        %301 = vmatprep.subr.mxu0 %v259
        %302 = vmatpush1.msra.mxu0 %v258
        %303 = vmatprep.subr.mxu0 %v255
        %304 = vmatpush1.msra.mxu0 %v254
        %305 = vmatprep.subr.mxu0 %v251
        %306 = vmatpush1.msra.mxu0 %v250
        %307 = vmatprep.subr.mxu0 %v247
        %308 = vmatpush1.msra.mxu0 %v246
        %309 = vmatprep.subr.mxu0 %v243
        %310 = vmatpush1.msra.mxu0 %v242
        %311 = vmatprep.subr.mxu0 %v239
        %312 = vmatpush1.msra.mxu0 %v238
        %313 = vmatprep.subr.mxu0 %v235
        %314 = vmatpush1.msra.mxu0 %v234
        %315 = vmatprep.subr.mxu0 %v231
        %316 = vmatpush1.msra.mxu0 %v230
        %317 = vmatprep.subr.mxu0 %v227
        %318 = vmatpush1.msra.mxu0 %v226
        %319 = vmatprep.subr.mxu0 %v223
        %320 = vmatpush1.msra.mxu0 %v222
        %321 = vmatprep.subr.mxu0 0.0
        %322 = vmatpush2.msra.mxu0 0.0
        %323 = vmatprep.subr.mxu0 0.0
        %324 = vmatpush2.msra.mxu0 0.0
        %325 = vmatprep.subr.mxu0 0.0
        %326 = vmatpush2.msra.mxu0 0.0
        %327 = vmatprep.subr.mxu0 0.0
        %328 = vmatpush2.msra.mxu0 0.0
        %329 = vmatprep.subr.mxu0 0.0
        %330 = vmatpush2.msra.mxu0 0.0
        %331 = vmatprep.subr.mxu0 0.0
        %332 = vmatpush2.msra.mxu0 0.0
        %333 = vmatprep.subr.mxu0 0.0
        %334 = vmatpush2.msra.mxu0 0.0
        %335 = vmatprep.subr.mxu0 0.0
        %336 = vmatpush2.msra.mxu0 0.0
        %337 = vmatprep.subr.mxu0 0.0
        %338 = vmatpush2.msra.mxu0 0.0
        %339 = vmatprep.subr.mxu0 0.0
        %340 = vmatpush2.msra.mxu0 0.0
        %341 = vmatprep.subr.mxu0 0.0
        %342 = vmatpush2.msra.mxu0 0.0
        %343 = vmatprep.subr.mxu0 0.0
        %344 = vmatpush2.msra.mxu0 0.0
        %345 = vmatprep.subr.mxu0 0.0
        %346 = vmatpush2.msra.mxu0 0.0
        %347 = vmatprep.subr.mxu0 0.0
        %348 = vmatpush2.msra.mxu0 0.0
        %349 = vmatprep.subr.mxu0 0.0
        %350 = vmatpush2.msra.mxu0 0.0
        %351 = vmatprep.subr.mxu0 0.0
        %352 = vmatpush2.msra.mxu0 0.0
        %353 = vmatprep.mubr.f32.mxu0 0.0
        %354 = vmatmul.mubr.f32.gmra.mxu0 %v286
        %v355 = vpop.f32.mrf.mxu0
        %v356 = vadd.f32 0.0, %v355
        %v357 = vpop.f32.mrf.mxu0
        %v358 = vadd.f32 0.0, %v357
        %359 = vdwg.mxu0
        %360 = vmatprep.subr.mxu0 %v285
        %361 = vmatpush1.msra.mxu0 %v284
        %362 = vmatprep.subr.mxu0 %v281
        %363 = vmatpush1.msra.mxu0 %v280
        %364 = vmatprep.subr.mxu0 %v277
        %365 = vmatpush1.msra.mxu0 %v276
        %366 = vmatprep.subr.mxu0 %v273
        %367 = vmatpush1.msra.mxu0 %v272
        %368 = vmatprep.subr.mxu0 %v269
        %369 = vmatpush1.msra.mxu0 %v268
        %370 = vmatprep.subr.mxu0 %v265
        %371 = vmatpush1.msra.mxu0 %v264
        %372 = vmatprep.subr.mxu0 %v261
        %373 = vmatpush1.msra.mxu0 %v260
        %374 = vmatprep.subr.mxu0 %v257
        %375 = vmatpush1.msra.mxu0 %v256
        %376 = vmatprep.subr.mxu0 %v253
        %377 = vmatpush1.msra.mxu0 %v252
        %378 = vmatprep.subr.mxu0 %v249
        %379 = vmatpush1.msra.mxu0 %v248
        %380 = vmatprep.subr.mxu0 %v245
        %381 = vmatpush1.msra.mxu0 %v244
        %382 = vmatprep.subr.mxu0 %v241
        %383 = vmatpush1.msra.mxu0 %v240
        %384 = vmatprep.subr.mxu0 %v237
        %385 = vmatpush1.msra.mxu0 %v236
        %386 = vmatprep.subr.mxu0 %v233
        %387 = vmatpush1.msra.mxu0 %v232
        %388 = vmatprep.subr.mxu0 %v229
        %389 = vmatpush1.msra.mxu0 %v228
        %390 = vmatprep.subr.mxu0 %v225
        %391 = vmatpush1.msra.mxu0 %v224
        %392 = vmatprep.subr.mxu0 0.0
        %393 = vmatpush2.msra.mxu0 0.0
        %394 = vmatprep.subr.mxu0 0.0
        %395 = vmatpush2.msra.mxu0 0.0
        %396 = vmatprep.subr.mxu0 0.0
        %397 = vmatpush2.msra.mxu0 0.0
        %398 = vmatprep.subr.mxu0 0.0
        %399 = vmatpush2.msra.mxu0 0.0
        %400 = vmatprep.subr.mxu0 0.0
        %401 = vmatpush2.msra.mxu0 0.0
        %402 = vmatprep.subr.mxu0 0.0
        %403 = vmatpush2.msra.mxu0 0.0
        %404 = vmatprep.subr.mxu0 0.0
        %405 = vmatpush2.msra.mxu0 0.0
        %406 = vmatprep.subr.mxu0 0.0
        %407 = vmatpush2.msra.mxu0 0.0
        %408 = vmatprep.subr.mxu0 0.0
        %409 = vmatpush2.msra.mxu0 0.0
        %410 = vmatprep.subr.mxu0 0.0
        %411 = vmatpush2.msra.mxu0 0.0
        %412 = vmatprep.subr.mxu0 0.0
        %413 = vmatpush2.msra.mxu0 0.0
        %414 = vmatprep.subr.mxu0 0.0
        %415 = vmatpush2.msra.mxu0 0.0
        %416 = vmatprep.subr.mxu0 0.0
        %417 = vmatpush2.msra.mxu0 0.0
        %418 = vmatprep.subr.mxu0 0.0
        %419 = vmatpush2.msra.mxu0 0.0
        %420 = vmatprep.subr.mxu0 0.0
        %421 = vmatpush2.msra.mxu0 0.0
        %422 = vmatprep.subr.mxu0 0.0
        %423 = vmatpush2.msra.mxu0 0.0
        %424 = vmatprep.mubr.f32.mxu0 0.0
        %425 = vmatmul.mubr.f32.gmra.mxu0 %v286
        %v426 = vpop.f32.mrf.mxu0
        %v427 = vadd.f32 0.0, %v426
        %v428 = vpop.f32.mrf.mxu0
        %v429 = vadd.f32 0.0, %v428
        %430 = vdwg.mxu0
        %v435 = vcombine.low %v356, %v358
        %v436 = vcombine.low %v427, %v429
        %v438 = vunpack.c.l.s4 1983009808
        %v439 = vunpack.c.0.s8 %v438
        %v440 = vlaneseq
        %v441 = vshrl.u32 %v440, 7
        %v442 = vsub.s32 %v439, %v441
        %v443 = vrot.slane %v435, %v442
        %v445 = vunpack.c.l.s4 1983009808
        %v446 = vunpack.c.0.s8 %v445
        %v447 = vlaneseq
        %v448 = vshrl.u32 %v447, 7
        %v449 = vsub.s32 %v446, %v448
        %v450 = vrot.slane %v436, %v449
        %v451 = vcombine.low %v443, %v450
        %v453 = vadd.f32 %v288, %v451
        %v454 = vxor.u32 %v453, 2147483648
        %v455 = vmul.f32 %v454, 1.442695
        %v456 = vpow.pop %v455
        %v457 = vadd.f32 %v456, 1.0
        %v458 = vrcp.pop %v457
        %v459 = vmul.f32 1.0, %v458
        %v461 = vrot.slane %v453, 2
        %v463 = vxor.u32 %v461, 2147483648
        %v464 = vmul.f32 %v463, 1.442695
        %v465 = vpow.pop %v464
        %v466 = vadd.f32 %v465, 1.0
        %v467 = vrcp.pop %v466
        %v468 = vmul.f32 1.0, %v467
        %v469 = vrot.slane %v453, 4
        %v471 = vtanh.pop %v469
        %v472 = vrot.slane %v453, 6
        %v474 = vxor.u32 %v472, 2147483648
        %v475 = vmul.f32 %v474, 1.442695
        %v476 = vpow.pop %v475
        %v477 = vadd.f32 %v476, 1.0
        %v478 = vrcp.pop %v477
        %v479 = vmul.f32 1.0, %v478
        %v480 = vmul.f32 %v468, %v287
        %v481 = vmul.f32 %v459, %v471
        %v482 = vadd.f32 %v480, %v481
        %v483 = vtanh.pop %v482
        %v484 = vmul.f32 %v479, %v483
        %s485 = scalar_lea.vmem %s214, 8
        %v486 = vld [vmem:[%s485] sm:$0xff]
        %487 = vmatprep.subr.mxu0 %v283
        %488 = vmatpush1.msra.mxu0 %v282
        %489 = vmatprep.subr.mxu0 %v279
        %490 = vmatpush1.msra.mxu0 %v278
        %491 = vmatprep.subr.mxu0 %v275
        %492 = vmatpush1.msra.mxu0 %v274
        %493 = vmatprep.subr.mxu0 %v271
        %494 = vmatpush1.msra.mxu0 %v270
        %495 = vmatprep.subr.mxu0 %v267
        %496 = vmatpush1.msra.mxu0 %v266
        %497 = vmatprep.subr.mxu0 %v263
        %498 = vmatpush1.msra.mxu0 %v262
        %499 = vmatprep.subr.mxu0 %v259
        %500 = vmatpush1.msra.mxu0 %v258
        %501 = vmatprep.subr.mxu0 %v255
        %502 = vmatpush1.msra.mxu0 %v254
        %503 = vmatprep.subr.mxu0 %v251
        %504 = vmatpush1.msra.mxu0 %v250
        %505 = vmatprep.subr.mxu0 %v247
        %506 = vmatpush1.msra.mxu0 %v246
        %507 = vmatprep.subr.mxu0 %v243
        %508 = vmatpush1.msra.mxu0 %v242
        %509 = vmatprep.subr.mxu0 %v239
        %510 = vmatpush1.msra.mxu0 %v238
        %511 = vmatprep.subr.mxu0 %v235
        %512 = vmatpush1.msra.mxu0 %v234
        %513 = vmatprep.subr.mxu0 %v231
        %514 = vmatpush1.msra.mxu0 %v230
        %515 = vmatprep.subr.mxu0 %v227
        %516 = vmatpush1.msra.mxu0 %v226
        %517 = vmatprep.subr.mxu0 %v223
        %518 = vmatpush1.msra.mxu0 %v222
        %519 = vmatprep.subr.mxu0 0.0
        %520 = vmatpush2.msra.mxu0 0.0
        %521 = vmatprep.subr.mxu0 0.0
        %522 = vmatpush2.msra.mxu0 0.0
        %523 = vmatprep.subr.mxu0 0.0
        %524 = vmatpush2.msra.mxu0 0.0
        %525 = vmatprep.subr.mxu0 0.0
        %526 = vmatpush2.msra.mxu0 0.0
        %527 = vmatprep.subr.mxu0 0.0
        %528 = vmatpush2.msra.mxu0 0.0
        %529 = vmatprep.subr.mxu0 0.0
        %530 = vmatpush2.msra.mxu0 0.0
        %531 = vmatprep.subr.mxu0 0.0
        %532 = vmatpush2.msra.mxu0 0.0
        %533 = vmatprep.subr.mxu0 0.0
        %534 = vmatpush2.msra.mxu0 0.0
        %535 = vmatprep.subr.mxu0 0.0
        %536 = vmatpush2.msra.mxu0 0.0
        %537 = vmatprep.subr.mxu0 0.0
        %538 = vmatpush2.msra.mxu0 0.0
        %539 = vmatprep.subr.mxu0 0.0
        %540 = vmatpush2.msra.mxu0 0.0
        %541 = vmatprep.subr.mxu0 0.0
        %542 = vmatpush2.msra.mxu0 0.0
        %543 = vmatprep.subr.mxu0 0.0
        %544 = vmatpush2.msra.mxu0 0.0
        %545 = vmatprep.subr.mxu0 0.0
        %546 = vmatpush2.msra.mxu0 0.0
        %547 = vmatprep.subr.mxu0 0.0
        %548 = vmatpush2.msra.mxu0 0.0
        %549 = vmatprep.subr.mxu0 0.0
        %550 = vmatpush2.msra.mxu0 0.0
        %551 = vmatprep.mubr.f32.mxu0 0.0
        %552 = vmatmul.mubr.f32.gmra.mxu0 %v484
        %v553 = vpop.f32.mrf.mxu0
        %v554 = vadd.f32 0.0, %v553
        %v555 = vpop.f32.mrf.mxu0
        %v556 = vadd.f32 0.0, %v555
        %557 = vdwg.mxu0
        %558 = vmatprep.subr.mxu0 %v285
        %559 = vmatpush1.msra.mxu0 %v284
        %560 = vmatprep.subr.mxu0 %v281
        %561 = vmatpush1.msra.mxu0 %v280
        %562 = vmatprep.subr.mxu0 %v277
        %563 = vmatpush1.msra.mxu0 %v276
        %564 = vmatprep.subr.mxu0 %v273
        %565 = vmatpush1.msra.mxu0 %v272
        %566 = vmatprep.subr.mxu0 %v269
        %567 = vmatpush1.msra.mxu0 %v268
        %568 = vmatprep.subr.mxu0 %v265
        %569 = vmatpush1.msra.mxu0 %v264
        %570 = vmatprep.subr.mxu0 %v261
        %571 = vmatpush1.msra.mxu0 %v260
        %572 = vmatprep.subr.mxu0 %v257
        %573 = vmatpush1.msra.mxu0 %v256
        %574 = vmatprep.subr.mxu0 %v253
        %575 = vmatpush1.msra.mxu0 %v252
        %576 = vmatprep.subr.mxu0 %v249
        %577 = vmatpush1.msra.mxu0 %v248
        %578 = vmatprep.subr.mxu0 %v245
        %579 = vmatpush1.msra.mxu0 %v244
        %580 = vmatprep.subr.mxu0 %v241
        %581 = vmatpush1.msra.mxu0 %v240
        %582 = vmatprep.subr.mxu0 %v237
        %583 = vmatpush1.msra.mxu0 %v236
        %584 = vmatprep.subr.mxu0 %v233
        %585 = vmatpush1.msra.mxu0 %v232
        %586 = vmatprep.subr.mxu0 %v229
        %587 = vmatpush1.msra.mxu0 %v228
        %588 = vmatprep.subr.mxu0 %v225
        %589 = vmatpush1.msra.mxu0 %v224
        %590 = vmatprep.subr.mxu0 0.0
        %591 = vmatpush2.msra.mxu0 0.0
        %592 = vmatprep.subr.mxu0 0.0
        %593 = vmatpush2.msra.mxu0 0.0
        %594 = vmatprep.subr.mxu0 0.0
        %595 = vmatpush2.msra.mxu0 0.0
        %596 = vmatprep.subr.mxu0 0.0
        %597 = vmatpush2.msra.mxu0 0.0
        %598 = vmatprep.subr.mxu0 0.0
        %599 = vmatpush2.msra.mxu0 0.0
        %600 = vmatprep.subr.mxu0 0.0
        %601 = vmatpush2.msra.mxu0 0.0
        %602 = vmatprep.subr.mxu0 0.0
        %603 = vmatpush2.msra.mxu0 0.0
        %604 = vmatprep.subr.mxu0 0.0
        %605 = vmatpush2.msra.mxu0 0.0
        %606 = vmatprep.subr.mxu0 0.0
        %607 = vmatpush2.msra.mxu0 0.0
        %608 = vmatprep.subr.mxu0 0.0
        %609 = vmatpush2.msra.mxu0 0.0
        %610 = vmatprep.subr.mxu0 0.0
        %611 = vmatpush2.msra.mxu0 0.0
        %612 = vmatprep.subr.mxu0 0.0
        %613 = vmatpush2.msra.mxu0 0.0
        %614 = vmatprep.subr.mxu0 0.0
        %615 = vmatpush2.msra.mxu0 0.0
        %616 = vmatprep.subr.mxu0 0.0
        %617 = vmatpush2.msra.mxu0 0.0
        %618 = vmatprep.subr.mxu0 0.0
        %619 = vmatpush2.msra.mxu0 0.0
        %620 = vmatprep.subr.mxu0 0.0
        %621 = vmatpush2.msra.mxu0 0.0
        %622 = vmatprep.mubr.f32.mxu0 0.0
        %623 = vmatmul.mubr.f32.gmra.mxu0 %v484
        %v624 = vpop.f32.mrf.mxu0
        %v625 = vadd.f32 0.0, %v624
        %v626 = vpop.f32.mrf.mxu0
        %v627 = vadd.f32 0.0, %v626
        %628 = vdwg.mxu0
        %v633 = vcombine.low %v554, %v556
        %v634 = vcombine.low %v625, %v627
        %v636 = vunpack.c.l.s4 1983009808
        %v637 = vunpack.c.0.s8 %v636
        %v638 = vlaneseq
        %v639 = vshrl.u32 %v638, 7
        %v640 = vsub.s32 %v637, %v639
        %v641 = vrot.slane %v633, %v640
        %v643 = vunpack.c.l.s4 1983009808
        %v644 = vunpack.c.0.s8 %v643
        %v645 = vlaneseq
        %v646 = vshrl.u32 %v645, 7
        %v647 = vsub.s32 %v644, %v646
        %v648 = vrot.slane %v634, %v647
        %v649 = vcombine.low %v641, %v648
        %v651 = vadd.f32 %v486, %v649
        %v652 = vxor.u32 %v651, 2147483648
        %v653 = vmul.f32 %v652, 1.442695
        %v654 = vpow.pop %v653
        %v655 = vadd.f32 %v654, 1.0
        %v656 = vrcp.pop %v655
        %v657 = vmul.f32 1.0, %v656
        %v659 = vrot.slane %v651, 2
        %v661 = vxor.u32 %v659, 2147483648
        %v662 = vmul.f32 %v661, 1.442695
        %v663 = vpow.pop %v662
        %v664 = vadd.f32 %v663, 1.0
        %v665 = vrcp.pop %v664
        %v666 = vmul.f32 1.0, %v665
        %v667 = vrot.slane %v651, 4
        %v669 = vtanh.pop %v667
        %v670 = vrot.slane %v651, 6
        %v672 = vxor.u32 %v670, 2147483648
        %v673 = vmul.f32 %v672, 1.442695
        %v674 = vpow.pop %v673
        %v675 = vadd.f32 %v674, 1.0
        %v676 = vrcp.pop %v675
        %v677 = vmul.f32 1.0, %v676
        %v678 = vmul.f32 %v666, %v482
        %v679 = vmul.f32 %v657, %v669
        %v680 = vadd.f32 %v678, %v679
        %v681 = vtanh.pop %v680
        %v682 = vmul.f32 %v677, %v681
        %s683 = scalar_lea.vmem %s214, 16
        %v684 = vld [vmem:[%s683] sm:$0xff]
        %685 = vmatprep.subr.mxu0 %v283
        %686 = vmatpush1.msra.mxu0 %v282
        %687 = vmatprep.subr.mxu0 %v279
        %688 = vmatpush1.msra.mxu0 %v278
        %689 = vmatprep.subr.mxu0 %v275
        %690 = vmatpush1.msra.mxu0 %v274
        %691 = vmatprep.subr.mxu0 %v271
        %692 = vmatpush1.msra.mxu0 %v270
        %693 = vmatprep.subr.mxu0 %v267
        %694 = vmatpush1.msra.mxu0 %v266
        %695 = vmatprep.subr.mxu0 %v263
        %696 = vmatpush1.msra.mxu0 %v262
        %697 = vmatprep.subr.mxu0 %v259
        %698 = vmatpush1.msra.mxu0 %v258
        %699 = vmatprep.subr.mxu0 %v255
        %700 = vmatpush1.msra.mxu0 %v254
        %701 = vmatprep.subr.mxu0 %v251
        %702 = vmatpush1.msra.mxu0 %v250
        %703 = vmatprep.subr.mxu0 %v247
        %704 = vmatpush1.msra.mxu0 %v246
        %705 = vmatprep.subr.mxu0 %v243
        %706 = vmatpush1.msra.mxu0 %v242
        %707 = vmatprep.subr.mxu0 %v239
        %708 = vmatpush1.msra.mxu0 %v238
        %709 = vmatprep.subr.mxu0 %v235
        %710 = vmatpush1.msra.mxu0 %v234
        %711 = vmatprep.subr.mxu0 %v231
        %712 = vmatpush1.msra.mxu0 %v230
        %713 = vmatprep.subr.mxu0 %v227
        %714 = vmatpush1.msra.mxu0 %v226
        %715 = vmatprep.subr.mxu0 %v223
        %716 = vmatpush1.msra.mxu0 %v222
        %717 = vmatprep.subr.mxu0 0.0
        %718 = vmatpush2.msra.mxu0 0.0
        %719 = vmatprep.subr.mxu0 0.0
        %720 = vmatpush2.msra.mxu0 0.0
        %721 = vmatprep.subr.mxu0 0.0
        %722 = vmatpush2.msra.mxu0 0.0
        %723 = vmatprep.subr.mxu0 0.0
        %724 = vmatpush2.msra.mxu0 0.0
        %725 = vmatprep.subr.mxu0 0.0
        %726 = vmatpush2.msra.mxu0 0.0
        %727 = vmatprep.subr.mxu0 0.0
        %728 = vmatpush2.msra.mxu0 0.0
        %729 = vmatprep.subr.mxu0 0.0
        %730 = vmatpush2.msra.mxu0 0.0
        %731 = vmatprep.subr.mxu0 0.0
        %732 = vmatpush2.msra.mxu0 0.0
        %733 = vmatprep.subr.mxu0 0.0
        %734 = vmatpush2.msra.mxu0 0.0
        %735 = vmatprep.subr.mxu0 0.0
        %736 = vmatpush2.msra.mxu0 0.0
        %737 = vmatprep.subr.mxu0 0.0
        %738 = vmatpush2.msra.mxu0 0.0
        %739 = vmatprep.subr.mxu0 0.0
        %740 = vmatpush2.msra.mxu0 0.0
        %741 = vmatprep.subr.mxu0 0.0
        %742 = vmatpush2.msra.mxu0 0.0
        %743 = vmatprep.subr.mxu0 0.0
        %744 = vmatpush2.msra.mxu0 0.0
        %745 = vmatprep.subr.mxu0 0.0
        %746 = vmatpush2.msra.mxu0 0.0
        %747 = vmatprep.subr.mxu0 0.0
        %748 = vmatpush2.msra.mxu0 0.0
        %749 = vmatprep.mubr.f32.mxu0 0.0
        %750 = vmatmul.mubr.f32.gmra.mxu0 %v682
        %v751 = vpop.f32.mrf.mxu0
        %v752 = vadd.f32 0.0, %v751
        %v753 = vpop.f32.mrf.mxu0
        %v754 = vadd.f32 0.0, %v753
        %755 = vdwg.mxu0
        %756 = vmatprep.subr.mxu0 %v285
        %757 = vmatpush1.msra.mxu0 %v284
        %758 = vmatprep.subr.mxu0 %v281
        %759 = vmatpush1.msra.mxu0 %v280
        %760 = vmatprep.subr.mxu0 %v277
        %761 = vmatpush1.msra.mxu0 %v276
        %762 = vmatprep.subr.mxu0 %v273
        %763 = vmatpush1.msra.mxu0 %v272
        %764 = vmatprep.subr.mxu0 %v269
        %765 = vmatpush1.msra.mxu0 %v268
        %766 = vmatprep.subr.mxu0 %v265
        %767 = vmatpush1.msra.mxu0 %v264
        %768 = vmatprep.subr.mxu0 %v261
        %769 = vmatpush1.msra.mxu0 %v260
        %770 = vmatprep.subr.mxu0 %v257
        %771 = vmatpush1.msra.mxu0 %v256
        %772 = vmatprep.subr.mxu0 %v253
        %773 = vmatpush1.msra.mxu0 %v252
        %774 = vmatprep.subr.mxu0 %v249
        %775 = vmatpush1.msra.mxu0 %v248
        %776 = vmatprep.subr.mxu0 %v245
        %777 = vmatpush1.msra.mxu0 %v244
        %778 = vmatprep.subr.mxu0 %v241
        %779 = vmatpush1.msra.mxu0 %v240
        %780 = vmatprep.subr.mxu0 %v237
        %781 = vmatpush1.msra.mxu0 %v236
        %782 = vmatprep.subr.mxu0 %v233
        %783 = vmatpush1.msra.mxu0 %v232
        %784 = vmatprep.subr.mxu0 %v229
        %785 = vmatpush1.msra.mxu0 %v228
        %786 = vmatprep.subr.mxu0 %v225
        %787 = vmatpush1.msra.mxu0 %v224
        %788 = vmatprep.subr.mxu0 0.0
        %789 = vmatpush2.msra.mxu0 0.0
        %790 = vmatprep.subr.mxu0 0.0
        %791 = vmatpush2.msra.mxu0 0.0
        %792 = vmatprep.subr.mxu0 0.0
        %793 = vmatpush2.msra.mxu0 0.0
        %794 = vmatprep.subr.mxu0 0.0
        %795 = vmatpush2.msra.mxu0 0.0
        %796 = vmatprep.subr.mxu0 0.0
        %797 = vmatpush2.msra.mxu0 0.0
        %798 = vmatprep.subr.mxu0 0.0
        %799 = vmatpush2.msra.mxu0 0.0
        %800 = vmatprep.subr.mxu0 0.0
        %801 = vmatpush2.msra.mxu0 0.0
        %802 = vmatprep.subr.mxu0 0.0
        %803 = vmatpush2.msra.mxu0 0.0
        %804 = vmatprep.subr.mxu0 0.0
        %805 = vmatpush2.msra.mxu0 0.0
        %806 = vmatprep.subr.mxu0 0.0
        %807 = vmatpush2.msra.mxu0 0.0
        %808 = vmatprep.subr.mxu0 0.0
        %809 = vmatpush2.msra.mxu0 0.0
        %810 = vmatprep.subr.mxu0 0.0
        %811 = vmatpush2.msra.mxu0 0.0
        %812 = vmatprep.subr.mxu0 0.0
        %813 = vmatpush2.msra.mxu0 0.0
        %814 = vmatprep.subr.mxu0 0.0
        %815 = vmatpush2.msra.mxu0 0.0
        %816 = vmatprep.subr.mxu0 0.0
        %817 = vmatpush2.msra.mxu0 0.0
        %818 = vmatprep.subr.mxu0 0.0
        %819 = vmatpush2.msra.mxu0 0.0
        %820 = vmatprep.mubr.f32.mxu0 0.0
        %821 = vmatmul.mubr.f32.gmra.mxu0 %v682
        %v822 = vpop.f32.mrf.mxu0
        %v823 = vadd.f32 0.0, %v822
        %v824 = vpop.f32.mrf.mxu0
        %v825 = vadd.f32 0.0, %v824
        %826 = vdwg.mxu0
        %v831 = vcombine.low %v752, %v754
        %v832 = vcombine.low %v823, %v825
        %v834 = vunpack.c.l.s4 1983009808
        %v835 = vunpack.c.0.s8 %v834
        %v836 = vlaneseq
        %v837 = vshrl.u32 %v836, 7
        %v838 = vsub.s32 %v835, %v837
        %v839 = vrot.slane %v831, %v838
        %v841 = vunpack.c.l.s4 1983009808
        %v842 = vunpack.c.0.s8 %v841
        %v843 = vlaneseq
        %v844 = vshrl.u32 %v843, 7
        %v845 = vsub.s32 %v842, %v844
        %v846 = vrot.slane %v832, %v845
        %v847 = vcombine.low %v839, %v846
        %v849 = vadd.f32 %v684, %v847
        %v850 = vxor.u32 %v849, 2147483648
        %v851 = vmul.f32 %v850, 1.442695
        %v852 = vpow.pop %v851
        %v853 = vadd.f32 %v852, 1.0
        %v854 = vrcp.pop %v853
        %v855 = vmul.f32 1.0, %v854
        %v857 = vrot.slane %v849, 2
        %v859 = vxor.u32 %v857, 2147483648
        %v860 = vmul.f32 %v859, 1.442695
        %v861 = vpow.pop %v860
        %v862 = vadd.f32 %v861, 1.0
        %v863 = vrcp.pop %v862
        %v864 = vmul.f32 1.0, %v863
        %v865 = vrot.slane %v849, 4
        %v867 = vtanh.pop %v865
        %v868 = vrot.slane %v849, 6
        %v870 = vxor.u32 %v868, 2147483648
        %v871 = vmul.f32 %v870, 1.442695
        %v872 = vpow.pop %v871
        %v873 = vadd.f32 %v872, 1.0
        %v874 = vrcp.pop %v873
        %v875 = vmul.f32 1.0, %v874
        %v876 = vmul.f32 %v864, %v680
        %v877 = vmul.f32 %v855, %v867
        %v878 = vadd.f32 %v876, %v877
        %v879 = vtanh.pop %v878
        %v880 = vmul.f32 %v875, %v879
        %s881 = scalar_lea.vmem %s214, 24
        %v882 = vld [vmem:[%s881] sm:$0xff]
        %883 = vmatprep.subr.mxu0 %v283
        %884 = vmatpush1.msra.mxu0 %v282
        %885 = vmatprep.subr.mxu0 %v279
        %886 = vmatpush1.msra.mxu0 %v278
        %887 = vmatprep.subr.mxu0 %v275
        %888 = vmatpush1.msra.mxu0 %v274
        %889 = vmatprep.subr.mxu0 %v271
        %890 = vmatpush1.msra.mxu0 %v270
        %891 = vmatprep.subr.mxu0 %v267
        %892 = vmatpush1.msra.mxu0 %v266
        %893 = vmatprep.subr.mxu0 %v263
        %894 = vmatpush1.msra.mxu0 %v262
        %895 = vmatprep.subr.mxu0 %v259
        %896 = vmatpush1.msra.mxu0 %v258
        %897 = vmatprep.subr.mxu0 %v255
        %898 = vmatpush1.msra.mxu0 %v254
        %899 = vmatprep.subr.mxu0 %v251
        %900 = vmatpush1.msra.mxu0 %v250
        %901 = vmatprep.subr.mxu0 %v247
        %902 = vmatpush1.msra.mxu0 %v246
        %903 = vmatprep.subr.mxu0 %v243
        %904 = vmatpush1.msra.mxu0 %v242
        %905 = vmatprep.subr.mxu0 %v239
        %906 = vmatpush1.msra.mxu0 %v238
        %907 = vmatprep.subr.mxu0 %v235
        %908 = vmatpush1.msra.mxu0 %v234
        %909 = vmatprep.subr.mxu0 %v231
        %910 = vmatpush1.msra.mxu0 %v230
        %911 = vmatprep.subr.mxu0 %v227
        %912 = vmatpush1.msra.mxu0 %v226
        %913 = vmatprep.subr.mxu0 %v223
        %914 = vmatpush1.msra.mxu0 %v222
        %915 = vmatprep.subr.mxu0 0.0
        %916 = vmatpush2.msra.mxu0 0.0
        %917 = vmatprep.subr.mxu0 0.0
        %918 = vmatpush2.msra.mxu0 0.0
        %919 = vmatprep.subr.mxu0 0.0
        %920 = vmatpush2.msra.mxu0 0.0
        %921 = vmatprep.subr.mxu0 0.0
        %922 = vmatpush2.msra.mxu0 0.0
        %923 = vmatprep.subr.mxu0 0.0
        %924 = vmatpush2.msra.mxu0 0.0
        %925 = vmatprep.subr.mxu0 0.0
        %926 = vmatpush2.msra.mxu0 0.0
        %927 = vmatprep.subr.mxu0 0.0
        %928 = vmatpush2.msra.mxu0 0.0
        %929 = vmatprep.subr.mxu0 0.0
        %930 = vmatpush2.msra.mxu0 0.0
        %931 = vmatprep.subr.mxu0 0.0
        %932 = vmatpush2.msra.mxu0 0.0
        %933 = vmatprep.subr.mxu0 0.0
        %934 = vmatpush2.msra.mxu0 0.0
        %935 = vmatprep.subr.mxu0 0.0
        %936 = vmatpush2.msra.mxu0 0.0
        %937 = vmatprep.subr.mxu0 0.0
        %938 = vmatpush2.msra.mxu0 0.0
        %939 = vmatprep.subr.mxu0 0.0
        %940 = vmatpush2.msra.mxu0 0.0
        %941 = vmatprep.subr.mxu0 0.0
        %942 = vmatpush2.msra.mxu0 0.0
        %943 = vmatprep.subr.mxu0 0.0
        %944 = vmatpush2.msra.mxu0 0.0
        %945 = vmatprep.subr.mxu0 0.0
        %946 = vmatpush2.msra.mxu0 0.0
        %947 = vmatprep.mubr.f32.mxu0 0.0
        %948 = vmatmul.mubr.f32.gmra.mxu0 %v880
        %v949 = vpop.f32.mrf.mxu0
        %v950 = vadd.f32 0.0, %v949
        %v951 = vpop.f32.mrf.mxu0
        %v952 = vadd.f32 0.0, %v951
        %953 = vdwg.mxu0
        %954 = vmatprep.subr.mxu0 %v285
        %955 = vmatpush1.msra.mxu0 %v284
        %956 = vmatprep.subr.mxu0 %v281
        %957 = vmatpush1.msra.mxu0 %v280
        %958 = vmatprep.subr.mxu0 %v277
        %959 = vmatpush1.msra.mxu0 %v276
        %960 = vmatprep.subr.mxu0 %v273
        %961 = vmatpush1.msra.mxu0 %v272
        %962 = vmatprep.subr.mxu0 %v269
        %963 = vmatpush1.msra.mxu0 %v268
        %964 = vmatprep.subr.mxu0 %v265
        %965 = vmatpush1.msra.mxu0 %v264
        %966 = vmatprep.subr.mxu0 %v261
        %967 = vmatpush1.msra.mxu0 %v260
        %968 = vmatprep.subr.mxu0 %v257
        %969 = vmatpush1.msra.mxu0 %v256
        %970 = vmatprep.subr.mxu0 %v253
        %971 = vmatpush1.msra.mxu0 %v252
        %972 = vmatprep.subr.mxu0 %v249
        %973 = vmatpush1.msra.mxu0 %v248
        %974 = vmatprep.subr.mxu0 %v245
        %975 = vmatpush1.msra.mxu0 %v244
        %976 = vmatprep.subr.mxu0 %v241
        %977 = vmatpush1.msra.mxu0 %v240
        %978 = vmatprep.subr.mxu0 %v237
        %979 = vmatpush1.msra.mxu0 %v236
        %980 = vmatprep.subr.mxu0 %v233
        %981 = vmatpush1.msra.mxu0 %v232
        %982 = vmatprep.subr.mxu0 %v229
        %983 = vmatpush1.msra.mxu0 %v228
        %984 = vmatprep.subr.mxu0 %v225
        %985 = vmatpush1.msra.mxu0 %v224
        %986 = vmatprep.subr.mxu0 0.0
        %987 = vmatpush2.msra.mxu0 0.0
        %988 = vmatprep.subr.mxu0 0.0
        %989 = vmatpush2.msra.mxu0 0.0
        %990 = vmatprep.subr.mxu0 0.0
        %991 = vmatpush2.msra.mxu0 0.0
        %992 = vmatprep.subr.mxu0 0.0
        %993 = vmatpush2.msra.mxu0 0.0
        %994 = vmatprep.subr.mxu0 0.0
        %995 = vmatpush2.msra.mxu0 0.0
        %996 = vmatprep.subr.mxu0 0.0
        %997 = vmatpush2.msra.mxu0 0.0
        %998 = vmatprep.subr.mxu0 0.0
        %999 = vmatpush2.msra.mxu0 0.0
        %1000 = vmatprep.subr.mxu0 0.0
        %1001 = vmatpush2.msra.mxu0 0.0
        %1002 = vmatprep.subr.mxu0 0.0
        %1003 = vmatpush2.msra.mxu0 0.0
        %1004 = vmatprep.subr.mxu0 0.0
        %1005 = vmatpush2.msra.mxu0 0.0
        %1006 = vmatprep.subr.mxu0 0.0
        %1007 = vmatpush2.msra.mxu0 0.0
        %1008 = vmatprep.subr.mxu0 0.0
        %1009 = vmatpush2.msra.mxu0 0.0
        %1010 = vmatprep.subr.mxu0 0.0
        %1011 = vmatpush2.msra.mxu0 0.0
        %1012 = vmatprep.subr.mxu0 0.0
        %1013 = vmatpush2.msra.mxu0 0.0
        %1014 = vmatprep.subr.mxu0 0.0
        %1015 = vmatpush2.msra.mxu0 0.0
        %1016 = vmatprep.subr.mxu0 0.0
        %1017 = vmatpush2.msra.mxu0 0.0
        %1018 = vmatprep.mubr.f32.mxu0 0.0
        %1019 = vmatmul.mubr.f32.gmra.mxu0 %v880
        %v1020 = vpop.f32.mrf.mxu0
        %v1021 = vadd.f32 0.0, %v1020
        %v1022 = vpop.f32.mrf.mxu0
        %v1023 = vadd.f32 0.0, %v1022
        %1024 = vdwg.mxu0
        %v1029 = vcombine.low %v950, %v952
        %v1030 = vcombine.low %v1021, %v1023
        %v1032 = vunpack.c.l.s4 1983009808
        %v1033 = vunpack.c.0.s8 %v1032
        %v1034 = vlaneseq
        %v1035 = vshrl.u32 %v1034, 7
        %v1036 = vsub.s32 %v1033, %v1035
        %v1037 = vrot.slane %v1029, %v1036
        %v1039 = vunpack.c.l.s4 1983009808
        %v1040 = vunpack.c.0.s8 %v1039
        %v1041 = vlaneseq
        %v1042 = vshrl.u32 %v1041, 7
        %v1043 = vsub.s32 %v1040, %v1042
        %v1044 = vrot.slane %v1030, %v1043
        %v1045 = vcombine.low %v1037, %v1044
        %v1047 = vadd.f32 %v882, %v1045
        %v1048 = vxor.u32 %v1047, 2147483648
        %v1049 = vmul.f32 %v1048, 1.442695
        %v1050 = vpow.pop %v1049
        %v1051 = vadd.f32 %v1050, 1.0
        %v1052 = vrcp.pop %v1051
        %v1053 = vmul.f32 1.0, %v1052
        %v1055 = vrot.slane %v1047, 2
        %v1057 = vxor.u32 %v1055, 2147483648
        %v1058 = vmul.f32 %v1057, 1.442695
        %v1059 = vpow.pop %v1058
        %v1060 = vadd.f32 %v1059, 1.0
        %v1061 = vrcp.pop %v1060
        %v1062 = vmul.f32 1.0, %v1061
        %v1063 = vrot.slane %v1047, 4
        %v1065 = vtanh.pop %v1063
        %v1066 = vrot.slane %v1047, 6
        %v1068 = vxor.u32 %v1066, 2147483648
        %v1069 = vmul.f32 %v1068, 1.442695
        %v1070 = vpow.pop %v1069
        %v1071 = vadd.f32 %v1070, 1.0
        %v1072 = vrcp.pop %v1071
        %v1073 = vmul.f32 1.0, %v1072
        %v1074 = vmul.f32 %v1062, %v878
        %v1075 = vmul.f32 %v1053, %v1065
        %v1076 = vadd.f32 %v1074, %v1075
        %v1077 = vtanh.pop %v1076
        %v1078 = vmul.f32 %v1073, %v1077
        %1079 = vst [vmem:[#allocation2] sm:$0x3] %v1078
        %1080 = vst [vmem:[#allocation3] sm:$0x3] %v1076
        %p1081 = scmp.eq.s32.totalorder %s17, 1
        // Predicated region
        $region45: #{bilstm_forward.9} parent=39 // pred_check
          %p1082 = pneg %p1081
        $region46: #{bilstm_forward.9} parent=39 // pred_check_branch
          %1084 = sbr.rel (%p1082) target = $region48
        $region47: #{bilstm_forward.9} parent=39 // pred_region
          %v1085 = vld [vmem:[%s1] sm:$0xff]
          %v1086 = vxor.u32 %v1085, 2147483648
          %v1087 = vmul.f32 %v1086, 1.442695
          %v1088 = vpow.pop %v1087
          %v1089 = vadd.f32 %v1088, 1.0
          %v1090 = vrcp.pop %v1089
          %v1091 = vmul.f32 1.0, %v1090
          %v1093 = vrot.slane %v1085, 4
          %v1095 = vtanh.pop %v1093
          %v1096 = vrot.slane %v1085, 6
          %v1098 = vxor.u32 %v1096, 2147483648
          %v1099 = vmul.f32 %v1098, 1.442695
          %v1100 = vpow.pop %v1099
          %v1101 = vadd.f32 %v1100, 1.0
          %v1102 = vrcp.pop %v1101
          %v1103 = vmul.f32 1.0, %v1102
          %v1104 = vmul.f32 %v1091, %v1095
          %v1105 = vtanh.pop %v1104
          %v1106 = vmul.f32 %v1103, %v1105
          %v1107 = vld [vmem:[%s3] sm:$0xff]
          %v1108 = vld [vmem:[%s3 + $0x8] sm:$0xff]
          %v1109 = vld [vmem:[%s3 + $0x10] sm:$0xff]
          %v1110 = vld [vmem:[%s3 + $0x18] sm:$0xff]
          %v1111 = vld [vmem:[%s3 + $0x20] sm:$0xff]
          %v1112 = vld [vmem:[%s3 + $0x28] sm:$0xff]
          %v1113 = vld [vmem:[%s3 + $0x30] sm:$0xff]
          %v1114 = vld [vmem:[%s3 + $0x38] sm:$0xff]
          %v1115 = vld [vmem:[%s3 + $0x40] sm:$0xff]
          %v1116 = vld [vmem:[%s3 + $0x48] sm:$0xff]
          %v1117 = vld [vmem:[%s3 + $0x50] sm:$0xff]
          %v1118 = vld [vmem:[%s3 + $0x58] sm:$0xff]
          %v1119 = vld [vmem:[%s3 + $0x60] sm:$0xff]
          %v1120 = vld [vmem:[%s3 + $0x68] sm:$0xff]
          %v1121 = vld [vmem:[%s3 + $0x70] sm:$0xff]
          %v1122 = vld [vmem:[%s3 + $0x78] sm:$0xff]
          %v1123 = vld [vmem:[%s3 + $0x80] sm:$0xff]
          %v1124 = vld [vmem:[%s3 + $0x88] sm:$0xff]
          %v1125 = vld [vmem:[%s3 + $0x90] sm:$0xff]
          %v1126 = vld [vmem:[%s3 + $0x98] sm:$0xff]
          %v1127 = vld [vmem:[%s3 + $0xa0] sm:$0xff]
          %v1128 = vld [vmem:[%s3 + $0xa8] sm:$0xff]
          %v1129 = vld [vmem:[%s3 + $0xb0] sm:$0xff]
          %v1130 = vld [vmem:[%s3 + $0xb8] sm:$0xff]
          %v1131 = vld [vmem:[%s3 + $0xc0] sm:$0xff]
          %v1132 = vld [vmem:[%s3 + $0xc8] sm:$0xff]
          %v1133 = vld [vmem:[%s3 + $0xd0] sm:$0xff]
          %v1134 = vld [vmem:[%s3 + $0xd8] sm:$0xff]
          %v1135 = vld [vmem:[%s3 + $0xe0] sm:$0xff]
          %v1136 = vld [vmem:[%s3 + $0xe8] sm:$0xff]
          %v1137 = vld [vmem:[%s3 + $0xf0] sm:$0xff]
          %v1138 = vld [vmem:[%s3 + $0xf8] sm:$0xff]
          %1139 = vmatprep.subr.mxu0 0.0
          %1140 = vmatpush1.msra.mxu0 %v1138
          %1141 = vmatprep.subr.mxu0 0.0
          %1142 = vmatpush1.msra.mxu0 %v1137
          %1143 = vmatprep.subr.mxu0 0.0
          %1144 = vmatpush1.msra.mxu0 %v1136
          %1145 = vmatprep.subr.mxu0 0.0
          %1146 = vmatpush1.msra.mxu0 %v1135
          %1147 = vmatprep.subr.mxu0 0.0
          %1148 = vmatpush1.msra.mxu0 %v1134
          %1149 = vmatprep.subr.mxu0 0.0
          %1150 = vmatpush1.msra.mxu0 %v1133
          %1151 = vmatprep.subr.mxu0 0.0
          %1152 = vmatpush1.msra.mxu0 %v1132
          %1153 = vmatprep.subr.mxu0 0.0
          %1154 = vmatpush1.msra.mxu0 %v1131
          %1155 = vmatprep.subr.mxu0 0.0
          %1156 = vmatpush1.msra.mxu0 %v1130
          %1157 = vmatprep.subr.mxu0 0.0
          %1158 = vmatpush1.msra.mxu0 %v1129
          %1159 = vmatprep.subr.mxu0 0.0
          %1160 = vmatpush1.msra.mxu0 %v1128
          %1161 = vmatprep.subr.mxu0 0.0
          %1162 = vmatpush1.msra.mxu0 %v1127
          %1163 = vmatprep.subr.mxu0 0.0
          %1164 = vmatpush1.msra.mxu0 %v1126
          %1165 = vmatprep.subr.mxu0 0.0
          %1166 = vmatpush1.msra.mxu0 %v1125
          %1167 = vmatprep.subr.mxu0 0.0
          %1168 = vmatpush1.msra.mxu0 %v1124
          %1169 = vmatprep.subr.mxu0 0.0
          %1170 = vmatpush1.msra.mxu0 %v1123
          %1171 = vmatprep.subr.mxu0 0.0
          %1172 = vmatpush2.msra.mxu0 0.0
          %1173 = vmatprep.subr.mxu0 0.0
          %1174 = vmatpush2.msra.mxu0 0.0
          %1175 = vmatprep.subr.mxu0 0.0
          %1176 = vmatpush2.msra.mxu0 0.0
          %1177 = vmatprep.subr.mxu0 0.0
          %1178 = vmatpush2.msra.mxu0 0.0
          %1179 = vmatprep.subr.mxu0 0.0
          %1180 = vmatpush2.msra.mxu0 0.0
          %1181 = vmatprep.subr.mxu0 0.0
          %1182 = vmatpush2.msra.mxu0 0.0
          %1183 = vmatprep.subr.mxu0 0.0
          %1184 = vmatpush2.msra.mxu0 0.0
          %1185 = vmatprep.subr.mxu0 0.0
          %1186 = vmatpush2.msra.mxu0 0.0
          %1187 = vmatprep.subr.mxu0 0.0
          %1188 = vmatpush2.msra.mxu0 0.0
          %1189 = vmatprep.subr.mxu0 0.0
          %1190 = vmatpush2.msra.mxu0 0.0
          %1191 = vmatprep.subr.mxu0 0.0
          %1192 = vmatpush2.msra.mxu0 0.0
          %1193 = vmatprep.subr.mxu0 0.0
          %1194 = vmatpush2.msra.mxu0 0.0
          %1195 = vmatprep.subr.mxu0 0.0
          %1196 = vmatpush2.msra.mxu0 0.0
          %1197 = vmatprep.subr.mxu0 0.0
          %1198 = vmatpush2.msra.mxu0 0.0
          %1199 = vmatprep.subr.mxu0 0.0
          %1200 = vmatpush2.msra.mxu0 0.0
          %1201 = vmatprep.subr.mxu0 0.0
          %1202 = vmatpush2.msra.mxu0 0.0
          %1203 = vmatprep.mubr.f32.mxu0 0.0
          %1204 = vmatmul.mubr.f32.gmra.mxu0 %v1106
          %v1205 = vpop.f32.mrf.mxu0
          %v1206 = vadd.f32 0.0, %v1205
          %v1207 = vpop.f32.mrf.mxu0
          %1208 = vdwg.mxu0
          %1209 = vmatprep.subr.mxu0 0.0
          %1210 = vmatpush1.msra.mxu0 %v1122
          %1211 = vmatprep.subr.mxu0 0.0
          %1212 = vmatpush1.msra.mxu0 %v1121
          %1213 = vmatprep.subr.mxu0 0.0
          %1214 = vmatpush1.msra.mxu0 %v1120
          %1215 = vmatprep.subr.mxu0 0.0
          %1216 = vmatpush1.msra.mxu0 %v1119
          %1217 = vmatprep.subr.mxu0 0.0
          %1218 = vmatpush1.msra.mxu0 %v1118
          %1219 = vmatprep.subr.mxu0 0.0
          %1220 = vmatpush1.msra.mxu0 %v1117
          %1221 = vmatprep.subr.mxu0 0.0
          %1222 = vmatpush1.msra.mxu0 %v1116
          %1223 = vmatprep.subr.mxu0 0.0
          %1224 = vmatpush1.msra.mxu0 %v1115
          %1225 = vmatprep.subr.mxu0 0.0
          %1226 = vmatpush1.msra.mxu0 %v1114
          %1227 = vmatprep.subr.mxu0 0.0
          %1228 = vmatpush1.msra.mxu0 %v1113
          %1229 = vmatprep.subr.mxu0 0.0
          %1230 = vmatpush1.msra.mxu0 %v1112
          %1231 = vmatprep.subr.mxu0 0.0
          %1232 = vmatpush1.msra.mxu0 %v1111
          %1233 = vmatprep.subr.mxu0 0.0
          %1234 = vmatpush1.msra.mxu0 %v1110
          %1235 = vmatprep.subr.mxu0 0.0
          %1236 = vmatpush1.msra.mxu0 %v1109
          %1237 = vmatprep.subr.mxu0 0.0
          %1238 = vmatpush1.msra.mxu0 %v1108
          %1239 = vmatprep.subr.mxu0 0.0
          %1240 = vmatpush1.msra.mxu0 %v1107
          %1241 = vmatprep.subr.mxu0 0.0
          %1242 = vmatpush2.msra.mxu0 0.0
          %1243 = vmatprep.subr.mxu0 0.0
          %1244 = vmatpush2.msra.mxu0 0.0
          %1245 = vmatprep.subr.mxu0 0.0
          %1246 = vmatpush2.msra.mxu0 0.0
          %1247 = vmatprep.subr.mxu0 0.0
          %1248 = vmatpush2.msra.mxu0 0.0
          %1249 = vmatprep.subr.mxu0 0.0
          %1250 = vmatpush2.msra.mxu0 0.0
          %1251 = vmatprep.subr.mxu0 0.0
          %1252 = vmatpush2.msra.mxu0 0.0
          %1253 = vmatprep.subr.mxu0 0.0
          %1254 = vmatpush2.msra.mxu0 0.0
          %1255 = vmatprep.subr.mxu0 0.0
          %1256 = vmatpush2.msra.mxu0 0.0
          %1257 = vmatprep.subr.mxu0 0.0
          %1258 = vmatpush2.msra.mxu0 0.0
          %1259 = vmatprep.subr.mxu0 0.0
          %1260 = vmatpush2.msra.mxu0 0.0
          %1261 = vmatprep.subr.mxu0 0.0
          %1262 = vmatpush2.msra.mxu0 0.0
          %1263 = vmatprep.subr.mxu0 0.0
          %1264 = vmatpush2.msra.mxu0 0.0
          %1265 = vmatprep.subr.mxu0 0.0
          %1266 = vmatpush2.msra.mxu0 0.0
          %1267 = vmatprep.subr.mxu0 0.0
          %1268 = vmatpush2.msra.mxu0 0.0
          %1269 = vmatprep.subr.mxu0 0.0
          %1270 = vmatpush2.msra.mxu0 0.0
          %1271 = vmatprep.subr.mxu0 0.0
          %1272 = vmatpush2.msra.mxu0 0.0
          %1273 = vmatprep.mubr.f32.mxu0 0.0
          %1274 = vmatmul.mubr.f32.gmra.mxu0 %v1078
          %v1275 = vpop.f32.mrf.mxu0
          %v1276 = vadd.f32 %v1206, %v1275
          %v1277 = vpop.f32.mrf.mxu0
          %1278 = vdwg.mxu0
          %v1279 = vld [vmem:[%s4] sm:$0x1]
          %v1281 = vlaneseq
          %v1282 = vshrl.u32 %v1281, 7
          %v1283 = vsub.s32 0, %v1282
          %v1284 = vrot.slane %v1279, %v1283
          %v1286 = vadd.f32 %v1276, %v1284
          %vm1287 = vcmask 33792
          %1288 = vst.msk [vmem:[#allocation4] sm:$0x3] %vm1287, %v1286
        $region48: #{bilstm_forward.9} parent=39 // pred_fallthru
          _
        // Predicated region
        $region49: #{bilstm_forward.9} parent=39 // pred_check
          %p1289 = pneg %p140
        $region50: #{bilstm_forward.9} parent=39 // pred_check_branch
          %1291 = sbr.rel (%p1289) target = $region52
        $region51: #{bilstm_forward.9} parent=39 // pred_region
          %s1293 = ssub.s32 32, 32
          %1294 = vsyncadd [#allocation5], %s1293
          %s1296 = sshll.u32 [#allocation4], 4
          %s1297 = int_to_ptr.vmem [resolvable:$true] %s1296
          %1299 = dma.vmem_to_hbm [thread:$0]  %s1297, 32, %s5, [#allocation5]
        $region52: #{bilstm_forward.9} parent=39 // pred_fallthru
          _
        // Predicated region
        $region53: #{bilstm_forward.9} parent=39 // pred_check
          %p1300 = pneg %p140
        $region54: #{bilstm_forward.9} parent=39 // pred_check_branch
          %1302 = sbr.rel (%p1300) target = $region56
        $region55: #{bilstm_forward.9} parent=39 // pred_region
          %1303 = dma.done [#allocation5], 32
        $region56: #{bilstm_forward.9} parent=39 // pred_fallthru
          _
      $region40: #{bilstm_forward.9} parent=5 // pred_fallthru
        _
      %p1304 = scmp.le.s32.totalorder 2, %s12
      // Predicated region
      $region57: #{bilstm_forward.9} parent=5 // pred_check
        %p1305 = pneg %p1304
      $region58: #{bilstm_forward.9} parent=5 // pred_check_branch
        %1307 = sbr.rel (%p1305) target = $region60
      $region59: #{bilstm_forward.9} parent=5 // pred_region
        %s1308 = ssub.s32 %s12, 2
      $region60: #{bilstm_forward.9} parent=5 // pred_fallthru
        _
    $region6: #{bilstm_forward.9} parent=1 // loop_footer
      %s16 = sadd.s32 1, %s12
    $region7: #{bilstm_forward.9} parent=1 // loop_footer_branch
      %11 = sbr.rel target = $region3
    $region8: #{bilstm_forward.9} parent=1 // loop_exit
      _
    %1309 = vsyncpa [#allocation5], 1
    %s1310 = scalar_lea.sflag [#allocation5], 1
    %1311 = vsyncpa %s1310, 1

</llo_original>
